<compile_context>
chip_gen: v5e
topology: v5e:2x2
jax: 0.10.0
libtpu: 0.0.40
codegen_flags: <defaults>
</compile_context>

<pallas_src>
import functools

import numpy as np
import jax
import jax.numpy as jnp
from jax import lax
from jax.experimental import pallas as pl
from jax.experimental.pallas import tpu as pltpu


# --------------------------- constant helper tables ---------------------------

def _pool_select_mats(B, OH, OW, C, pool, out_size):
    """y = sum_oy (L[oy] @ m) @ R[oy] gathers pooled maxima into torch NCHW-flatten order."""
    D = C * out_size * out_size
    L = np.zeros((out_size, B, B * OH), np.float32)
    R = np.zeros((out_size, C * OW, D), np.float32)
    for oy in range(out_size):
        for b in range(B):
            L[oy, b, b * OH + pool * oy] = 1.0
        for c in range(C):
            for ox in range(out_size):
                R[oy, c * OW + pool * ox,
                  c * out_size * out_size + oy * out_size + ox] = 1.0
    return jnp.asarray(L), jnp.asarray(R)


def _conv_toeplitz(w, W_in, OW, p):
    """w: (Cout, Cin, K, K) -> (K, Cin*W_in, Cout*OW) banded matrices (horizontal taps)."""
    Cout, Cin, K, _ = w.shape
    xin = jnp.arange(W_in)[None, :, None]
    x = jnp.arange(OW)[None, None, :]
    j = jnp.arange(K)[:, None, None]
    sel = (xin == x + j - p).astype(jnp.float32)          # (K, W_in, OW)
    t = jnp.einsum("ocij,jyx->icyox", w, sel)             # (K, Cin, W_in, Cout, OW)
    return t.reshape(K, Cin * W_in, Cout * OW)


# --------------------------------- the kernel ---------------------------------

def _discriminator_kernel(
        # shared inputs
        x1s_ref, emb_ref, lsel_ref, rsel_ref,
        # per-branch params (leading branch dim squeezed by the BlockSpec)
        t1_ref, t2_ref, b1_ref, b2_ref,
        wq_ref, wk_ref, wv_ref, wo_ref, bq_ref, bk_ref, bv_ref, bo_ref,
        f1w_ref, f1b_ref, f2w_ref, f2b_ref,
        # output: this branch's (B, C) sigmoid scores
        o_ref,
        # VMEM scratch
        p_scr, m_scr,
        *, Kmax, p_max, pad0, B, H, OH, OW, C, out_size, pool, num_heads):
    f32 = jnp.float32
    COW = C * OW
    R = B * OH
    D = C * out_size * out_size

    # ---- conv1 + ReLU: ONE MXU matmul over the precomputed shifted image stack.
    a1 = jnp.dot(x1s_ref[...], t1_ref[...], preferred_element_type=f32) + b1_ref[...]
    a1 = jnp.maximum(a1, 0.0)

    # ---- conv2: ONE matmul for all (vertical tap x horizontal band) blocks, then
    #      fold the vertical taps via static offset reads from scratch (no MXU).
    P = jnp.dot(a1, t2_ref[...], preferred_element_type=f32)      # (R, Kmax*COW)
    p_scr[pad0:pad0 + R, :] = P
    # row index inside each sample (built without % : 3-D iota, collapse leading dims)
    yib = lax.broadcasted_iota(jnp.int32, (B, OH, COW), 1).reshape(R, COW)
    acc = jnp.zeros((R, COW), f32)
    for j in range(Kmax):                       # vertical tap j <-> row shift s = j - p_max
        s = j - p_max
        blk = p_scr[pad0 + s:pad0 + s + R, j * COW:(j + 1) * COW]
        if s == 0:
            acc = acc + blk
        else:
            mask = (yib >= -s) & (yib < H - s)  # stay inside this sample's rows
            acc = acc + jnp.where(mask, blk, 0.0)
    a2 = jnp.maximum(acc + b2_ref[...], 0.0)

    # ---- MaxPool(pool x pool): separable window max via offset reads from scratch.
    m_scr[...] = jnp.zeros(m_scr.shape, f32)    # zero pad rows/lanes (a2 >= 0)
    m_scr[0:R, 0:COW] = a2
    m = a2
    for dr in range(1, pool):                   # max over the pool rows of each window
        m = jnp.maximum(m, m_scr[dr:dr + R, 0:COW])
    m_scr[0:R, 0:COW] = m
    for dl in range(1, pool):                   # max over the pool cols of each window
        m = jnp.maximum(m, m_scr[0:R, dl:dl + COW])

    # ---- gather window maxima into torch.flatten(NCHW) order: y (B, D)
    y = jnp.zeros((B, D), f32)
    for oy in range(out_size):
        t = jnp.dot(lsel_ref[oy], m, preferred_element_type=f32)
        y = y + jnp.dot(t, rsel_ref[oy], preferred_element_type=f32)
    y = jnp.maximum(y, 0.0)                     # ReLU after MaxPool (parity; no-op)

    # ---- cross-attention + residual (unbatched MHA: batch axis == sequence axis)
    q = jnp.dot(y, wq_ref[...], preferred_element_type=f32) + bq_ref[...]    # scale folded in
    k = jnp.dot(emb_ref[...], wk_ref[...], preferred_element_type=f32) + bk_ref[...]
    v = jnp.dot(y, wv_ref[...], preferred_element_type=f32) + bv_ref[...]
    hd = D // num_heads
    heads = []
    for h in range(num_heads):
        qh = q[:, h * hd:(h + 1) * hd]
        kh = k[:, h * hd:(h + 1) * hd]
        vh = v[:, h * hd:(h + 1) * hd]
        sc = lax.dot_general(qh, kh, (((1,), (1,)), ((), ())),
                             preferred_element_type=f32)           # (B, B)
        sc = sc - jnp.max(sc, axis=-1, keepdims=True)
        pw = jnp.exp(sc)
        pw = pw / jnp.sum(pw, axis=-1, keepdims=True)
        heads.append(jnp.dot(pw, vh, preferred_element_type=f32))
    attn = jnp.concatenate(heads, axis=-1)
    attn = jnp.dot(attn, wo_ref[...], preferred_element_type=f32) + bo_ref[...]
    y = y + attn

    # ---- MLP head: Linear / ReLU / Linear / Sigmoid
    h1 = jnp.maximum(
        jnp.dot(y, f1w_ref[...], preferred_element_type=f32) + f1b_ref[...], 0.0)
    o = jnp.dot(h1, f2w_ref[...], preferred_element_type=f32) + f2b_ref[...]
    o_ref[...] = (1.0 / (1.0 + jnp.exp(-o))).astype(o_ref.dtype)


# ------------------------------- forward wrapper -------------------------------

def _const_index_map(rank):
    def im(b):
        return (0,) * rank
    return im


def _branch_index_map(rank_rest):
    def im(b):
        return (b,) + (0,) * rank_rest
    return im


def discriminator_forward(params, image, embeddings, cfg):
    B, Cin, H, W = image.shape
    image_size = cfg["image_size"]
    C = cfg["conv_features"]
    out_size = C
    num_heads = cfg["num_heads"]
    OH, OW = H, W
    pool = image_size // out_size
    D = C * out_size * out_size
    assert H == image_size and W == image_size
    assert image_size % 32 == 0, "derived conv kernels must preserve spatial size"
    assert pool >= 1 and OH % pool == 0 and OW % pool == 0
    assert D % num_heads == 0

    kernel_sizes = (image_size // 4, image_size // 8, image_size // 16)
    Ks = tuple(ks + 1 for ks in kernel_sizes)
    pads = tuple(ks // 2 for ks in kernel_sizes)
    Kmax, p_max = max(Ks), max(pads)
    names = ("low", "medium", "high")
    CinW = Cin * W
    COW = C * OW

    # image -> (B*H, Cin*W) rows=(b, y), cols=(ci, x), plus its row-shifted stack
    # for conv1 (slot j holds the image shifted by s = j - p_max, zero filled at the
    # top/bottom of each sample).  Shared by all three branches; built once in XLA.
    x1 = image.astype(jnp.float32).transpose(0, 2, 1, 3).reshape(B, H, CinW)
    slots = []
    for j in range(Kmax):
        s = j - p_max
        if s == 0:
            sh = x1
        elif s > 0:
            sh = jnp.concatenate(
                [x1[:, s:, :], jnp.zeros((B, s, CinW), jnp.float32)], axis=1)
        else:
            sh = jnp.concatenate(
                [jnp.zeros((B, -s, CinW), jnp.float32), x1[:, :H + s, :]], axis=1)
        slots.append(sh.reshape(B * H, CinW))
    x1s = jnp.concatenate(slots, axis=1)                    # (B*H, Kmax*Cin*W)

    lsel, rsel = _pool_select_mats(B, OH, OW, C, pool, out_size)

    # per-branch parameter expansion, zero-padded to Kmax taps so every grid step
    # (= one branch) runs identical code on its own table slice.
    keys = ("t1", "t2", "b1", "b2", "wq", "wk", "wv", "wo",
            "bq", "bk", "bv", "bo", "f1w", "f1b", "f2w", "f2b")
    stacks = {k: [] for k in keys}
    scale = 1.0 / float(D // num_heads) ** 0.5
    for name, K, p in zip(names, Ks, pads):
        prm = params[name]
        off = p_max - p
        t1 = jnp.zeros((Kmax, CinW, COW), jnp.float32)
        t1 = t1.at[off:off + K].set(_conv_toeplitz(prm["conv1_w"], W, OW, p))
        t2 = jnp.zeros((Kmax, COW, COW), jnp.float32)
        t2 = t2.at[off:off + K].set(_conv_toeplitz(prm["conv2_w"], OW, OW, p))
        stacks["t1"].append(t1.reshape(Kmax * CinW, COW))
        stacks["t2"].append(jnp.transpose(t2, (1, 0, 2)).reshape(COW, Kmax * COW))
        stacks["b1"].append(jnp.repeat(prm["conv1_b"], OW)[None, :])
        stacks["b2"].append(jnp.repeat(prm["conv2_b"], OW)[None, :])
        a = prm["attn"]
        stacks["wq"].append(a["wqT"] * scale)               # fold 1/sqrt(head_dim)
        stacks["bq"].append(a["bq"][None, :] * scale)
        stacks["wk"].append(a["wkT"]); stacks["bk"].append(a["bk"][None, :])
        stacks["wv"].append(a["wvT"]); stacks["bv"].append(a["bv"][None, :])
        stacks["wo"].append(a["woT"]); stacks["bo"].append(a["bo"][None, :])
        stacks["f1w"].append(prm["fc1_w"].T); stacks["f1b"].append(prm["fc1_b"][None, :])
        stacks["f2w"].append(prm["fc2_w"].T); stacks["f2b"].append(prm["fc2_b"][None, :])
    stacked = tuple(jnp.stack(stacks[k], axis=0) for k in keys)

    shared = (x1s, embeddings.astype(jnp.float32), lsel, rsel)

    def whole(a):        # full array, resident across all grid steps
        return pl.BlockSpec(a.shape, _const_index_map(a.ndim))

    def per_branch(a):   # leading (branch) dim squeezed, indexed by grid step
        rest = a.shape[1:]
        return pl.BlockSpec((None,) + rest, _branch_index_map(len(rest)))

    in_specs = [whole(a) for a in shared] + [per_branch(a) for a in stacked]

    pad0 = ((p_max + 7) // 8) * 8       # 8-aligned top pad so the big store is aligned
    scratch_shapes = [
        pltpu.VMEM((pad0 + B * OH + p_max, Kmax * COW), jnp.float32),   # conv2 taps
        pltpu.VMEM((B * OH + pool - 1, COW + pool - 1), jnp.float32),   # maxpool windows
    ]

    kernel = functools.partial(
        _discriminator_kernel, Kmax=Kmax, p_max=p_max, pad0=pad0, B=B, H=H,
        OH=OH, OW=OW, C=C, out_size=out_size, pool=pool, num_heads=num_heads)

    branch_out = pl.pallas_call(
        kernel,
        out_shape=jax.ShapeDtypeStruct((3, B, C), jnp.float32),
        grid=(3,),
        in_specs=in_specs,
        out_specs=pl.BlockSpec((None, B, C), lambda b: (b, 0, 0)),
        scratch_shapes=scratch_shapes,
        compiler_params=pltpu.CompilerParams(dimension_semantics=("parallel",)),
    )(*shared, *stacked)

    total = (branch_out[0] + branch_out[1] + branch_out[2]) / 3.0   # tiny; stays in XLA
    return total.reshape(B, -1)                                     # torch.flatten (no-op on 2-D)


# ---------------------------- parameter creation ----------------------------

def init_detail_params(key, conv_features, kernel_size, embed_dim):
    C = conv_features
    K = kernel_size + 1
    D = C * C * C                                          # C * output_size**2, output_size == C
    keys = jax.random.split(key, 16)

    def nrm(k, shape, fan_in):
        return jax.random.normal(k, shape, jnp.float32) / jnp.sqrt(float(fan_in))

    return {
        "conv1_w": nrm(keys[0], (C, 3, K, K), 3 * K * K),
        "conv1_b": nrm(keys[1], (C,), 3 * K * K),
        "conv2_w": nrm(keys[2], (C, C, K, K), C * K * K),
        "conv2_b": nrm(keys[3], (C,), C * K * K),
        "fc1_w": nrm(keys[4], (D, D), D),                  # PyTorch (out, in)
        "fc1_b": nrm(keys[5], (D,), D),
        "fc2_w": nrm(keys[6], (C, D), D),
        "fc2_b": nrm(keys[7], (C,), D),
        "attn": {                                          # stored pre-transposed: x @ W
            "wqT": nrm(keys[8], (D, D), D),
            "wkT": nrm(keys[9], (embed_dim, D), embed_dim),
            "wvT": nrm(keys[10], (D, D), D),
            "woT": nrm(keys[11], (D, D), D),
            "bq": nrm(keys[12], (D,), D),
            "bk": nrm(keys[13], (D,), D),
            "bv": nrm(keys[14], (D,), D),
            "bo": nrm(keys[15], (D,), D),
        },
    }


# ------------------------------ plain-JAX reference -------------------------------

def reference_forward(params, image, embeddings, cfg):
    def conv(x, w, b, pad):
        y = jax.lax.conv_general_dilated(
            x, w, window_strides=(1, 1), padding=[(pad, pad), (pad, pad)],
            dimension_numbers=("NCHW", "OIHW", "NCHW"))
        return jnp.maximum(y + b[None, :, None, None], 0.0)

    def detail(p, ks):
        pad = ks // 2
        x = conv(image, p["conv1_w"], p["conv1_b"], pad)
        x = conv(x, p["conv2_w"], p["conv2_b"], pad)
        pool = cfg["image_size"] // cfg["conv_features"]
        B, C, H, W = x.shape
        oh, ow = H // pool, W // pool
        x = x.reshape(B, C, oh, pool, ow, pool).max(axis=(3, 5))
        x = jnp.maximum(x, 0.0)
        y = x.reshape(B, -1)
        a = p["attn"]
        q = y @ a["wqT"] + a["bq"]
        k = embeddings @ a["wkT"] + a["bk"]
        v = y @ a["wvT"] + a["bv"]
        nh = cfg["num_heads"]
        D = q.shape[1]
        hd = D // nh
        heads = []
        for h in range(nh):
            qh = q[:, h * hd:(h + 1) * hd] / jnp.sqrt(float(hd))
            kh = k[:, h * hd:(h + 1) * hd]
            vh = v[:, h * hd:(h + 1) * hd]
            s = qh @ kh.T
            s = s - jnp.max(s, axis=-1, keepdims=True)
            pw = jnp.exp(s)
            pw = pw / jnp.sum(pw, axis=-1, keepdims=True)
            heads.append(pw @ vh)
        attn = jnp.concatenate(heads, axis=-1) @ a["woT"] + a["bo"]
        y = y + attn
        y = jnp.maximum(y @ p["fc1_w"].T + p["fc1_b"], 0.0)
        y = 1.0 / (1.0 + jnp.exp(-(y @ p["fc2_w"].T + p["fc2_b"])))
        return y

    lo = detail(params["low"], cfg["image_size"] // 4)
    me = detail(params["medium"], cfg["image_size"] // 8)
    hi = detail(params["high"], cfg["image_size"] // 16)
    total = (lo + me + hi) / 3.0
    return total.reshape(total.shape[0], -1)


# ----------------------------------- main -----------------------------------

if __name__ == "__main__":
    # image_size must be a multiple of 32 so the three derived conv kernels
    # (image_size//4 + 1, //8 + 1, //16 + 1) preserve spatial size with their padding.
    cfg = dict(image_size=32, conv_features=4, embed_dim=32, num_heads=4)
    B = 2

    key = jax.random.PRNGKey(0)
    k_img, k_emb, k_lo, k_me, k_hi = jax.random.split(key, 5)
    image = jax.random.normal(k_img, (B, 3, cfg["image_size"], cfg["image_size"]), jnp.float32)
    embeddings = jax.random.normal(k_emb, (B, cfg["embed_dim"]), jnp.float32)

    params = {
        "low": init_detail_params(k_lo, cfg["conv_features"], cfg["image_size"] // 4, cfg["embed_dim"]),
        "medium": init_detail_params(k_me, cfg["conv_features"], cfg["image_size"] // 8, cfg["embed_dim"]),
        "high": init_detail_params(k_hi, cfg["conv_features"], cfg["image_size"] // 16, cfg["embed_dim"]),
    }

    fwd = jax.jit(functools.partial(discriminator_forward, cfg=cfg))
    out = jax.block_until_ready(fwd(params, image, embeddings))

    assert out.shape == (B, cfg["conv_features"]), out.shape

    ref = reference_forward(params, image, embeddings, cfg)
    if not jnp.allclose(out, ref, atol=2e-3, rtol=2e-3):
        raise AssertionError(f"Pallas/reference mismatch:\n{out}\n{ref}")

    print("KERNEL_OK")
</pallas_src>

<mosaic_0001>
module attributes {stable_mosaic.version = 11 : i64} {
  func.func @_discriminator_kernel(%arg0: i32, %arg1: memref<64x864xf32, #tpu.memory_space<vmem>>, %arg2: memref<2x32xf32, #tpu.memory_space<vmem>>, %arg3: memref<4x2x64xf32, #tpu.memory_space<vmem>>, %arg4: memref<4x128x64xf32, #tpu.memory_space<vmem>>, %arg5: memref<1x864x128xf32, #tpu.memory_space<vmem>>, %arg6: memref<1x128x1152xf32, #tpu.memory_space<vmem>>, %arg7: memref<1x1x128xf32, #tpu.memory_space<vmem>>, %arg8: memref<1x1x128xf32, #tpu.memory_space<vmem>>, %arg9: memref<1x64x64xf32, #tpu.memory_space<vmem>>, %arg10: memref<1x32x64xf32, #tpu.memory_space<vmem>>, %arg11: memref<1x64x64xf32, #tpu.memory_space<vmem>>, %arg12: memref<1x64x64xf32, #tpu.memory_space<vmem>>, %arg13: memref<1x1x64xf32, #tpu.memory_space<vmem>>, %arg14: memref<1x1x64xf32, #tpu.memory_space<vmem>>, %arg15: memref<1x1x64xf32, #tpu.memory_space<vmem>>, %arg16: memref<1x1x64xf32, #tpu.memory_space<vmem>>, %arg17: memref<1x64x64xf32, #tpu.memory_space<vmem>>, %arg18: memref<1x1x64xf32, #tpu.memory_space<vmem>>, %arg19: memref<1x64x4xf32, #tpu.memory_space<vmem>>, %arg20: memref<1x1x4xf32, #tpu.memory_space<vmem>>, %arg21: memref<1x2x4xf32, #tpu.memory_space<vmem>>, %arg22: memref<76x1152xf32, #tpu.memory_space<vmem>>, %arg23: memref<71x135xf32, #tpu.memory_space<vmem>>) attributes {dimension_semantics = [#tpu.dimension_semantics<parallel>], iteration_bounds = array<i64: 3>, scalar_prefetch = 0 : i64, scratch_operands = 2 : i64, tpu.core_type = #tpu.core_type<tc>, window_params = [{pipeline_mode = #tpu.pipeline_mode<synchronous>, transform_indices = @transform_0, window_bounds = array<i64: 64, 864>}, {pipeline_mode = #tpu.pipeline_mode<synchronous>, transform_indices = @transform_1, window_bounds = array<i64: 2, 32>}, {pipeline_mode = #tpu.pipeline_mode<synchronous>, transform_indices = @transform_2, window_bounds = array<i64: 4, 2, 64>}, {pipeline_mode = #tpu.pipeline_mode<synchronous>, transform_indices = @transform_3, window_bounds = array<i64: 4, 128, 64>}, {transform_indices = @transform_4, window_bounds = array<i64: 1, 864, 128>}, {transform_indices = @transform_5, window_bounds = array<i64: 1, 128, 1152>}, {transform_indices = @transform_6, window_bounds = array<i64: 1, 1, 128>}, {transform_indices = @transform_7, window_bounds = array<i64: 1, 1, 128>}, {transform_indices = @transform_8, window_bounds = array<i64: 1, 64, 64>}, {transform_indices = @transform_9, window_bounds = array<i64: 1, 32, 64>}, {transform_indices = @transform_10, window_bounds = array<i64: 1, 64, 64>}, {transform_indices = @transform_11, window_bounds = array<i64: 1, 64, 64>}, {transform_indices = @transform_12, window_bounds = array<i64: 1, 1, 64>}, {transform_indices = @transform_13, window_bounds = array<i64: 1, 1, 64>}, {transform_indices = @transform_14, window_bounds = array<i64: 1, 1, 64>}, {transform_indices = @transform_15, window_bounds = array<i64: 1, 1, 64>}, {transform_indices = @transform_16, window_bounds = array<i64: 1, 64, 64>}, {transform_indices = @transform_17, window_bounds = array<i64: 1, 1, 64>}, {transform_indices = @transform_18, window_bounds = array<i64: 1, 64, 4>}, {transform_indices = @transform_19, window_bounds = array<i64: 1, 1, 4>}, {transform_indices = @transform_20, window_bounds = array<i64: 1, 2, 4>}]} {
    %c0 = arith.constant 0 : index
    %c0_0 = arith.constant 0 : index
    %0 = vector.load %arg1[%c0, %c0_0] : memref<64x864xf32, #tpu.memory_space<vmem>>, vector<64x864xf32>
    %c0_1 = arith.constant 0 : index
    %c0_2 = arith.constant 0 : index
    %c0_3 = arith.constant 0 : index
    %1 = vector.load %arg5[%c0_1, %c0_2, %c0_3] : memref<1x864x128xf32, #tpu.memory_space<vmem>>, vector<1x864x128xf32>
    %2 = vector.shape_cast %1 : vector<1x864x128xf32> to vector<864x128xf32>
    %cst = arith.constant dense<0.000000e+00> : vector<64x128xf32>
    %3 = tpu.matmul %0, %2, %cst {dimension_numbers = #tpu.dot_dimension_numbers<[1], [0], [0], [1], [0, 0, 1, 1], [], []>} : vector<64x864xf32>, vector<864x128xf32>, vector<64x128xf32> -> vector<64x128xf32>
    %c0_4 = arith.constant 0 : index
    %c0_5 = arith.constant 0 : index
    %c0_6 = arith.constant 0 : index
    %4 = vector.load %arg7[%c0_4, %c0_5, %c0_6] : memref<1x1x128xf32, #tpu.memory_space<vmem>>, vector<1x1x128xf32>
    %5 = vector.shape_cast %4 : vector<1x1x128xf32> to vector<1x128xf32>
    %6 = vector.broadcast %5 : vector<1x128xf32> to vector<64x128xf32>
    %7 = arith.addf %3, %6 : vector<64x128xf32>
    %cst_7 = arith.constant 0.000000e+00 : f32
    %8 = vector.broadcast %cst_7 : f32 to vector<64x128xf32>
    %9 = arith.maximumf %7, %8 : vector<64x128xf32>
    %c0_8 = arith.constant 0 : index
    %c0_9 = arith.constant 0 : index
    %c0_10 = arith.constant 0 : index
    %10 = vector.load %arg6[%c0_8, %c0_9, %c0_10] : memref<1x128x1152xf32, #tpu.memory_space<vmem>>, vector<1x128x1152xf32>
    %11 = vector.shape_cast %10 : vector<1x128x1152xf32> to vector<128x1152xf32>
    %cst_11 = arith.constant dense<0.000000e+00> : vector<64x1152xf32>
    %12 = tpu.matmul %9, %11, %cst_11 {dimension_numbers = #tpu.dot_dimension_numbers<[1], [0], [0], [1], [0, 0, 1, 1], [], []>} : vector<64x128xf32>, vector<128x1152xf32>, vector<64x1152xf32> -> vector<64x1152xf32>
    %c8 = arith.constant 8 : index
    %c0_12 = arith.constant 0 : index
    %13 = vector.load %arg22[%c8, %c0_12] : memref<76x1152xf32, #tpu.memory_space<vmem>>, vector<64x1152xf32>
    tpu.vector_store %arg22[%c8, %c0_12], %12 {strides = array<i32>} : memref<76x1152xf32, #tpu.memory_space<vmem>>, vector<64x1152xf32>,
    %14 = tpu.iota {dimensions = array<i32: 1>} : vector<2x32x128xi32>
    %15 = vector.shape_cast %14 : vector<2x32x128xi32> to vector<64x128xi32>
    %cst_13 = arith.constant 0.000000e+00 : f32
    %16 = vector.broadcast %cst_13 : f32 to vector<64x128xf32>
    %c4 = arith.constant 4 : index
    %c0_14 = arith.constant 0 : index
    %17 = vector.load %arg22[%c4, %c0_14] : memref<76x1152xf32, #tpu.memory_space<vmem>>, vector<64x128xf32>
    %c4_i32 = arith.constant 4 : i32
    %18 = vector.broadcast %c4_i32 : i32 to vector<64x128xi32>
    %19 = arith.cmpi sge, %15, %18 : vector<64x128xi32>
    %c36_i32 = arith.constant 36 : i32
    %20 = vector.broadcast %c36_i32 : i32 to vector<64x128xi32>
    %21 = arith.cmpi slt, %15, %20 : vector<64x128xi32>
    %22 = arith.andi %19, %21 : vector<64x128xi1>
    %cst_15 = arith.constant 0.000000e+00 : f32
    %23 = vector.broadcast %cst_15 : f32 to vector<64x128xf32>
    %24 = arith.select %22, %17, %23 : vector<64x128xi1>, vector<64x128xf32>
    %25 = arith.addf %16, %24 : vector<64x128xf32>
    %c5 = arith.constant 5 : index
    %c128 = arith.constant 128 : index
    %26 = vector.load %arg22[%c5, %c128] : memref<76x1152xf32, #tpu.memory_space<vmem>>, vector<64x128xf32>
    %c3_i32 = arith.constant 3 : i32
    %27 = vector.broadcast %c3_i32 : i32 to vector<64x128xi32>
    %28 = arith.cmpi sge, %15, %27 : vector<64x128xi32>
    %c35_i32 = arith.constant 35 : i32
    %29 = vector.broadcast %c35_i32 : i32 to vector<64x128xi32>
    %30 = arith.cmpi slt, %15, %29 : vector<64x128xi32>
    %31 = arith.andi %28, %30 : vector<64x128xi1>
    %cst_16 = arith.constant 0.000000e+00 : f32
    %32 = vector.broadcast %cst_16 : f32 to vector<64x128xf32>
    %33 = arith.select %31, %26, %32 : vector<64x128xi1>, vector<64x128xf32>
    %34 = arith.addf %25, %33 : vector<64x128xf32>
    %c6 = arith.constant 6 : index
    %c256 = arith.constant 256 : index
    %35 = vector.load %arg22[%c6, %c256] : memref<76x1152xf32, #tpu.memory_space<vmem>>, vector<64x128xf32>
    %c2_i32 = arith.constant 2 : i32
    %36 = vector.broadcast %c2_i32 : i32 to vector<64x128xi32>
    %37 = arith.cmpi sge, %15, %36 : vector<64x128xi32>
    %c34_i32 = arith.constant 34 : i32
    %38 = vector.broadcast %c34_i32 : i32 to vector<64x128xi32>
    %39 = arith.cmpi slt, %15, %38 : vector<64x128xi32>
    %40 = arith.andi %37, %39 : vector<64x128xi1>
    %cst_17 = arith.constant 0.000000e+00 : f32
    %41 = vector.broadcast %cst_17 : f32 to vector<64x128xf32>
    %42 = arith.select %40, %35, %41 : vector<64x128xi1>, vector<64x128xf32>
    %43 = arith.addf %34, %42 : vector<64x128xf32>
    %c7 = arith.constant 7 : index
    %c384 = arith.constant 384 : index
    %44 = vector.load %arg22[%c7, %c384] : memref<76x1152xf32, #tpu.memory_space<vmem>>, vector<64x128xf32>
    %c1_i32 = arith.constant 1 : i32
    %45 = vector.broadcast %c1_i32 : i32 to vector<64x128xi32>
    %46 = arith.cmpi sge, %15, %45 : vector<64x128xi32>
    %c33_i32 = arith.constant 33 : i32
    %47 = vector.broadcast %c33_i32 : i32 to vector<64x128xi32>
    %48 = arith.cmpi slt, %15, %47 : vector<64x128xi32>
    %49 = arith.andi %46, %48 : vector<64x128xi1>
    %cst_18 = arith.constant 0.000000e+00 : f32
    %50 = vector.broadcast %cst_18 : f32 to vector<64x128xf32>
    %51 = arith.select %49, %44, %50 : vector<64x128xi1>, vector<64x128xf32>
    %52 = arith.addf %43, %51 : vector<64x128xf32>
    %c8_19 = arith.constant 8 : index
    %c512 = arith.constant 512 : index
    %53 = vector.load %arg22[%c8_19, %c512] : memref<76x1152xf32, #tpu.memory_space<vmem>>, vector<64x128xf32>
    %54 = arith.addf %52, %53 : vector<64x128xf32>
    %c9 = arith.constant 9 : index
    %c640 = arith.constant 640 : index
    %55 = vector.load %arg22[%c9, %c640] : memref<76x1152xf32, #tpu.memory_space<vmem>>, vector<64x128xf32>
    %c-1_i32 = arith.constant -1 : i32
    %56 = vector.broadcast %c-1_i32 : i32 to vector<64x128xi32>
    %57 = arith.cmpi sge, %15, %56 : vector<64x128xi32>
    %c31_i32 = arith.constant 31 : i32
    %58 = vector.broadcast %c31_i32 : i32 to vector<64x128xi32>
    %59 = arith.cmpi slt, %15, %58 : vector<64x128xi32>
    %60 = arith.andi %57, %59 : vector<64x128xi1>
    %cst_20 = arith.constant 0.000000e+00 : f32
    %61 = vector.broadcast %cst_20 : f32 to vector<64x128xf32>
    %62 = arith.select %60, %55, %61 : vector<64x128xi1>, vector<64x128xf32>
    %63 = arith.addf %54, %62 : vector<64x128xf32>
    %c10 = arith.constant 10 : index
    %c768 = arith.constant 768 : index
    %64 = vector.load %arg22[%c10, %c768] : memref<76x1152xf32, #tpu.memory_space<vmem>>, vector<64x128xf32>
    %c-2_i32 = arith.constant -2 : i32
    %65 = vector.broadcast %c-2_i32 : i32 to vector<64x128xi32>
    %66 = arith.cmpi sge, %15, %65 : vector<64x128xi32>
    %c30_i32 = arith.constant 30 : i32
    %67 = vector.broadcast %c30_i32 : i32 to vector<64x128xi32>
    %68 = arith.cmpi slt, %15, %67 : vector<64x128xi32>
    %69 = arith.andi %66, %68 : vector<64x128xi1>
    %cst_21 = arith.constant 0.000000e+00 : f32
    %70 = vector.broadcast %cst_21 : f32 to vector<64x128xf32>
    %71 = arith.select %69, %64, %70 : vector<64x128xi1>, vector<64x128xf32>
    %72 = arith.addf %63, %71 : vector<64x128xf32>
    %c11 = arith.constant 11 : index
    %c896 = arith.constant 896 : index
    %73 = vector.load %arg22[%c11, %c896] : memref<76x1152xf32, #tpu.memory_space<vmem>>, vector<64x128xf32>
    %c-3_i32 = arith.constant -3 : i32
    %74 = vector.broadcast %c-3_i32 : i32 to vector<64x128xi32>
    %75 = arith.cmpi sge, %15, %74 : vector<64x128xi32>
    %c29_i32 = arith.constant 29 : i32
    %76 = vector.broadcast %c29_i32 : i32 to vector<64x128xi32>
    %77 = arith.cmpi slt, %15, %76 : vector<64x128xi32>
    %78 = arith.andi %75, %77 : vector<64x128xi1>
    %cst_22 = arith.constant 0.000000e+00 : f32
    %79 = vector.broadcast %cst_22 : f32 to vector<64x128xf32>
    %80 = arith.select %78, %73, %79 : vector<64x128xi1>, vector<64x128xf32>
    %81 = arith.addf %72, %80 : vector<64x128xf32>
    %c12 = arith.constant 12 : index
    %c1024 = arith.constant 1024 : index
    %82 = vector.load %arg22[%c12, %c1024] : memref<76x1152xf32, #tpu.memory_space<vmem>>, vector<64x128xf32>
    %c-4_i32 = arith.constant -4 : i32
    %83 = vector.broadcast %c-4_i32 : i32 to vector<64x128xi32>
    %84 = arith.cmpi sge, %15, %83 : vector<64x128xi32>
    %c28_i32 = arith.constant 28 : i32
    %85 = vector.broadcast %c28_i32 : i32 to vector<64x128xi32>
    %86 = arith.cmpi slt, %15, %85 : vector<64x128xi32>
    %87 = arith.andi %84, %86 : vector<64x128xi1>
    %cst_23 = arith.constant 0.000000e+00 : f32
    %88 = vector.broadcast %cst_23 : f32 to vector<64x128xf32>
    %89 = arith.select %87, %82, %88 : vector<64x128xi1>, vector<64x128xf32>
    %90 = arith.addf %81, %89 : vector<64x128xf32>
    %c0_24 = arith.constant 0 : index
    %c0_25 = arith.constant 0 : index
    %c0_26 = arith.constant 0 : index
    %91 = vector.load %arg8[%c0_24, %c0_25, %c0_26] : memref<1x1x128xf32, #tpu.memory_space<vmem>>, vector<1x1x128xf32>
    %92 = vector.shape_cast %91 : vector<1x1x128xf32> to vector<1x128xf32>
    %93 = vector.broadcast %92 : vector<1x128xf32> to vector<64x128xf32>
    %94 = arith.addf %90, %93 : vector<64x128xf32>
    %cst_27 = arith.constant 0.000000e+00 : f32
    %95 = vector.broadcast %cst_27 : f32 to vector<64x128xf32>
    %96 = arith.maximumf %94, %95 : vector<64x128xf32>
    %cst_28 = arith.constant 0.000000e+00 : f32
    %97 = vector.broadcast %cst_28 : f32 to vector<71x135xf32>
    %c0_29 = arith.constant 0 : index
    %c0_30 = arith.constant 0 : index
    %98 = vector.load %arg23[%c0_29, %c0_30] : memref<71x135xf32, #tpu.memory_space<vmem>>, vector<71x135xf32>
    tpu.vector_store %arg23[%c0_29, %c0_30], %97 {strides = array<i32>} : memref<71x135xf32, #tpu.memory_space<vmem>>, vector<71x135xf32>,
    %c0_31 = arith.constant 0 : index
    %c0_32 = arith.constant 0 : index
    %99 = vector.load %arg23[%c0_31, %c0_32] : memref<71x135xf32, #tpu.memory_space<vmem>>, vector<64x128xf32>
    tpu.vector_store %arg23[%c0_31, %c0_32], %96 {strides = array<i32>} : memref<71x135xf32, #tpu.memory_space<vmem>>, vector<64x128xf32>,
    %c1 = arith.constant 1 : index
    %c0_33 = arith.constant 0 : index
    %100 = vector.load %arg23[%c1, %c0_33] : memref<71x135xf32, #tpu.memory_space<vmem>>, vector<64x128xf32>
    %101 = arith.maximumf %96, %100 : vector<64x128xf32>
    %c2 = arith.constant 2 : index
    %c0_34 = arith.constant 0 : index
    %102 = vector.load %arg23[%c2, %c0_34] : memref<71x135xf32, #tpu.memory_space<vmem>>, vector<64x128xf32>
    %103 = arith.maximumf %101, %102 : vector<64x128xf32>
    %c3 = arith.constant 3 : index
    %c0_35 = arith.constant 0 : index
    %104 = vector.load %arg23[%c3, %c0_35] : memref<71x135xf32, #tpu.memory_space<vmem>>, vector<64x128xf32>
    %105 = arith.maximumf %103, %104 : vector<64x128xf32>
    %c4_36 = arith.constant 4 : index
    %c0_37 = arith.constant 0 : index
    %106 = vector.load %arg23[%c4_36, %c0_37] : memref<71x135xf32, #tpu.memory_space<vmem>>, vector<64x128xf32>
    %107 = arith.maximumf %105, %106 : vector<64x128xf32>
    %c5_38 = arith.constant 5 : index
    %c0_39 = arith.constant 0 : index
    %108 = vector.load %arg23[%c5_38, %c0_39] : memref<71x135xf32, #tpu.memory_space<vmem>>, vector<64x128xf32>
    %109 = arith.maximumf %107, %108 : vector<64x128xf32>
    %c6_40 = arith.constant 6 : index
    %c0_41 = arith.constant 0 : index
    %110 = vector.load %arg23[%c6_40, %c0_41] : memref<71x135xf32, #tpu.memory_space<vmem>>, vector<64x128xf32>
    %111 = arith.maximumf %109, %110 : vector<64x128xf32>
    %c7_42 = arith.constant 7 : index
    %c0_43 = arith.constant 0 : index
    %112 = vector.load %arg23[%c7_42, %c0_43] : memref<71x135xf32, #tpu.memory_space<vmem>>, vector<64x128xf32>
    %113 = arith.maximumf %111, %112 : vector<64x128xf32>
    %c0_44 = arith.constant 0 : index
    %c0_45 = arith.constant 0 : index
    %114 = vector.load %arg23[%c0_44, %c0_45] : memref<71x135xf32, #tpu.memory_space<vmem>>, vector<64x128xf32>
    tpu.vector_store %arg23[%c0_44, %c0_45], %113 {strides = array<i32>} : memref<71x135xf32, #tpu.memory_space<vmem>>, vector<64x128xf32>,
    %c0_46 = arith.constant 0 : index
    %c1_47 = arith.constant 1 : index
    %115 = vector.load %arg23[%c0_46, %c1_47] : memref<71x135xf32, #tpu.memory_space<vmem>>, vector<64x128xf32>
    %116 = arith.maximumf %113, %115 : vector<64x128xf32>
    %c0_48 = arith.constant 0 : index
    %c2_49 = arith.constant 2 : index
    %117 = vector.load %arg23[%c0_48, %c2_49] : memref<71x135xf32, #tpu.memory_space<vmem>>, vector<64x128xf32>
    %118 = arith.maximumf %116, %117 : vector<64x128xf32>
    %c0_50 = arith.constant 0 : index
    %c3_51 = arith.constant 3 : index
    %119 = vector.load %arg23[%c0_50, %c3_51] : memref<71x135xf32, #tpu.memory_space<vmem>>, vector<64x128xf32>
    %120 = arith.maximumf %118, %119 : vector<64x128xf32>
    %c0_52 = arith.constant 0 : index
    %c4_53 = arith.constant 4 : index
    %121 = vector.load %arg23[%c0_52, %c4_53] : memref<71x135xf32, #tpu.memory_space<vmem>>, vector<64x128xf32>
    %122 = arith.maximumf %120, %121 : vector<64x128xf32>
    %c0_54 = arith.constant 0 : index
    %c5_55 = arith.constant 5 : index
    %123 = vector.load %arg23[%c0_54, %c5_55] : memref<71x135xf32, #tpu.memory_space<vmem>>, vector<64x128xf32>
    %124 = arith.maximumf %122, %123 : vector<64x128xf32>
    %c0_56 = arith.constant 0 : index
    %c6_57 = arith.constant 6 : index
    %125 = vector.load %arg23[%c0_56, %c6_57] : memref<71x135xf32, #tpu.memory_space<vmem>>, vector<64x128xf32>
    %126 = arith.maximumf %124, %125 : vector<64x128xf32>
    %c0_58 = arith.constant 0 : index
    %c7_59 = arith.constant 7 : index
    %127 = vector.load %arg23[%c0_58, %c7_59] : memref<71x135xf32, #tpu.memory_space<vmem>>, vector<64x128xf32>
    %128 = arith.maximumf %126, %127 : vector<64x128xf32>
    %cst_60 = arith.constant 0.000000e+00 : f32
    %129 = vector.broadcast %cst_60 : f32 to vector<2x64xf32>
    %c0_61 = arith.constant 0 : index
    %c0_62 = arith.constant 0 : index
    %c0_63 = arith.constant 0 : index
    %130 = vector.load %arg3[%c0_61, %c0_62, %c0_63] : memref<4x2x64xf32, #tpu.memory_space<vmem>>, vector<1x2x64xf32>
    %131 = vector.shape_cast %130 : vector<1x2x64xf32> to vector<2x64xf32>
    %cst_64 = arith.constant dense<0.000000e+00> : vector<2x128xf32>
    %132 = tpu.matmul %131, %128, %cst_64 {dimension_numbers = #tpu.dot_dimension_numbers<[1], [0], [0], [1], [0, 0, 1, 1], [], []>} : vector<2x64xf32>, vector<64x128xf32>, vector<2x128xf32> -> vector<2x128xf32>
    %c0_65 = arith.constant 0 : index
    %c0_66 = arith.constant 0 : index
    %c0_67 = arith.constant 0 : index
    %133 = vector.load %arg4[%c0_65, %c0_66, %c0_67] : memref<4x128x64xf32, #tpu.memory_space<vmem>>, vector<1x128x64xf32>
    %134 = vector.shape_cast %133 : vector<1x128x64xf32> to vector<128x64xf32>
    %cst_68 = arith.constant dense<0.000000e+00> : vector<2x64xf32>
    %135 = tpu.matmul %132, %134, %cst_68 {dimension_numbers = #tpu.dot_dimension_numbers<[1], [0], [0], [1], [0, 0, 1, 1], [], []>} : vector<2x128xf32>, vector<128x64xf32>, vector<2x64xf32> -> vector<2x64xf32>
    %136 = arith.addf %129, %135 : vector<2x64xf32>
    %c1_69 = arith.constant 1 : index
    %c0_70 = arith.constant 0 : index
    %c0_71 = arith.constant 0 : index
    %137 = vector.load %arg3[%c1_69, %c0_70, %c0_71] : memref<4x2x64xf32, #tpu.memory_space<vmem>>, vector<1x2x64xf32>
    %138 = vector.shape_cast %137 : vector<1x2x64xf32> to vector<2x64xf32>
    %cst_72 = arith.constant dense<0.000000e+00> : vector<2x128xf32>
    %139 = tpu.matmul %138, %128, %cst_72 {dimension_numbers = #tpu.dot_dimension_numbers<[1], [0], [0], [1], [0, 0, 1, 1], [], []>} : vector<2x64xf32>, vector<64x128xf32>, vector<2x128xf32> -> vector<2x128xf32>
    %c1_73 = arith.constant 1 : index
    %c0_74 = arith.constant 0 : index
    %c0_75 = arith.constant 0 : index
    %140 = vector.load %arg4[%c1_73, %c0_74, %c0_75] : memref<4x128x64xf32, #tpu.memory_space<vmem>>, vector<1x128x64xf32>
    %141 = vector.shape_cast %140 : vector<1x128x64xf32> to vector<128x64xf32>
    %cst_76 = arith.constant dense<0.000000e+00> : vector<2x64xf32>
    %142 = tpu.matmul %139, %141, %cst_76 {dimension_numbers = #tpu.dot_dimension_numbers<[1], [0], [0], [1], [0, 0, 1, 1], [], []>} : vector<2x128xf32>, vector<128x64xf32>, vector<2x64xf32> -> vector<2x64xf32>
    %143 = arith.addf %136, %142 : vector<2x64xf32>
    %c2_77 = arith.constant 2 : index
    %c0_78 = arith.constant 0 : index
    %c0_79 = arith.constant 0 : index
    %144 = vector.load %arg3[%c2_77, %c0_78, %c0_79] : memref<4x2x64xf32, #tpu.memory_space<vmem>>, vector<1x2x64xf32>
    %145 = vector.shape_cast %144 : vector<1x2x64xf32> to vector<2x64xf32>
    %cst_80 = arith.constant dense<0.000000e+00> : vector<2x128xf32>
    %146 = tpu.matmul %145, %128, %cst_80 {dimension_numbers = #tpu.dot_dimension_numbers<[1], [0], [0], [1], [0, 0, 1, 1], [], []>} : vector<2x64xf32>, vector<64x128xf32>, vector<2x128xf32> -> vector<2x128xf32>
    %c2_81 = arith.constant 2 : index
    %c0_82 = arith.constant 0 : index
    %c0_83 = arith.constant 0 : index
    %147 = vector.load %arg4[%c2_81, %c0_82, %c0_83] : memref<4x128x64xf32, #tpu.memory_space<vmem>>, vector<1x128x64xf32>
    %148 = vector.shape_cast %147 : vector<1x128x64xf32> to vector<128x64xf32>
    %cst_84 = arith.constant dense<0.000000e+00> : vector<2x64xf32>
    %149 = tpu.matmul %146, %148, %cst_84 {dimension_numbers = #tpu.dot_dimension_numbers<[1], [0], [0], [1], [0, 0, 1, 1], [], []>} : vector<2x128xf32>, vector<128x64xf32>, vector<2x64xf32> -> vector<2x64xf32>
    %150 = arith.addf %143, %149 : vector<2x64xf32>
    %c3_85 = arith.constant 3 : index
    %c0_86 = arith.constant 0 : index
    %c0_87 = arith.constant 0 : index
    %151 = vector.load %arg3[%c3_85, %c0_86, %c0_87] : memref<4x2x64xf32, #tpu.memory_space<vmem>>, vector<1x2x64xf32>
    %152 = vector.shape_cast %151 : vector<1x2x64xf32> to vector<2x64xf32>
    %cst_88 = arith.constant dense<0.000000e+00> : vector<2x128xf32>
    %153 = tpu.matmul %152, %128, %cst_88 {dimension_numbers = #tpu.dot_dimension_numbers<[1], [0], [0], [1], [0, 0, 1, 1], [], []>} : vector<2x64xf32>, vector<64x128xf32>, vector<2x128xf32> -> vector<2x128xf32>
    %c3_89 = arith.constant 3 : index
    %c0_90 = arith.constant 0 : index
    %c0_91 = arith.constant 0 : index
    %154 = vector.load %arg4[%c3_89, %c0_90, %c0_91] : memref<4x128x64xf32, #tpu.memory_space<vmem>>, vector<1x128x64xf32>
    %155 = vector.shape_cast %154 : vector<1x128x64xf32> to vector<128x64xf32>
    %cst_92 = arith.constant dense<0.000000e+00> : vector<2x64xf32>
    %156 = tpu.matmul %153, %155, %cst_92 {dimension_numbers = #tpu.dot_dimension_numbers<[1], [0], [0], [1], [0, 0, 1, 1], [], []>} : vector<2x128xf32>, vector<128x64xf32>, vector<2x64xf32> -> vector<2x64xf32>
    %157 = arith.addf %150, %156 : vector<2x64xf32>
    %cst_93 = arith.constant 0.000000e+00 : f32
    %158 = vector.broadcast %cst_93 : f32 to vector<2x64xf32>
    %159 = arith.maximumf %157, %158 : vector<2x64xf32>
    %c0_94 = arith.constant 0 : index
    %c0_95 = arith.constant 0 : index
    %c0_96 = arith.constant 0 : index
    %160 = vector.load %arg9[%c0_94, %c0_95, %c0_96] : memref<1x64x64xf32, #tpu.memory_space<vmem>>, vector<1x64x64xf32>
    %161 = vector.shape_cast %160 : vector<1x64x64xf32> to vector<64x64xf32>
    %cst_97 = arith.constant dense<0.000000e+00> : vector<2x64xf32>
    %162 = tpu.matmul %159, %161, %cst_97 {dimension_numbers = #tpu.dot_dimension_numbers<[1], [0], [0], [1], [0, 0, 1, 1], [], []>} : vector<2x64xf32>, vector<64x64xf32>, vector<2x64xf32> -> vector<2x64xf32>
    %c0_98 = arith.constant 0 : index
    %c0_99 = arith.constant 0 : index
    %c0_100 = arith.constant 0 : index
    %163 = vector.load %arg13[%c0_98, %c0_99, %c0_100] : memref<1x1x64xf32, #tpu.memory_space<vmem>>, vector<1x1x64xf32>
    %164 = vector.shape_cast %163 : vector<1x1x64xf32> to vector<1x64xf32>
    %165 = vector.broadcast %164 : vector<1x64xf32> to vector<2x64xf32>
    %166 = arith.addf %162, %165 : vector<2x64xf32>
    %c0_101 = arith.constant 0 : index
    %c0_102 = arith.constant 0 : index
    %167 = vector.load %arg2[%c0_101, %c0_102] : memref<2x32xf32, #tpu.memory_space<vmem>>, vector<2x32xf32>
    %c0_103 = arith.constant 0 : index
    %c0_104 = arith.constant 0 : index
    %c0_105 = arith.constant 0 : index
    %168 = vector.load %arg10[%c0_103, %c0_104, %c0_105] : memref<1x32x64xf32, #tpu.memory_space<vmem>>, vector<1x32x64xf32>
    %169 = vector.shape_cast %168 : vector<1x32x64xf32> to vector<32x64xf32>
    %cst_106 = arith.constant dense<0.000000e+00> : vector<2x64xf32>
    %170 = tpu.matmul %167, %169, %cst_106 {dimension_numbers = #tpu.dot_dimension_numbers<[1], [0], [0], [1], [0, 0, 1, 1], [], []>} : vector<2x32xf32>, vector<32x64xf32>, vector<2x64xf32> -> vector<2x64xf32>
    %c0_107 = arith.constant 0 : index
    %c0_108 = arith.constant 0 : index
    %c0_109 = arith.constant 0 : index
    %171 = vector.load %arg14[%c0_107, %c0_108, %c0_109] : memref<1x1x64xf32, #tpu.memory_space<vmem>>, vector<1x1x64xf32>
    %172 = vector.shape_cast %171 : vector<1x1x64xf32> to vector<1x64xf32>
    %173 = vector.broadcast %172 : vector<1x64xf32> to vector<2x64xf32>
    %174 = arith.addf %170, %173 : vector<2x64xf32>
    %c0_110 = arith.constant 0 : index
    %c0_111 = arith.constant 0 : index
    %c0_112 = arith.constant 0 : index
    %175 = vector.load %arg11[%c0_110, %c0_111, %c0_112] : memref<1x64x64xf32, #tpu.memory_space<vmem>>, vector<1x64x64xf32>
    %176 = vector.shape_cast %175 : vector<1x64x64xf32> to vector<64x64xf32>
    %cst_113 = arith.constant dense<0.000000e+00> : vector<2x64xf32>
    %177 = tpu.matmul %159, %176, %cst_113 {dimension_numbers = #tpu.dot_dimension_numbers<[1], [0], [0], [1], [0, 0, 1, 1], [], []>} : vector<2x64xf32>, vector<64x64xf32>, vector<2x64xf32> -> vector<2x64xf32>
    %c0_114 = arith.constant 0 : index
    %c0_115 = arith.constant 0 : index
    %c0_116 = arith.constant 0 : index
    %178 = vector.load %arg15[%c0_114, %c0_115, %c0_116] : memref<1x1x64xf32, #tpu.memory_space<vmem>>, vector<1x1x64xf32>
    %179 = vector.shape_cast %178 : vector<1x1x64xf32> to vector<1x64xf32>
    %180 = vector.broadcast %179 : vector<1x64xf32> to vector<2x64xf32>
    %181 = arith.addf %177, %180 : vector<2x64xf32>
    %182 = vector.extract_strided_slice %166 {offsets = [0, 0], sizes = [2, 16], strides = [1, 1]} : vector<2x64xf32> to vector<2x16xf32>
    %183 = vector.extract_strided_slice %174 {offsets = [0, 0], sizes = [2, 16], strides = [1, 1]} : vector<2x64xf32> to vector<2x16xf32>
    %184 = vector.extract_strided_slice %181 {offsets = [0, 0], sizes = [2, 16], strides = [1, 1]} : vector<2x64xf32> to vector<2x16xf32>
    %cst_117 = arith.constant dense<0.000000e+00> : vector<2x2xf32>
    %185 = tpu.matmul %182, %183, %cst_117 {dimension_numbers = #tpu.dot_dimension_numbers<[1], [1], [0], [0], [0, 0, 1, 0], [], []>} : vector<2x16xf32>, vector<2x16xf32>, vector<2x2xf32> -> vector<2x2xf32>
    %cst_118 = arith.constant dense<0xFF800000> : vector<2xf32>
    %186 = vector.multi_reduction <maximumf>, %185, %cst_118 [1] : vector<2x2xf32> to vector<2xf32>
    %187 = vector.shape_cast %186 : vector<2xf32> to vector<2x1xf32>
    %188 = vector.broadcast %187 : vector<2x1xf32> to vector<2x2xf32>
    %189 = arith.subf %185, %188 : vector<2x2xf32>
    %190 = math.exp %189 : vector<2x2xf32>
    %cst_119 = arith.constant dense<0.000000e+00> : vector<2xf32>
    %191 = vector.multi_reduction <add>, %190, %cst_119 [1] : vector<2x2xf32> to vector<2xf32>
    %192 = vector.shape_cast %191 : vector<2xf32> to vector<2x1xf32>
    %193 = vector.broadcast %192 : vector<2x1xf32> to vector<2x2xf32>
    %194 = arith.divf %190, %193 : vector<2x2xf32>
    %cst_120 = arith.constant dense<0.000000e+00> : vector<2x16xf32>
    %195 = tpu.matmul %194, %184, %cst_120 {dimension_numbers = #tpu.dot_dimension_numbers<[1], [0], [0], [1], [0, 0, 1, 1], [], []>} : vector<2x2xf32>, vector<2x16xf32>, vector<2x16xf32> -> vector<2x16xf32>
    %196 = vector.extract_strided_slice %166 {offsets = [0, 16], sizes = [2, 16], strides = [1, 1]} : vector<2x64xf32> to vector<2x16xf32>
    %197 = vector.extract_strided_slice %174 {offsets = [0, 16], sizes = [2, 16], strides = [1, 1]} : vector<2x64xf32> to vector<2x16xf32>
    %198 = vector.extract_strided_slice %181 {offsets = [0, 16], sizes = [2, 16], strides = [1, 1]} : vector<2x64xf32> to vector<2x16xf32>
    %cst_121 = arith.constant dense<0.000000e+00> : vector<2x2xf32>
    %199 = tpu.matmul %196, %197, %cst_121 {dimension_numbers = #tpu.dot_dimension_numbers<[1], [1], [0], [0], [0, 0, 1, 0], [], []>} : vector<2x16xf32>, vector<2x16xf32>, vector<2x2xf32> -> vector<2x2xf32>
    %cst_122 = arith.constant dense<0xFF800000> : vector<2xf32>
    %200 = vector.multi_reduction <maximumf>, %199, %cst_122 [1] : vector<2x2xf32> to vector<2xf32>
    %201 = vector.shape_cast %200 : vector<2xf32> to vector<2x1xf32>
    %202 = vector.broadcast %201 : vector<2x1xf32> to vector<2x2xf32>
    %203 = arith.subf %199, %202 : vector<2x2xf32>
    %204 = math.exp %203 : vector<2x2xf32>
    %cst_123 = arith.constant dense<0.000000e+00> : vector<2xf32>
    %205 = vector.multi_reduction <add>, %204, %cst_123 [1] : vector<2x2xf32> to vector<2xf32>
    %206 = vector.shape_cast %205 : vector<2xf32> to vector<2x1xf32>
    %207 = vector.broadcast %206 : vector<2x1xf32> to vector<2x2xf32>
    %208 = arith.divf %204, %207 : vector<2x2xf32>
    %cst_124 = arith.constant dense<0.000000e+00> : vector<2x16xf32>
    %209 = tpu.matmul %208, %198, %cst_124 {dimension_numbers = #tpu.dot_dimension_numbers<[1], [0], [0], [1], [0, 0, 1, 1], [], []>} : vector<2x2xf32>, vector<2x16xf32>, vector<2x16xf32> -> vector<2x16xf32>
    %210 = vector.extract_strided_slice %166 {offsets = [0, 32], sizes = [2, 16], strides = [1, 1]} : vector<2x64xf32> to vector<2x16xf32>
    %211 = vector.extract_strided_slice %174 {offsets = [0, 32], sizes = [2, 16], strides = [1, 1]} : vector<2x64xf32> to vector<2x16xf32>
    %212 = vector.extract_strided_slice %181 {offsets = [0, 32], sizes = [2, 16], strides = [1, 1]} : vector<2x64xf32> to vector<2x16xf32>
    %cst_125 = arith.constant dense<0.000000e+00> : vector<2x2xf32>
    %213 = tpu.matmul %210, %211, %cst_125 {dimension_numbers = #tpu.dot_dimension_numbers<[1], [1], [0], [0], [0, 0, 1, 0], [], []>} : vector<2x16xf32>, vector<2x16xf32>, vector<2x2xf32> -> vector<2x2xf32>
    %cst_126 = arith.constant dense<0xFF800000> : vector<2xf32>
    %214 = vector.multi_reduction <maximumf>, %213, %cst_126 [1] : vector<2x2xf32> to vector<2xf32>
    %215 = vector.shape_cast %214 : vector<2xf32> to vector<2x1xf32>
    %216 = vector.broadcast %215 : vector<2x1xf32> to vector<2x2xf32>
    %217 = arith.subf %213, %216 : vector<2x2xf32>
    %218 = math.exp %217 : vector<2x2xf32>
    %cst_127 = arith.constant dense<0.000000e+00> : vector<2xf32>
    %219 = vector.multi_reduction <add>, %218, %cst_127 [1] : vector<2x2xf32> to vector<2xf32>
    %220 = vector.shape_cast %219 : vector<2xf32> to vector<2x1xf32>
    %221 = vector.broadcast %220 : vector<2x1xf32> to vector<2x2xf32>
    %222 = arith.divf %218, %221 : vector<2x2xf32>
    %cst_128 = arith.constant dense<0.000000e+00> : vector<2x16xf32>
    %223 = tpu.matmul %222, %212, %cst_128 {dimension_numbers = #tpu.dot_dimension_numbers<[1], [0], [0], [1], [0, 0, 1, 1], [], []>} : vector<2x2xf32>, vector<2x16xf32>, vector<2x16xf32> -> vector<2x16xf32>
    %224 = vector.extract_strided_slice %166 {offsets = [0, 48], sizes = [2, 16], strides = [1, 1]} : vector<2x64xf32> to vector<2x16xf32>
    %225 = vector.extract_strided_slice %174 {offsets = [0, 48], sizes = [2, 16], strides = [1, 1]} : vector<2x64xf32> to vector<2x16xf32>
    %226 = vector.extract_strided_slice %181 {offsets = [0, 48], sizes = [2, 16], strides = [1, 1]} : vector<2x64xf32> to vector<2x16xf32>
    %cst_129 = arith.constant dense<0.000000e+00> : vector<2x2xf32>
    %227 = tpu.matmul %224, %225, %cst_129 {dimension_numbers = #tpu.dot_dimension_numbers<[1], [1], [0], [0], [0, 0, 1, 0], [], []>} : vector<2x16xf32>, vector<2x16xf32>, vector<2x2xf32> -> vector<2x2xf32>
    %cst_130 = arith.constant dense<0xFF800000> : vector<2xf32>
    %228 = vector.multi_reduction <maximumf>, %227, %cst_130 [1] : vector<2x2xf32> to vector<2xf32>
    %229 = vector.shape_cast %228 : vector<2xf32> to vector<2x1xf32>
    %230 = vector.broadcast %229 : vector<2x1xf32> to vector<2x2xf32>
    %231 = arith.subf %227, %230 : vector<2x2xf32>
    %232 = math.exp %231 : vector<2x2xf32>
    %cst_131 = arith.constant dense<0.000000e+00> : vector<2xf32>
    %233 = vector.multi_reduction <add>, %232, %cst_131 [1] : vector<2x2xf32> to vector<2xf32>
    %234 = vector.shape_cast %233 : vector<2xf32> to vector<2x1xf32>
    %235 = vector.broadcast %234 : vector<2x1xf32> to vector<2x2xf32>
    %236 = arith.divf %232, %235 : vector<2x2xf32>
    %cst_132 = arith.constant dense<0.000000e+00> : vector<2x16xf32>
    %237 = tpu.matmul %236, %226, %cst_132 {dimension_numbers = #tpu.dot_dimension_numbers<[1], [0], [0], [1], [0, 0, 1, 1], [], []>} : vector<2x2xf32>, vector<2x16xf32>, vector<2x16xf32> -> vector<2x16xf32>
    %238 = tpu.concatenate %195, %209, %223, %237 in 1 : vector<2x16xf32>, vector<2x16xf32>, vector<2x16xf32>, vector<2x16xf32> -> vector<2x64xf32>
    %c0_133 = arith.constant 0 : index
    %c0_134 = arith.constant 0 : index
    %c0_135 = arith.constant 0 : index
    %239 = vector.load %arg12[%c0_133, %c0_134, %c0_135] : memref<1x64x64xf32, #tpu.memory_space<vmem>>, vector<1x64x64xf32>
    %240 = vector.shape_cast %239 : vector<1x64x64xf32> to vector<64x64xf32>
    %cst_136 = arith.constant dense<0.000000e+00> : vector<2x64xf32>
    %241 = tpu.matmul %238, %240, %cst_136 {dimension_numbers = #tpu.dot_dimension_numbers<[1], [0], [0], [1], [0, 0, 1, 1], [], []>} : vector<2x64xf32>, vector<64x64xf32>, vector<2x64xf32> -> vector<2x64xf32>
    %c0_137 = arith.constant 0 : index
    %c0_138 = arith.constant 0 : index
    %c0_139 = arith.constant 0 : index
    %242 = vector.load %arg16[%c0_137, %c0_138, %c0_139] : memref<1x1x64xf32, #tpu.memory_space<vmem>>, vector<1x1x64xf32>
    %243 = vector.shape_cast %242 : vector<1x1x64xf32> to vector<1x64xf32>
    %244 = vector.broadcast %243 : vector<1x64xf32> to vector<2x64xf32>
    %245 = arith.addf %241, %244 : vector<2x64xf32>
    %246 = arith.addf %159, %245 : vector<2x64xf32>
    %c0_140 = arith.constant 0 : index
    %c0_141 = arith.constant 0 : index
    %c0_142 = arith.constant 0 : index
    %247 = vector.load %arg17[%c0_140, %c0_141, %c0_142] : memref<1x64x64xf32, #tpu.memory_space<vmem>>, vector<1x64x64xf32>
    %248 = vector.shape_cast %247 : vector<1x64x64xf32> to vector<64x64xf32>
    %cst_143 = arith.constant dense<0.000000e+00> : vector<2x64xf32>
    %249 = tpu.matmul %246, %248, %cst_143 {dimension_numbers = #tpu.dot_dimension_numbers<[1], [0], [0], [1], [0, 0, 1, 1], [], []>} : vector<2x64xf32>, vector<64x64xf32>, vector<2x64xf32> -> vector<2x64xf32>
    %c0_144 = arith.constant 0 : index
    %c0_145 = arith.constant 0 : index
    %c0_146 = arith.constant 0 : index
    %250 = vector.load %arg18[%c0_144, %c0_145, %c0_146] : memref<1x1x64xf32, #tpu.memory_space<vmem>>, vector<1x1x64xf32>
    %251 = vector.shape_cast %250 : vector<1x1x64xf32> to vector<1x64xf32>
    %252 = vector.broadcast %251 : vector<1x64xf32> to vector<2x64xf32>
    %253 = arith.addf %249, %252 : vector<2x64xf32>
    %cst_147 = arith.constant 0.000000e+00 : f32
    %254 = vector.broadcast %cst_147 : f32 to vector<2x64xf32>
    %255 = arith.maximumf %253, %254 : vector<2x64xf32>
    %c0_148 = arith.constant 0 : index
    %c0_149 = arith.constant 0 : index
    %c0_150 = arith.constant 0 : index
    %256 = vector.load %arg19[%c0_148, %c0_149, %c0_150] : memref<1x64x4xf32, #tpu.memory_space<vmem>>, vector<1x64x4xf32>
    %257 = vector.shape_cast %256 : vector<1x64x4xf32> to vector<64x4xf32>
    %cst_151 = arith.constant dense<0.000000e+00> : vector<2x4xf32>
    %258 = tpu.matmul %255, %257, %cst_151 {dimension_numbers = #tpu.dot_dimension_numbers<[1], [0], [0], [1], [0, 0, 1, 1], [], []>} : vector<2x64xf32>, vector<64x4xf32>, vector<2x4xf32> -> vector<2x4xf32>
    %c0_152 = arith.constant 0 : index
    %c0_153 = arith.constant 0 : index
    %c0_154 = arith.constant 0 : index
    %259 = vector.load %arg20[%c0_152, %c0_153, %c0_154] : memref<1x1x4xf32, #tpu.memory_space<vmem>>, vector<1x1x4xf32>
    %260 = vector.shape_cast %259 : vector<1x1x4xf32> to vector<1x4xf32>
    %261 = vector.broadcast %260 : vector<1x4xf32> to vector<2x4xf32>
    %262 = arith.addf %258, %261 : vector<2x4xf32>
    %cst_155 = arith.constant 0.000000e+00 : f32
    %263 = vector.broadcast %cst_155 : f32 to vector<2x4xf32>
    %264 = arith.subf %263, %262 : vector<2x4xf32>
    %265 = math.exp %264 : vector<2x4xf32>
    %cst_156 = arith.constant 1.000000e+00 : f32
    %266 = vector.broadcast %cst_156 : f32 to vector<2x4xf32>
    %267 = arith.addf %266, %265 : vector<2x4xf32>
    %cst_157 = arith.constant 1.000000e+00 : f32
    %268 = vector.broadcast %cst_157 : f32 to vector<2x4xf32>
    %269 = arith.divf %268, %267 : vector<2x4xf32>
    %c0_158 = arith.constant 0 : index
    %c0_159 = arith.constant 0 : index
    %c0_160 = arith.constant 0 : index
    %270 = vector.load %arg21[%c0_158, %c0_159, %c0_160] : memref<1x2x4xf32, #tpu.memory_space<vmem>>, vector<1x2x4xf32>
    %271 = vector.shape_cast %270 : vector<1x2x4xf32> to vector<2x4xf32>
    %272 = vector.shape_cast %269 : vector<2x4xf32> to vector<1x2x4xf32>
    tpu.vector_store %arg21[%c0_158, %c0_159, %c0_160], %272 {strides = array<i32>} : memref<1x2x4xf32, #tpu.memory_space<vmem>>, vector<1x2x4xf32>,
    return
  }
  func.func @transform_0(%arg0: i32) -> (i32, i32) {
    %c0_i32 = arith.constant 0 : i32
    %c0_i32_0 = arith.constant 0 : i32
    %c0_i32_1 = arith.constant 0 : i32
    return %c0_i32, %c0_i32_0 : i32, i32
  }
  func.func @transform_1(%arg0: i32) -> (i32, i32) {
    %c0_i32 = arith.constant 0 : i32
    %c0_i32_0 = arith.constant 0 : i32
    %c0_i32_1 = arith.constant 0 : i32
    return %c0_i32, %c0_i32_0 : i32, i32
  }
  func.func @transform_2(%arg0: i32) -> (i32, i32, i32) {
    %c0_i32 = arith.constant 0 : i32
    %c0_i32_0 = arith.constant 0 : i32
    %c0_i32_1 = arith.constant 0 : i32
    %c0_i32_2 = arith.constant 0 : i32
    return %c0_i32, %c0_i32_0, %c0_i32_1 : i32, i32, i32
  }
  func.func @transform_3(%arg0: i32) -> (i32, i32, i32) {
    %c0_i32 = arith.constant 0 : i32
    %c0_i32_0 = arith.constant 0 : i32
    %c0_i32_1 = arith.constant 0 : i32
    %c0_i32_2 = arith.constant 0 : i32
    return %c0_i32, %c0_i32_0, %c0_i32_1 : i32, i32, i32
  }
  func.func @transform_4(%arg0: i32) -> (i32, i32, i32) {
    %c0_i32 = arith.constant 0 : i32
    %c0_i32_0 = arith.constant 0 : i32
    %c0_i32_1 = arith.constant 0 : i32
    return %arg0, %c0_i32, %c0_i32_0 : i32, i32, i32
  }
  func.func @transform_5(%arg0: i32) -> (i32, i32, i32) {
    %c0_i32 = arith.constant 0 : i32
    %c0_i32_0 = arith.constant 0 : i32
    %c0_i32_1 = arith.constant 0 : i32
    return %arg0, %c0_i32, %c0_i32_0 : i32, i32, i32
  }
  func.func @transform_6(%arg0: i32) -> (i32, i32, i32) {
    %c0_i32 = arith.constant 0 : i32
    %c0_i32_0 = arith.constant 0 : i32
    %c0_i32_1 = arith.constant 0 : i32
    return %arg0, %c0_i32, %c0_i32_0 : i32, i32, i32
  }
  func.func @transform_7(%arg0: i32) -> (i32, i32, i32) {
    %c0_i32 = arith.constant 0 : i32
    %c0_i32_0 = arith.constant 0 : i32
    %c0_i32_1 = arith.constant 0 : i32
    return %arg0, %c0_i32, %c0_i32_0 : i32, i32, i32
  }
  func.func @transform_8(%arg0: i32) -> (i32, i32, i32) {
    %c0_i32 = arith.constant 0 : i32
    %c0_i32_0 = arith.constant 0 : i32
    %c0_i32_1 = arith.constant 0 : i32
    return %arg0, %c0_i32, %c0_i32_0 : i32, i32, i32
  }
  func.func @transform_9(%arg0: i32) -> (i32, i32, i32) {
    %c0_i32 = arith.constant 0 : i32
    %c0_i32_0 = arith.constant 0 : i32
    %c0_i32_1 = arith.constant 0 : i32
    return %arg0, %c0_i32, %c0_i32_0 : i32, i32, i32
  }
  func.func @transform_10(%arg0: i32) -> (i32, i32, i32) {
    %c0_i32 = arith.constant 0 : i32
    %c0_i32_0 = arith.constant 0 : i32
    %c0_i32_1 = arith.constant 0 : i32
    return %arg0, %c0_i32, %c0_i32_0 : i32, i32, i32
  }
  func.func @transform_11(%arg0: i32) -> (i32, i32, i32) {
    %c0_i32 = arith.constant 0 : i32
    %c0_i32_0 = arith.constant 0 : i32
    %c0_i32_1 = arith.constant 0 : i32
    return %arg0, %c0_i32, %c0_i32_0 : i32, i32, i32
  }
  func.func @transform_12(%arg0: i32) -> (i32, i32, i32) {
    %c0_i32 = arith.constant 0 : i32
    %c0_i32_0 = arith.constant 0 : i32
    %c0_i32_1 = arith.constant 0 : i32
    return %arg0, %c0_i32, %c0_i32_0 : i32, i32, i32
  }
  func.func @transform_13(%arg0: i32) -> (i32, i32, i32) {
    %c0_i32 = arith.constant 0 : i32
    %c0_i32_0 = arith.constant 0 : i32
    %c0_i32_1 = arith.constant 0 : i32
    return %arg0, %c0_i32, %c0_i32_0 : i32, i32, i32
  }
  func.func @transform_14(%arg0: i32) -> (i32, i32, i32) {
    %c0_i32 = arith.constant 0 : i32
    %c0_i32_0 = arith.constant 0 : i32
    %c0_i32_1 = arith.constant 0 : i32
    return %arg0, %c0_i32, %c0_i32_0 : i32, i32, i32
  }
  func.func @transform_15(%arg0: i32) -> (i32, i32, i32) {
    %c0_i32 = arith.constant 0 : i32
    %c0_i32_0 = arith.constant 0 : i32
    %c0_i32_1 = arith.constant 0 : i32
    return %arg0, %c0_i32, %c0_i32_0 : i32, i32, i32
  }
  func.func @transform_16(%arg0: i32) -> (i32, i32, i32) {
    %c0_i32 = arith.constant 0 : i32
    %c0_i32_0 = arith.constant 0 : i32
    %c0_i32_1 = arith.constant 0 : i32
    return %arg0, %c0_i32, %c0_i32_0 : i32, i32, i32
  }
  func.func @transform_17(%arg0: i32) -> (i32, i32, i32) {
    %c0_i32 = arith.constant 0 : i32
    %c0_i32_0 = arith.constant 0 : i32
    %c0_i32_1 = arith.constant 0 : i32
    return %arg0, %c0_i32, %c0_i32_0 : i32, i32, i32
  }
  func.func @transform_18(%arg0: i32) -> (i32, i32, i32) {
    %c0_i32 = arith.constant 0 : i32
    %c0_i32_0 = arith.constant 0 : i32
    %c0_i32_1 = arith.constant 0 : i32
    return %arg0, %c0_i32, %c0_i32_0 : i32, i32, i32
  }
  func.func @transform_19(%arg0: i32) -> (i32, i32, i32) {
    %c0_i32 = arith.constant 0 : i32
    %c0_i32_0 = arith.constant 0 : i32
    %c0_i32_1 = arith.constant 0 : i32
    return %arg0, %c0_i32, %c0_i32_0 : i32, i32, i32
  }
  func.func @transform_20(%arg0: i32) -> (i32, i32, i32) {
    %c0_i32 = arith.constant 0 : i32
    %c0_i32_0 = arith.constant 0 : i32
    %c0_i32_1 = arith.constant 0 : i32
    return %arg0, %c0_i32, %c0_i32_0 : i32, i32, i32
  }
}

</mosaic_0001>

<llo_original>
// kernel: discriminator_forward.1
$region0: #{discriminator_forward.1}
  #allocation0 [shape = 'u32[]', space=smem, size = 0x4, offset = 0x4, fixed_abs, tag = 'smem constant byte address 0x4 - core index']
  #allocation1 [shape = 'u32[72,128]{1,0:T(1,128)}', space=vmem, size = 0x9000, scoped, tag = 'internal scratch']
  #allocation2 [shape = 'f32[76,1152]{1,0:T(8,128)}', space=vmem, size = 0x5a000, scoped, tag = 'scratch operand']
  #allocation3 [shape = 'f32[71,135]{1,0:T(8,128)}', space=vmem, size = 0x12000, scoped, tag = 'scratch operand']
  %s0 = inlined_call_operand.vmem [shape: f32[64,864], index: 0, kind: input, shape index: {}]
  %s1 = inlined_call_operand.hbm [shape: f32[2,32], index: 1, kind: input, shape index: {}]
  %s2 = inlined_call_operand.hbm [shape: f32[4,2,64], index: 2, kind: input, shape index: {}]
  %s3 = inlined_call_operand.hbm [shape: f32[4,128,64], index: 3, kind: input, shape index: {}]
  %s4 = inlined_call_operand.vmem [shape: f32[3,864,128], index: 4, kind: input, shape index: {}]
  %s5 = inlined_call_operand.vmem [shape: f32[3,128,1152], index: 5, kind: input, shape index: {}]
  %s6 = inlined_call_operand.vmem [shape: f32[3,1,128], index: 6, kind: input, shape index: {}]
  %s7 = inlined_call_operand.vmem [shape: f32[3,1,128], index: 7, kind: input, shape index: {}]
  %s8 = inlined_call_operand.vmem [shape: f32[3,64,64], index: 8, kind: input, shape index: {}]
  %s9 = inlined_call_operand.vmem [shape: f32[3,32,64], index: 9, kind: input, shape index: {}]
  %s10 = inlined_call_operand.vmem [shape: f32[3,64,64], index: 10, kind: input, shape index: {}]
  %s11 = inlined_call_operand.vmem [shape: f32[3,64,64], index: 11, kind: input, shape index: {}]
  %s12 = inlined_call_operand.vmem [shape: f32[3,1,64], index: 12, kind: input, shape index: {}]
  %s13 = inlined_call_operand.vmem [shape: f32[3,1,64], index: 13, kind: input, shape index: {}]
  %s14 = inlined_call_operand.vmem [shape: f32[3,1,64], index: 14, kind: input, shape index: {}]
  %s15 = inlined_call_operand.vmem [shape: f32[3,1,64], index: 15, kind: input, shape index: {}]
  %s16 = inlined_call_operand.vmem [shape: f32[3,64,64], index: 16, kind: input, shape index: {}]
  %s17 = inlined_call_operand.vmem [shape: f32[3,1,64], index: 17, kind: input, shape index: {}]
  %s18 = inlined_call_operand.vmem [shape: f32[3,64,4], index: 18, kind: input, shape index: {}]
  %s19 = inlined_call_operand.vmem [shape: f32[3,1,4], index: 19, kind: input, shape index: {}]
  %s20 = inlined_call_operand.vmem [shape: f32[3,2,4], index: 20, kind: output, shape index: {}]
  %s21 = sld [smem:[#allocation0]]
  $region125: #{discriminator_forward.1} parent=0
    _
  %s23 = ssub.s32 1, %s21
  %s24 = scalar_select 0, %s23, %s21
  $region1: #{discriminator_forward.1} parent=0
    #allocation4 [shape = 'u8[1024]{0}', space=vmem, size = 0x400, scoped, tag = 'input window, operand 1, single buffered']
    #allocation5 [shape = 's32[2]{0}', space=sflag, size = 0x8, scoped, tag = 'scoped memory for discriminator_forward.1']
    #allocation6 [shape = 'u8[4096]{0}', space=vmem, size = 0x1000, scoped, tag = 'input window, operand 2, single buffered']
    #allocation7 [shape = 's32[1]{0}', space=sflag, size = 0x4, scoped, tag = 'scoped memory for discriminator_forward.1']
    #allocation8 [shape = 'u8[262144]{0}', space=vmem, size = 0x40000, scoped, tag = 'input window, operand 3, single buffered']
    %25 = vsyncpa [#allocation5], 0
    %26 = vsyncpa [#allocation7], 0
    loop: start=0, step=1, limit=5
    $region2: #{discriminator_forward.1} parent=1 // loop_pre_header
      _
    $region3: #{discriminator_forward.1} parent=1 // loop_header
      %s28 = sphi 0, %s32
      %p29 = scmp.ge.s32.totalorder %s28, 5
      %s36 = sphi 0, %s36
      %s38 = sphi 0, %s36
      %s39 = sphi 0, %s38
      %s53 = sphi 0, %s39
      %s57 = sphi 0, %s57
      %s59 = sphi 0, %s57
      %s60 = sphi 0, %s59
      %s74 = sphi 0, %s60
      %s78 = sphi 0, %s78
      %s80 = sphi 0, %s78
      %s81 = sphi 0, %s80
      %s95 = sphi 0, %s81
      %s99 = sphi 0, %s99
      %s101 = sphi 0, %s99
      %s102 = sphi 0, %s101
      %s116 = sphi 0, %s102
      %s122 = sphi 0, %s124
      %s125 = sphi 0, %s122
      %s126 = sphi 0, %s125
      %s142 = sphi 0, %s126
      %s148 = sphi 0, %s150
      %s151 = sphi 0, %s148
      %s152 = sphi 0, %s151
      %s168 = sphi 0, %s152
      %s174 = sphi 0, %s176
      %s177 = sphi 0, %s174
      %s178 = sphi 0, %s177
      %s194 = sphi 0, %s178
      %s200 = sphi 0, %s202
      %s203 = sphi 0, %s200
      %s204 = sphi 0, %s203
      %s220 = sphi 0, %s204
      %s226 = sphi 0, %s228
      %s229 = sphi 0, %s226
      %s230 = sphi 0, %s229
      %s246 = sphi 0, %s230
      %s252 = sphi 0, %s254
      %s255 = sphi 0, %s252
      %s256 = sphi 0, %s255
      %s272 = sphi 0, %s256
      %s278 = sphi 0, %s280
      %s281 = sphi 0, %s278
      %s282 = sphi 0, %s281
      %s298 = sphi 0, %s282
      %s304 = sphi 0, %s306
      %s307 = sphi 0, %s304
      %s308 = sphi 0, %s307
      %s324 = sphi 0, %s308
      %s330 = sphi 0, %s332
      %s333 = sphi 0, %s330
      %s334 = sphi 0, %s333
      %s350 = sphi 0, %s334
      %s356 = sphi 0, %s358
      %s359 = sphi 0, %s356
      %s360 = sphi 0, %s359
      %s376 = sphi 0, %s360
      %s382 = sphi 0, %s384
      %s385 = sphi 0, %s382
      %s386 = sphi 0, %s385
      %s402 = sphi 0, %s386
      %s408 = sphi 0, %s410
      %s411 = sphi 0, %s408
      %s412 = sphi 0, %s411
      %s428 = sphi 0, %s412
      %s434 = sphi 0, %s436
      %s437 = sphi 0, %s434
      %s438 = sphi 0, %s437
      %s454 = sphi 0, %s438
      %s460 = sphi 0, %s462
      %s463 = sphi 0, %s460
      %s464 = sphi 0, %s463
      %s480 = sphi 0, %s464
      %s486 = sphi 0, %s488
      %s489 = sphi 0, %s486
      %s490 = sphi 0, %s489
      %s506 = sphi 0, %s490
      %s512 = sphi 0, %s514
      %s515 = sphi 0, %s512
      %s516 = sphi 0, %s515
      %s532 = sphi 0, %s516
      %s538 = sphi 0, %s540
      %s541 = sphi 0, %s538
      %s542 = sphi 0, %s541
      %s558 = sphi 0, %s542
    $region4: #{discriminator_forward.1} parent=1 // loop_header_branch
      %31 = sbr.rel (%p29) target = $region8
    $region5: #{discriminator_forward.1} parent=1 // loop_body
      %s33 = ssub.s32 %s28, 1
      %s34 = ssub.s32 %s28, 2
      %s35 = sadd.s32 %s28, 1
      %s37 = sadd.s32 %s36, 1
      %p40 = scmp.eq.s32.totalorder %s28, 2
      %p41 = scmp.ne.s32.totalorder %s36, %s38
      %p42 = scmp.eq.s32.totalorder %s28, 0
      %p43 = por %p41, %p42
      %p44 = scmp.ne.s32.totalorder %s36, %s38
      %p45 = scmp.eq.s32.totalorder %s33, 2
      %p46 = por %p44, %p45
      %p47 = scmp.ne.s32.totalorder %s38, %s39
      %p48 = scmp.eq.s32.totalorder %s33, 0
      %p49 = por %p47, %p48
      %p50 = scmp.ne.s32.totalorder %s38, %s39
      %p51 = scmp.eq.s32.totalorder %s34, 2
      %p52 = por %p50, %p51
      %p54 = scmp.ne.s32.totalorder %s39, %s53
      %p55 = scmp.eq.s32.totalorder %s34, 0
      %p56 = por %p54, %p55
      %s58 = sadd.s32 %s57, 1
      %p61 = scmp.eq.s32.totalorder %s28, 2
      %p62 = scmp.ne.s32.totalorder %s57, %s59
      %p63 = scmp.eq.s32.totalorder %s28, 0
      %p64 = por %p62, %p63
      %p65 = scmp.ne.s32.totalorder %s57, %s59
      %p66 = scmp.eq.s32.totalorder %s33, 2
      %p67 = por %p65, %p66
      %p68 = scmp.ne.s32.totalorder %s59, %s60
      %p69 = scmp.eq.s32.totalorder %s33, 0
      %p70 = por %p68, %p69
      %p71 = scmp.ne.s32.totalorder %s59, %s60
      %p72 = scmp.eq.s32.totalorder %s34, 2
      %p73 = por %p71, %p72
      %p75 = scmp.ne.s32.totalorder %s60, %s74
      %p76 = scmp.eq.s32.totalorder %s34, 0
      %p77 = por %p75, %p76
      %s79 = sadd.s32 %s78, 1
      %p82 = scmp.eq.s32.totalorder %s28, 2
      %p83 = scmp.ne.s32.totalorder %s78, %s80
      %p84 = scmp.eq.s32.totalorder %s28, 0
      %p85 = por %p83, %p84
      %p86 = scmp.ne.s32.totalorder %s78, %s80
      %p87 = scmp.eq.s32.totalorder %s33, 2
      %p88 = por %p86, %p87
      %p89 = scmp.ne.s32.totalorder %s80, %s81
      %p90 = scmp.eq.s32.totalorder %s33, 0
      %p91 = por %p89, %p90
      %p92 = scmp.ne.s32.totalorder %s80, %s81
      %p93 = scmp.eq.s32.totalorder %s34, 2
      %p94 = por %p92, %p93
      %p96 = scmp.ne.s32.totalorder %s81, %s95
      %p97 = scmp.eq.s32.totalorder %s34, 0
      %p98 = por %p96, %p97
      %s100 = sadd.s32 %s99, 1
      %p103 = scmp.eq.s32.totalorder %s28, 2
      %p104 = scmp.ne.s32.totalorder %s99, %s101
      %p105 = scmp.eq.s32.totalorder %s28, 0
      %p106 = por %p104, %p105
      %p107 = scmp.ne.s32.totalorder %s99, %s101
      %p108 = scmp.eq.s32.totalorder %s33, 2
      %p109 = por %p107, %p108
      %p110 = scmp.ne.s32.totalorder %s101, %s102
      %p111 = scmp.eq.s32.totalorder %s33, 0
      %p112 = por %p110, %p111
      %p113 = scmp.ne.s32.totalorder %s101, %s102
      %p114 = scmp.eq.s32.totalorder %s34, 2
      %p115 = por %p113, %p114
      %p117 = scmp.ne.s32.totalorder %s102, %s116
      %p118 = scmp.eq.s32.totalorder %s34, 0
      %p119 = por %p117, %p118
      %s120 = ssub.s32 %s28, %s35
      %p121 = scmp.eq.s32.totalorder %s120, 0
      %s123 = sadd.s32 %s122, 1
      %s124 = scalar_select %p121, %s122, %s123
      %p127 = pneg %p121
      %p128 = scmp.eq.s32.totalorder %s28, 2
      %p129 = por %p127, %p128
      %p130 = scmp.ne.s32.totalorder %s122, %s125
      %p131 = scmp.eq.s32.totalorder %s28, 0
      %p132 = por %p130, %p131
      %p133 = scmp.ne.s32.totalorder %s122, %s125
      %p134 = scmp.eq.s32.totalorder %s33, 2
      %p135 = por %p133, %p134
      %p136 = scmp.ne.s32.totalorder %s125, %s126
      %p137 = scmp.eq.s32.totalorder %s33, 0
      %p138 = por %p136, %p137
      %p139 = scmp.ne.s32.totalorder %s125, %s126
      %p140 = scmp.eq.s32.totalorder %s34, 2
      %p141 = por %p139, %p140
      %p143 = scmp.ne.s32.totalorder %s126, %s142
      %p144 = scmp.eq.s32.totalorder %s34, 0
      %p145 = por %p143, %p144
      %s146 = ssub.s32 %s28, %s35
      %p147 = scmp.eq.s32.totalorder %s146, 0
      %s149 = sadd.s32 %s148, 1
      %s150 = scalar_select %p147, %s148, %s149
      %p153 = pneg %p147
      %p154 = scmp.eq.s32.totalorder %s28, 2
      %p155 = por %p153, %p154
      %p156 = scmp.ne.s32.totalorder %s148, %s151
      %p157 = scmp.eq.s32.totalorder %s28, 0
      %p158 = por %p156, %p157
      %p159 = scmp.ne.s32.totalorder %s148, %s151
      %p160 = scmp.eq.s32.totalorder %s33, 2
      %p161 = por %p159, %p160
      %p162 = scmp.ne.s32.totalorder %s151, %s152
      %p163 = scmp.eq.s32.totalorder %s33, 0
      %p164 = por %p162, %p163
      %p165 = scmp.ne.s32.totalorder %s151, %s152
      %p166 = scmp.eq.s32.totalorder %s34, 2
      %p167 = por %p165, %p166
      %p169 = scmp.ne.s32.totalorder %s152, %s168
      %p170 = scmp.eq.s32.totalorder %s34, 0
      %p171 = por %p169, %p170
      %s172 = ssub.s32 %s28, %s35
      %p173 = scmp.eq.s32.totalorder %s172, 0
      %s175 = sadd.s32 %s174, 1
      %s176 = scalar_select %p173, %s174, %s175
      %p179 = pneg %p173
      %p180 = scmp.eq.s32.totalorder %s28, 2
      %p181 = por %p179, %p180
      %p182 = scmp.ne.s32.totalorder %s174, %s177
      %p183 = scmp.eq.s32.totalorder %s28, 0
      %p184 = por %p182, %p183
      %p185 = scmp.ne.s32.totalorder %s174, %s177
      %p186 = scmp.eq.s32.totalorder %s33, 2
      %p187 = por %p185, %p186
      %p188 = scmp.ne.s32.totalorder %s177, %s178
      %p189 = scmp.eq.s32.totalorder %s33, 0
      %p190 = por %p188, %p189
      %p191 = scmp.ne.s32.totalorder %s177, %s178
      %p192 = scmp.eq.s32.totalorder %s34, 2
      %p193 = por %p191, %p192
      %p195 = scmp.ne.s32.totalorder %s178, %s194
      %p196 = scmp.eq.s32.totalorder %s34, 0
      %p197 = por %p195, %p196
      %s198 = ssub.s32 %s28, %s35
      %p199 = scmp.eq.s32.totalorder %s198, 0
      %s201 = sadd.s32 %s200, 1
      %s202 = scalar_select %p199, %s200, %s201
      %p205 = pneg %p199
      %p206 = scmp.eq.s32.totalorder %s28, 2
      %p207 = por %p205, %p206
      %p208 = scmp.ne.s32.totalorder %s200, %s203
      %p209 = scmp.eq.s32.totalorder %s28, 0
      %p210 = por %p208, %p209
      %p211 = scmp.ne.s32.totalorder %s200, %s203
      %p212 = scmp.eq.s32.totalorder %s33, 2
      %p213 = por %p211, %p212
      %p214 = scmp.ne.s32.totalorder %s203, %s204
      %p215 = scmp.eq.s32.totalorder %s33, 0
      %p216 = por %p214, %p215
      %p217 = scmp.ne.s32.totalorder %s203, %s204
      %p218 = scmp.eq.s32.totalorder %s34, 2
      %p219 = por %p217, %p218
      %p221 = scmp.ne.s32.totalorder %s204, %s220
      %p222 = scmp.eq.s32.totalorder %s34, 0
      %p223 = por %p221, %p222
      %s224 = ssub.s32 %s28, %s35
      %p225 = scmp.eq.s32.totalorder %s224, 0
      %s227 = sadd.s32 %s226, 1
      %s228 = scalar_select %p225, %s226, %s227
      %p231 = pneg %p225
      %p232 = scmp.eq.s32.totalorder %s28, 2
      %p233 = por %p231, %p232
      %p234 = scmp.ne.s32.totalorder %s226, %s229
      %p235 = scmp.eq.s32.totalorder %s28, 0
      %p236 = por %p234, %p235
      %p237 = scmp.ne.s32.totalorder %s226, %s229
      %p238 = scmp.eq.s32.totalorder %s33, 2
      %p239 = por %p237, %p238
      %p240 = scmp.ne.s32.totalorder %s229, %s230
      %p241 = scmp.eq.s32.totalorder %s33, 0
      %p242 = por %p240, %p241
      %p243 = scmp.ne.s32.totalorder %s229, %s230
      %p244 = scmp.eq.s32.totalorder %s34, 2
      %p245 = por %p243, %p244
      %p247 = scmp.ne.s32.totalorder %s230, %s246
      %p248 = scmp.eq.s32.totalorder %s34, 0
      %p249 = por %p247, %p248
      %s250 = ssub.s32 %s28, %s35
      %p251 = scmp.eq.s32.totalorder %s250, 0
      %s253 = sadd.s32 %s252, 1
      %s254 = scalar_select %p251, %s252, %s253
      %p257 = pneg %p251
      %p258 = scmp.eq.s32.totalorder %s28, 2
      %p259 = por %p257, %p258
      %p260 = scmp.ne.s32.totalorder %s252, %s255
      %p261 = scmp.eq.s32.totalorder %s28, 0
      %p262 = por %p260, %p261
      %p263 = scmp.ne.s32.totalorder %s252, %s255
      %p264 = scmp.eq.s32.totalorder %s33, 2
      %p265 = por %p263, %p264
      %p266 = scmp.ne.s32.totalorder %s255, %s256
      %p267 = scmp.eq.s32.totalorder %s33, 0
      %p268 = por %p266, %p267
      %p269 = scmp.ne.s32.totalorder %s255, %s256
      %p270 = scmp.eq.s32.totalorder %s34, 2
      %p271 = por %p269, %p270
      %p273 = scmp.ne.s32.totalorder %s256, %s272
      %p274 = scmp.eq.s32.totalorder %s34, 0
      %p275 = por %p273, %p274
      %s276 = ssub.s32 %s28, %s35
      %p277 = scmp.eq.s32.totalorder %s276, 0
      %s279 = sadd.s32 %s278, 1
      %s280 = scalar_select %p277, %s278, %s279
      %p283 = pneg %p277
      %p284 = scmp.eq.s32.totalorder %s28, 2
      %p285 = por %p283, %p284
      %p286 = scmp.ne.s32.totalorder %s278, %s281
      %p287 = scmp.eq.s32.totalorder %s28, 0
      %p288 = por %p286, %p287
      %p289 = scmp.ne.s32.totalorder %s278, %s281
      %p290 = scmp.eq.s32.totalorder %s33, 2
      %p291 = por %p289, %p290
      %p292 = scmp.ne.s32.totalorder %s281, %s282
      %p293 = scmp.eq.s32.totalorder %s33, 0
      %p294 = por %p292, %p293
      %p295 = scmp.ne.s32.totalorder %s281, %s282
      %p296 = scmp.eq.s32.totalorder %s34, 2
      %p297 = por %p295, %p296
      %p299 = scmp.ne.s32.totalorder %s282, %s298
      %p300 = scmp.eq.s32.totalorder %s34, 0
      %p301 = por %p299, %p300
      %s302 = ssub.s32 %s28, %s35
      %p303 = scmp.eq.s32.totalorder %s302, 0
      %s305 = sadd.s32 %s304, 1
      %s306 = scalar_select %p303, %s304, %s305
      %p309 = pneg %p303
      %p310 = scmp.eq.s32.totalorder %s28, 2
      %p311 = por %p309, %p310
      %p312 = scmp.ne.s32.totalorder %s304, %s307
      %p313 = scmp.eq.s32.totalorder %s28, 0
      %p314 = por %p312, %p313
      %p315 = scmp.ne.s32.totalorder %s304, %s307
      %p316 = scmp.eq.s32.totalorder %s33, 2
      %p317 = por %p315, %p316
      %p318 = scmp.ne.s32.totalorder %s307, %s308
      %p319 = scmp.eq.s32.totalorder %s33, 0
      %p320 = por %p318, %p319
      %p321 = scmp.ne.s32.totalorder %s307, %s308
      %p322 = scmp.eq.s32.totalorder %s34, 2
      %p323 = por %p321, %p322
      %p325 = scmp.ne.s32.totalorder %s308, %s324
      %p326 = scmp.eq.s32.totalorder %s34, 0
      %p327 = por %p325, %p326
      %s328 = ssub.s32 %s28, %s35
      %p329 = scmp.eq.s32.totalorder %s328, 0
      %s331 = sadd.s32 %s330, 1
      %s332 = scalar_select %p329, %s330, %s331
      %p335 = pneg %p329
      %p336 = scmp.eq.s32.totalorder %s28, 2
      %p337 = por %p335, %p336
      %p338 = scmp.ne.s32.totalorder %s330, %s333
      %p339 = scmp.eq.s32.totalorder %s28, 0
      %p340 = por %p338, %p339
      %p341 = scmp.ne.s32.totalorder %s330, %s333
      %p342 = scmp.eq.s32.totalorder %s33, 2
      %p343 = por %p341, %p342
      %p344 = scmp.ne.s32.totalorder %s333, %s334
      %p345 = scmp.eq.s32.totalorder %s33, 0
      %p346 = por %p344, %p345
      %p347 = scmp.ne.s32.totalorder %s333, %s334
      %p348 = scmp.eq.s32.totalorder %s34, 2
      %p349 = por %p347, %p348
      %p351 = scmp.ne.s32.totalorder %s334, %s350
      %p352 = scmp.eq.s32.totalorder %s34, 0
      %p353 = por %p351, %p352
      %s354 = ssub.s32 %s28, %s35
      %p355 = scmp.eq.s32.totalorder %s354, 0
      %s357 = sadd.s32 %s356, 1
      %s358 = scalar_select %p355, %s356, %s357
      %p361 = pneg %p355
      %p362 = scmp.eq.s32.totalorder %s28, 2
      %p363 = por %p361, %p362
      %p364 = scmp.ne.s32.totalorder %s356, %s359
      %p365 = scmp.eq.s32.totalorder %s28, 0
      %p366 = por %p364, %p365
      %p367 = scmp.ne.s32.totalorder %s356, %s359
      %p368 = scmp.eq.s32.totalorder %s33, 2
      %p369 = por %p367, %p368
      %p370 = scmp.ne.s32.totalorder %s359, %s360
      %p371 = scmp.eq.s32.totalorder %s33, 0
      %p372 = por %p370, %p371
      %p373 = scmp.ne.s32.totalorder %s359, %s360
      %p374 = scmp.eq.s32.totalorder %s34, 2
      %p375 = por %p373, %p374
      %p377 = scmp.ne.s32.totalorder %s360, %s376
      %p378 = scmp.eq.s32.totalorder %s34, 0
      %p379 = por %p377, %p378
      %s380 = ssub.s32 %s28, %s35
      %p381 = scmp.eq.s32.totalorder %s380, 0
      %s383 = sadd.s32 %s382, 1
      %s384 = scalar_select %p381, %s382, %s383
      %p387 = pneg %p381
      %p388 = scmp.eq.s32.totalorder %s28, 2
      %p389 = por %p387, %p388
      %p390 = scmp.ne.s32.totalorder %s382, %s385
      %p391 = scmp.eq.s32.totalorder %s28, 0
      %p392 = por %p390, %p391
      %p393 = scmp.ne.s32.totalorder %s382, %s385
      %p394 = scmp.eq.s32.totalorder %s33, 2
      %p395 = por %p393, %p394
      %p396 = scmp.ne.s32.totalorder %s385, %s386
      %p397 = scmp.eq.s32.totalorder %s33, 0
      %p398 = por %p396, %p397
      %p399 = scmp.ne.s32.totalorder %s385, %s386
      %p400 = scmp.eq.s32.totalorder %s34, 2
      %p401 = por %p399, %p400
      %p403 = scmp.ne.s32.totalorder %s386, %s402
      %p404 = scmp.eq.s32.totalorder %s34, 0
      %p405 = por %p403, %p404
      %s406 = ssub.s32 %s28, %s35
      %p407 = scmp.eq.s32.totalorder %s406, 0
      %s409 = sadd.s32 %s408, 1
      %s410 = scalar_select %p407, %s408, %s409
      %p413 = pneg %p407
      %p414 = scmp.eq.s32.totalorder %s28, 2
      %p415 = por %p413, %p414
      %p416 = scmp.ne.s32.totalorder %s408, %s411
      %p417 = scmp.eq.s32.totalorder %s28, 0
      %p418 = por %p416, %p417
      %p419 = scmp.ne.s32.totalorder %s408, %s411
      %p420 = scmp.eq.s32.totalorder %s33, 2
      %p421 = por %p419, %p420
      %p422 = scmp.ne.s32.totalorder %s411, %s412
      %p423 = scmp.eq.s32.totalorder %s33, 0
      %p424 = por %p422, %p423
      %p425 = scmp.ne.s32.totalorder %s411, %s412
      %p426 = scmp.eq.s32.totalorder %s34, 2
      %p427 = por %p425, %p426
      %p429 = scmp.ne.s32.totalorder %s412, %s428
      %p430 = scmp.eq.s32.totalorder %s34, 0
      %p431 = por %p429, %p430
      %s432 = ssub.s32 %s28, %s35
      %p433 = scmp.eq.s32.totalorder %s432, 0
      %s435 = sadd.s32 %s434, 1
      %s436 = scalar_select %p433, %s434, %s435
      %p439 = pneg %p433
      %p440 = scmp.eq.s32.totalorder %s28, 2
      %p441 = por %p439, %p440
      %p442 = scmp.ne.s32.totalorder %s434, %s437
      %p443 = scmp.eq.s32.totalorder %s28, 0
      %p444 = por %p442, %p443
      %p445 = scmp.ne.s32.totalorder %s434, %s437
      %p446 = scmp.eq.s32.totalorder %s33, 2
      %p447 = por %p445, %p446
      %p448 = scmp.ne.s32.totalorder %s437, %s438
      %p449 = scmp.eq.s32.totalorder %s33, 0
      %p450 = por %p448, %p449
      %p451 = scmp.ne.s32.totalorder %s437, %s438
      %p452 = scmp.eq.s32.totalorder %s34, 2
      %p453 = por %p451, %p452
      %p455 = scmp.ne.s32.totalorder %s438, %s454
      %p456 = scmp.eq.s32.totalorder %s34, 0
      %p457 = por %p455, %p456
      %s458 = ssub.s32 %s28, %s35
      %p459 = scmp.eq.s32.totalorder %s458, 0
      %s461 = sadd.s32 %s460, 1
      %s462 = scalar_select %p459, %s460, %s461
      %p465 = pneg %p459
      %p466 = scmp.eq.s32.totalorder %s28, 2
      %p467 = por %p465, %p466
      %p468 = scmp.ne.s32.totalorder %s460, %s463
      %p469 = scmp.eq.s32.totalorder %s28, 0
      %p470 = por %p468, %p469
      %p471 = scmp.ne.s32.totalorder %s460, %s463
      %p472 = scmp.eq.s32.totalorder %s33, 2
      %p473 = por %p471, %p472
      %p474 = scmp.ne.s32.totalorder %s463, %s464
      %p475 = scmp.eq.s32.totalorder %s33, 0
      %p476 = por %p474, %p475
      %p477 = scmp.ne.s32.totalorder %s463, %s464
      %p478 = scmp.eq.s32.totalorder %s34, 2
      %p479 = por %p477, %p478
      %p481 = scmp.ne.s32.totalorder %s464, %s480
      %p482 = scmp.eq.s32.totalorder %s34, 0
      %p483 = por %p481, %p482
      %s484 = ssub.s32 %s28, %s35
      %p485 = scmp.eq.s32.totalorder %s484, 0
      %s487 = sadd.s32 %s486, 1
      %s488 = scalar_select %p485, %s486, %s487
      %p491 = pneg %p485
      %p492 = scmp.eq.s32.totalorder %s28, 2
      %p493 = por %p491, %p492
      %p494 = scmp.ne.s32.totalorder %s486, %s489
      %p495 = scmp.eq.s32.totalorder %s28, 0
      %p496 = por %p494, %p495
      %p497 = scmp.ne.s32.totalorder %s486, %s489
      %p498 = scmp.eq.s32.totalorder %s33, 2
      %p499 = por %p497, %p498
      %p500 = scmp.ne.s32.totalorder %s489, %s490
      %p501 = scmp.eq.s32.totalorder %s33, 0
      %p502 = por %p500, %p501
      %p503 = scmp.ne.s32.totalorder %s489, %s490
      %p504 = scmp.eq.s32.totalorder %s34, 2
      %p505 = por %p503, %p504
      %p507 = scmp.ne.s32.totalorder %s490, %s506
      %p508 = scmp.eq.s32.totalorder %s34, 0
      %p509 = por %p507, %p508
      %s510 = ssub.s32 %s28, %s35
      %p511 = scmp.eq.s32.totalorder %s510, 0
      %s513 = sadd.s32 %s512, 1
      %s514 = scalar_select %p511, %s512, %s513
      %p517 = pneg %p511
      %p518 = scmp.eq.s32.totalorder %s28, 2
      %p519 = por %p517, %p518
      %p520 = scmp.ne.s32.totalorder %s512, %s515
      %p521 = scmp.eq.s32.totalorder %s28, 0
      %p522 = por %p520, %p521
      %p523 = scmp.ne.s32.totalorder %s512, %s515
      %p524 = scmp.eq.s32.totalorder %s33, 2
      %p525 = por %p523, %p524
      %p526 = scmp.ne.s32.totalorder %s515, %s516
      %p527 = scmp.eq.s32.totalorder %s33, 0
      %p528 = por %p526, %p527
      %p529 = scmp.ne.s32.totalorder %s515, %s516
      %p530 = scmp.eq.s32.totalorder %s34, 2
      %p531 = por %p529, %p530
      %p533 = scmp.ne.s32.totalorder %s516, %s532
      %p534 = scmp.eq.s32.totalorder %s34, 0
      %p535 = por %p533, %p534
      %s536 = ssub.s32 %s28, %s35
      %p537 = scmp.eq.s32.totalorder %s536, 0
      %s539 = sadd.s32 %s538, 1
      %s540 = scalar_select %p537, %s538, %s539
      %p543 = pneg %p537
      %p544 = scmp.eq.s32.totalorder %s28, 2
      %p545 = por %p543, %p544
      %p546 = scmp.ne.s32.totalorder %s538, %s541
      %p547 = scmp.eq.s32.totalorder %s28, 0
      %p548 = por %p546, %p547
      %p549 = scmp.ne.s32.totalorder %s538, %s541
      %p550 = scmp.eq.s32.totalorder %s33, 2
      %p551 = por %p549, %p550
      %p552 = scmp.ne.s32.totalorder %s541, %s542
      %p553 = scmp.eq.s32.totalorder %s33, 0
      %p554 = por %p552, %p553
      %p555 = scmp.ne.s32.totalorder %s541, %s542
      %p556 = scmp.eq.s32.totalorder %s34, 2
      %p557 = por %p555, %p556
      %p559 = scmp.ne.s32.totalorder %s542, %s558
      %p560 = scmp.eq.s32.totalorder %s34, 0
      %p561 = por %p559, %p560
      %p562 = scmp.le.s32.totalorder 1, %s28
      %p563 = scmp.lt.s32.totalorder %s28, 4
      %p564 = pnand %p562, %p563
      %p565 = pneg %p564
      // Predicated region
      $region9: #{discriminator_forward.1} parent=5 // pred_check
        _
      $region10: #{discriminator_forward.1} parent=5 // pred_check_branch
        %567 = sbr.rel (%p564) target = $region12
      $region11: #{discriminator_forward.1} parent=5 // pred_region
        %s568 = ssub.s32 %s28, 1
        // Predicated region
        $region13: #{discriminator_forward.1} parent=11 // pred_check
          %p569 = pneg %p49
        $region14: #{discriminator_forward.1} parent=11 // pred_check_branch
          %571 = sbr.rel (%p569) target = $region16
        $region15: #{discriminator_forward.1} parent=11 // pred_region
          _
        $region16: #{discriminator_forward.1} parent=11 // pred_fallthru
          _
        // Predicated region
        $region17: #{discriminator_forward.1} parent=11 // pred_check
          %p572 = pneg %p70
        $region18: #{discriminator_forward.1} parent=11 // pred_check_branch
          %574 = sbr.rel (%p572) target = $region20
        $region19: #{discriminator_forward.1} parent=11 // pred_region
          %576 = vsyncadd [#allocation5], 0
          %s578 = sshll.u32 %s1, 4
          %s579 = int_to_ptr.hbm [resolvable:$true] %s578
          %s580 = sshll.u32 [#allocation4], 4
          %s581 = int_to_ptr.vmem [resolvable:$true] %s580
          %583 = dma.hbm_to_vmem [thread:$0]  %s579, 32, %s581, [#allocation5]
        $region20: #{discriminator_forward.1} parent=11 // pred_fallthru
          _
        // Predicated region
        $region21: #{discriminator_forward.1} parent=11 // pred_check
          %p584 = pneg %p91
        $region22: #{discriminator_forward.1} parent=11 // pred_check_branch
          %586 = sbr.rel (%p584) target = $region24
        $region23: #{discriminator_forward.1} parent=11 // pred_region
          %588 = vsyncadd [#allocation7], 0
          %s589 = sshll.u32 %s2, 4
          %s590 = int_to_ptr.hbm [resolvable:$true] %s589
          %s591 = sshll.u32 [#allocation6], 4
          %s592 = int_to_ptr.vmem [resolvable:$true] %s591
          %597 = dma.hbm_to_vmem [thread:$0]  %s590, 128, %s592, [#allocation7], 32, 32, 2
        $region24: #{discriminator_forward.1} parent=11 // pred_fallthru
          _
        // Predicated region
        $region25: #{discriminator_forward.1} parent=11 // pred_check
          %p598 = pneg %p112
        $region26: #{discriminator_forward.1} parent=11 // pred_check_branch
          %600 = sbr.rel (%p598) target = $region28
        $region27: #{discriminator_forward.1} parent=11 // pred_region
          %602 = vsyncadd [#allocation7], 0
          %s603 = sshll.u32 %s3, 4
          %s604 = int_to_ptr.hbm [resolvable:$true] %s603
          %s605 = sshll.u32 [#allocation8], 4
          %s606 = int_to_ptr.vmem [resolvable:$true] %s605
          %611 = dma.hbm_to_vmem [thread:$0]  %s604, 8192, %s606, [#allocation7], 128, 128, 8
        $region28: #{discriminator_forward.1} parent=11 // pred_fallthru
          _
      $region12: #{discriminator_forward.1} parent=5 // pred_fallthru
        _
      %p612 = scmp.lt.s32.totalorder %s28, 3
      // Predicated region
      $region29: #{discriminator_forward.1} parent=5 // pred_check
        %p613 = pneg %p612
      $region30: #{discriminator_forward.1} parent=5 // pred_check_branch
        %615 = sbr.rel (%p613) target = $region32
      $region31: #{discriminator_forward.1} parent=5 // pred_region
        // Predicated region
        $region33: #{discriminator_forward.1} parent=31 // pred_check
          %p616 = pneg %p132
        $region34: #{discriminator_forward.1} parent=31 // pred_check_branch
          %618 = sbr.rel (%p616) target = $region36
        $region35: #{discriminator_forward.1} parent=31 // pred_region
          %p619 = scmp.lt.s32.totalorder %s28, 2
          %s620 = scalar_select %p619, %s28, 2
          %s621 = smul.addr %s620, 108
          %s622 = smul.addr %s621, 8
          %s623 = scalar_lea.vmem %s4, %s622
        $region36: #{discriminator_forward.1} parent=31 // pred_fallthru
          _
        // Predicated region
        $region37: #{discriminator_forward.1} parent=31 // pred_check
          %p624 = pneg %p158
        $region38: #{discriminator_forward.1} parent=31 // pred_check_branch
          %626 = sbr.rel (%p624) target = $region40
        $region39: #{discriminator_forward.1} parent=31 // pred_region
          %p627 = scmp.lt.s32.totalorder %s28, 2
          %s628 = scalar_select %p627, %s28, 2
          %s629 = smul.addr %s628, 144
          %s630 = smul.addr %s629, 8
          %s631 = scalar_lea.vmem %s5, %s630
        $region40: #{discriminator_forward.1} parent=31 // pred_fallthru
          _
        // Predicated region
        $region41: #{discriminator_forward.1} parent=31 // pred_check
          %p632 = pneg %p184
        $region42: #{discriminator_forward.1} parent=31 // pred_check_branch
          %634 = sbr.rel (%p632) target = $region44
        $region43: #{discriminator_forward.1} parent=31 // pred_region
          %p635 = scmp.lt.s32.totalorder %s28, 2
          %s636 = scalar_select %p635, %s28, 2
          %s637 = scalar_lea.vmem %s6, %s636
        $region44: #{discriminator_forward.1} parent=31 // pred_fallthru
          _
        // Predicated region
        $region45: #{discriminator_forward.1} parent=31 // pred_check
          %p638 = pneg %p210
        $region46: #{discriminator_forward.1} parent=31 // pred_check_branch
          %640 = sbr.rel (%p638) target = $region48
        $region47: #{discriminator_forward.1} parent=31 // pred_region
          %p641 = scmp.lt.s32.totalorder %s28, 2
          %s642 = scalar_select %p641, %s28, 2
          %s643 = scalar_lea.vmem %s7, %s642
        $region48: #{discriminator_forward.1} parent=31 // pred_fallthru
          _
        // Predicated region
        $region49: #{discriminator_forward.1} parent=31 // pred_check
          %p644 = pneg %p236
        $region50: #{discriminator_forward.1} parent=31 // pred_check_branch
          %646 = sbr.rel (%p644) target = $region52
        $region51: #{discriminator_forward.1} parent=31 // pred_region
          %p647 = scmp.lt.s32.totalorder %s28, 2
          %s648 = scalar_select %p647, %s28, 2
          %s649 = smul.addr %s648, 8
          %s650 = smul.addr %s649, 8
          %s651 = scalar_lea.vmem %s8, %s650
        $region52: #{discriminator_forward.1} parent=31 // pred_fallthru
          _
        // Predicated region
        $region53: #{discriminator_forward.1} parent=31 // pred_check
          %p652 = pneg %p262
        $region54: #{discriminator_forward.1} parent=31 // pred_check_branch
          %654 = sbr.rel (%p652) target = $region56
        $region55: #{discriminator_forward.1} parent=31 // pred_region
          %p655 = scmp.lt.s32.totalorder %s28, 2
          %s656 = scalar_select %p655, %s28, 2
          %s657 = smul.addr %s656, 4
          %s658 = smul.addr %s657, 8
          %s659 = scalar_lea.vmem %s9, %s658
        $region56: #{discriminator_forward.1} parent=31 // pred_fallthru
          _
        // Predicated region
        $region57: #{discriminator_forward.1} parent=31 // pred_check
          %p660 = pneg %p288
        $region58: #{discriminator_forward.1} parent=31 // pred_check_branch
          %662 = sbr.rel (%p660) target = $region60
        $region59: #{discriminator_forward.1} parent=31 // pred_region
          %p663 = scmp.lt.s32.totalorder %s28, 2
          %s664 = scalar_select %p663, %s28, 2
          %s665 = smul.addr %s664, 8
          %s666 = smul.addr %s665, 8
          %s667 = scalar_lea.vmem %s10, %s666
        $region60: #{discriminator_forward.1} parent=31 // pred_fallthru
          _
        // Predicated region
        $region61: #{discriminator_forward.1} parent=31 // pred_check
          %p668 = pneg %p314
        $region62: #{discriminator_forward.1} parent=31 // pred_check_branch
          %670 = sbr.rel (%p668) target = $region64
        $region63: #{discriminator_forward.1} parent=31 // pred_region
          %p671 = scmp.lt.s32.totalorder %s28, 2
          %s672 = scalar_select %p671, %s28, 2
          %s673 = smul.addr %s672, 8
          %s674 = smul.addr %s673, 8
          %s675 = scalar_lea.vmem %s11, %s674
        $region64: #{discriminator_forward.1} parent=31 // pred_fallthru
          _
        // Predicated region
        $region65: #{discriminator_forward.1} parent=31 // pred_check
          %p676 = pneg %p340
        $region66: #{discriminator_forward.1} parent=31 // pred_check_branch
          %678 = sbr.rel (%p676) target = $region68
        $region67: #{discriminator_forward.1} parent=31 // pred_region
          %p679 = scmp.lt.s32.totalorder %s28, 2
          %s680 = scalar_select %p679, %s28, 2
          %s681 = scalar_lea.vmem %s12, %s680
        $region68: #{discriminator_forward.1} parent=31 // pred_fallthru
          _
        // Predicated region
        $region69: #{discriminator_forward.1} parent=31 // pred_check
          %p682 = pneg %p366
        $region70: #{discriminator_forward.1} parent=31 // pred_check_branch
          %684 = sbr.rel (%p682) target = $region72
        $region71: #{discriminator_forward.1} parent=31 // pred_region
          %p685 = scmp.lt.s32.totalorder %s28, 2
          %s686 = scalar_select %p685, %s28, 2
          %s687 = scalar_lea.vmem %s13, %s686
        $region72: #{discriminator_forward.1} parent=31 // pred_fallthru
          _
        // Predicated region
        $region73: #{discriminator_forward.1} parent=31 // pred_check
          %p688 = pneg %p392
        $region74: #{discriminator_forward.1} parent=31 // pred_check_branch
          %690 = sbr.rel (%p688) target = $region76
        $region75: #{discriminator_forward.1} parent=31 // pred_region
          %p691 = scmp.lt.s32.totalorder %s28, 2
          %s692 = scalar_select %p691, %s28, 2
          %s693 = scalar_lea.vmem %s14, %s692
        $region76: #{discriminator_forward.1} parent=31 // pred_fallthru
          _
        // Predicated region
        $region77: #{discriminator_forward.1} parent=31 // pred_check
          %p694 = pneg %p418
        $region78: #{discriminator_forward.1} parent=31 // pred_check_branch
          %696 = sbr.rel (%p694) target = $region80
        $region79: #{discriminator_forward.1} parent=31 // pred_region
          %p697 = scmp.lt.s32.totalorder %s28, 2
          %s698 = scalar_select %p697, %s28, 2
          %s699 = scalar_lea.vmem %s15, %s698
        $region80: #{discriminator_forward.1} parent=31 // pred_fallthru
          _
        // Predicated region
        $region81: #{discriminator_forward.1} parent=31 // pred_check
          %p700 = pneg %p444
        $region82: #{discriminator_forward.1} parent=31 // pred_check_branch
          %702 = sbr.rel (%p700) target = $region84
        $region83: #{discriminator_forward.1} parent=31 // pred_region
          %p703 = scmp.lt.s32.totalorder %s28, 2
          %s704 = scalar_select %p703, %s28, 2
          %s705 = smul.addr %s704, 8
          %s706 = smul.addr %s705, 8
          %s707 = scalar_lea.vmem %s16, %s706
        $region84: #{discriminator_forward.1} parent=31 // pred_fallthru
          _
        // Predicated region
        $region85: #{discriminator_forward.1} parent=31 // pred_check
          %p708 = pneg %p470
        $region86: #{discriminator_forward.1} parent=31 // pred_check_branch
          %710 = sbr.rel (%p708) target = $region88
        $region87: #{discriminator_forward.1} parent=31 // pred_region
          %p711 = scmp.lt.s32.totalorder %s28, 2
          %s712 = scalar_select %p711, %s28, 2
          %s713 = scalar_lea.vmem %s17, %s712
        $region88: #{discriminator_forward.1} parent=31 // pred_fallthru
          _
        // Predicated region
        $region89: #{discriminator_forward.1} parent=31 // pred_check
          %p714 = pneg %p496
        $region90: #{discriminator_forward.1} parent=31 // pred_check_branch
          %716 = sbr.rel (%p714) target = $region92
        $region91: #{discriminator_forward.1} parent=31 // pred_region
          %p717 = scmp.lt.s32.totalorder %s28, 2
          %s718 = scalar_select %p717, %s28, 2
          %s719 = smul.addr %s718, 8
          %s720 = smul.addr %s719, 8
          %s721 = scalar_lea.vmem %s18, %s720
        $region92: #{discriminator_forward.1} parent=31 // pred_fallthru
          _
        // Predicated region
        $region93: #{discriminator_forward.1} parent=31 // pred_check
          %p722 = pneg %p522
        $region94: #{discriminator_forward.1} parent=31 // pred_check_branch
          %724 = sbr.rel (%p722) target = $region96
        $region95: #{discriminator_forward.1} parent=31 // pred_region
          %p725 = scmp.lt.s32.totalorder %s28, 2
          %s726 = scalar_select %p725, %s28, 2
          %s727 = scalar_lea.vmem %s19, %s726
        $region96: #{discriminator_forward.1} parent=31 // pred_fallthru
          _
      $region32: #{discriminator_forward.1} parent=5 // pred_fallthru
        _
      %p728 = scmp.le.s32.totalorder 1, %s28
      %p729 = scmp.lt.s32.totalorder %s28, 4
      %p730 = pnand %p728, %p729
      %p731 = pneg %p730
      // Predicated region
      $region97: #{discriminator_forward.1} parent=5 // pred_check
        _
      $region98: #{discriminator_forward.1} parent=5 // pred_check_branch
        %733 = sbr.rel (%p730) target = $region100
      $region99: #{discriminator_forward.1} parent=5 // pred_region
        %s734 = ssub.s32 %s28, 1
        // Predicated region
        $region101: #{discriminator_forward.1} parent=99 // pred_check
          %p735 = pneg %p70
        $region102: #{discriminator_forward.1} parent=99 // pred_check_branch
          %737 = sbr.rel (%p735) target = $region104
        $region103: #{discriminator_forward.1} parent=99 // pred_region
          %739 = dma.done [#allocation5], 32
        $region104: #{discriminator_forward.1} parent=99 // pred_fallthru
          _
        // Predicated region
        $region105: #{discriminator_forward.1} parent=99 // pred_check
          %p740 = pneg %p91
        $region106: #{discriminator_forward.1} parent=99 // pred_check_branch
          %742 = sbr.rel (%p740) target = $region108
        $region107: #{discriminator_forward.1} parent=99 // pred_region
          %744 = dma.done [#allocation7], 128
        $region108: #{discriminator_forward.1} parent=99 // pred_fallthru
          _
        // Predicated region
        $region109: #{discriminator_forward.1} parent=99 // pred_check
          %p745 = pneg %p112
        $region110: #{discriminator_forward.1} parent=99 // pred_check_branch
          %747 = sbr.rel (%p745) target = $region112
        $region111: #{discriminator_forward.1} parent=99 // pred_region
          %749 = dma.done [#allocation7], 8192
        $region112: #{discriminator_forward.1} parent=99 // pred_fallthru
          _
        %p750 = pneg %p49
        %p751 = pneg %p46
        %p752 = pneg %p70
        %p753 = pneg %p67
        %p754 = pneg %p91
        %p755 = pneg %p88
        %p756 = pneg %p112
        %p757 = pneg %p109
        %p758 = scmp.lt.s32.totalorder %s33, 2
        %s759 = scalar_select %p758, %s33, 2
        %s760 = smul.addr %s759, 108
        %s761 = smul.addr %s760, 8
        %s762 = scalar_lea.vmem %s4, %s761
        %p763 = pneg %p138
        %p764 = pneg %p135
        %p765 = scmp.lt.s32.totalorder %s33, 2
        %s766 = scalar_select %p765, %s33, 2
        %s767 = smul.addr %s766, 144
        %s768 = smul.addr %s767, 8
        %s769 = scalar_lea.vmem %s5, %s768
        %p770 = pneg %p164
        %p771 = pneg %p161
        %p772 = scmp.lt.s32.totalorder %s33, 2
        %s773 = scalar_select %p772, %s33, 2
        %s774 = scalar_lea.vmem %s6, %s773
        %p775 = pneg %p190
        %p776 = pneg %p187
        %p777 = scmp.lt.s32.totalorder %s33, 2
        %s778 = scalar_select %p777, %s33, 2
        %s779 = scalar_lea.vmem %s7, %s778
        %p780 = pneg %p216
        %p781 = pneg %p213
        %p782 = scmp.lt.s32.totalorder %s33, 2
        %s783 = scalar_select %p782, %s33, 2
        %s784 = smul.addr %s783, 8
        %s785 = smul.addr %s784, 8
        %s786 = scalar_lea.vmem %s8, %s785
        %p787 = pneg %p242
        %p788 = pneg %p239
        %p789 = scmp.lt.s32.totalorder %s33, 2
        %s790 = scalar_select %p789, %s33, 2
        %s791 = smul.addr %s790, 4
        %s792 = smul.addr %s791, 8
        %s793 = scalar_lea.vmem %s9, %s792
        %p794 = pneg %p268
        %p795 = pneg %p265
        %p796 = scmp.lt.s32.totalorder %s33, 2
        %s797 = scalar_select %p796, %s33, 2
        %s798 = smul.addr %s797, 8
        %s799 = smul.addr %s798, 8
        %s800 = scalar_lea.vmem %s10, %s799
        %p801 = pneg %p294
        %p802 = pneg %p291
        %p803 = scmp.lt.s32.totalorder %s33, 2
        %s804 = scalar_select %p803, %s33, 2
        %s805 = smul.addr %s804, 8
        %s806 = smul.addr %s805, 8
        %s807 = scalar_lea.vmem %s11, %s806
        %p808 = pneg %p320
        %p809 = pneg %p317
        %p810 = scmp.lt.s32.totalorder %s33, 2
        %s811 = scalar_select %p810, %s33, 2
        %s812 = scalar_lea.vmem %s12, %s811
        %p813 = pneg %p346
        %p814 = pneg %p343
        %p815 = scmp.lt.s32.totalorder %s33, 2
        %s816 = scalar_select %p815, %s33, 2
        %s817 = scalar_lea.vmem %s13, %s816
        %p818 = pneg %p372
        %p819 = pneg %p369
        %p820 = scmp.lt.s32.totalorder %s33, 2
        %s821 = scalar_select %p820, %s33, 2
        %s822 = scalar_lea.vmem %s14, %s821
        %p823 = pneg %p398
        %p824 = pneg %p395
        %p825 = scmp.lt.s32.totalorder %s33, 2
        %s826 = scalar_select %p825, %s33, 2
        %s827 = scalar_lea.vmem %s15, %s826
        %p828 = pneg %p424
        %p829 = pneg %p421
        %p830 = scmp.lt.s32.totalorder %s33, 2
        %s831 = scalar_select %p830, %s33, 2
        %s832 = smul.addr %s831, 8
        %s833 = smul.addr %s832, 8
        %s834 = scalar_lea.vmem %s16, %s833
        %p835 = pneg %p450
        %p836 = pneg %p447
        %p837 = scmp.lt.s32.totalorder %s33, 2
        %s838 = scalar_select %p837, %s33, 2
        %s839 = scalar_lea.vmem %s17, %s838
        %p840 = pneg %p476
        %p841 = pneg %p473
        %p842 = scmp.lt.s32.totalorder %s33, 2
        %s843 = scalar_select %p842, %s33, 2
        %s844 = smul.addr %s843, 8
        %s845 = smul.addr %s844, 8
        %s846 = scalar_lea.vmem %s18, %s845
        %p847 = pneg %p502
        %p848 = pneg %p499
        %p849 = scmp.lt.s32.totalorder %s33, 2
        %s850 = scalar_select %p849, %s33, 2
        %s851 = scalar_lea.vmem %s19, %s850
        %p852 = pneg %p528
        %p853 = pneg %p525
        %p854 = pneg %p554
        %p855 = pneg %p551
        %p856 = scmp.lt.s32.totalorder %s33, 2
        %s857 = scalar_select %p856, %s33, 2
        %s858 = smul.addr %s857, 2
        %s859 = scalar_lea.vmem %s20, %s858
        %p860 = scmp.lt.s32.totalorder %s33, 2
        %s861 = scalar_select %p860, %s33, 2
        %s862 = smul.addr %s861, 108
        %s863 = smul.addr %s862, 8
        %s864 = scalar_lea.vmem %s4, %s863
        %p865 = scmp.lt.s32.totalorder %s33, 2
        %s866 = scalar_select %p865, %s33, 2
        %s867 = smul.addr %s866, 144
        %s868 = smul.addr %s867, 8
        %s869 = scalar_lea.vmem %s5, %s868
        %p870 = scmp.lt.s32.totalorder %s33, 2
        %s871 = scalar_select %p870, %s33, 2
        %s872 = scalar_lea.vmem %s6, %s871
        %p873 = scmp.lt.s32.totalorder %s33, 2
        %s874 = scalar_select %p873, %s33, 2
        %s875 = scalar_lea.vmem %s7, %s874
        %p876 = scmp.lt.s32.totalorder %s33, 2
        %s877 = scalar_select %p876, %s33, 2
        %s878 = smul.addr %s877, 8
        %s879 = smul.addr %s878, 8
        %s880 = scalar_lea.vmem %s8, %s879
        %p881 = scmp.lt.s32.totalorder %s33, 2
        %s882 = scalar_select %p881, %s33, 2
        %s883 = smul.addr %s882, 4
        %s884 = smul.addr %s883, 8
        %s885 = scalar_lea.vmem %s9, %s884
        %p886 = scmp.lt.s32.totalorder %s33, 2
        %s887 = scalar_select %p886, %s33, 2
        %s888 = smul.addr %s887, 8
        %s889 = smul.addr %s888, 8
        %s890 = scalar_lea.vmem %s10, %s889
        %p891 = scmp.lt.s32.totalorder %s33, 2
        %s892 = scalar_select %p891, %s33, 2
        %s893 = smul.addr %s892, 8
        %s894 = smul.addr %s893, 8
        %s895 = scalar_lea.vmem %s11, %s894
        %p896 = scmp.lt.s32.totalorder %s33, 2
        %s897 = scalar_select %p896, %s33, 2
        %s898 = scalar_lea.vmem %s12, %s897
        %p899 = scmp.lt.s32.totalorder %s33, 2
        %s900 = scalar_select %p899, %s33, 2
        %s901 = scalar_lea.vmem %s13, %s900
        %p902 = scmp.lt.s32.totalorder %s33, 2
        %s903 = scalar_select %p902, %s33, 2
        %s904 = scalar_lea.vmem %s14, %s903
        %p905 = scmp.lt.s32.totalorder %s33, 2
        %s906 = scalar_select %p905, %s33, 2
        %s907 = scalar_lea.vmem %s15, %s906
        %p908 = scmp.lt.s32.totalorder %s33, 2
        %s909 = scalar_select %p908, %s33, 2
        %s910 = smul.addr %s909, 8
        %s911 = smul.addr %s910, 8
        %s912 = scalar_lea.vmem %s16, %s911
        %p913 = scmp.lt.s32.totalorder %s33, 2
        %s914 = scalar_select %p913, %s33, 2
        %s915 = scalar_lea.vmem %s17, %s914
        %p916 = scmp.lt.s32.totalorder %s33, 2
        %s917 = scalar_select %p916, %s33, 2
        %s918 = smul.addr %s917, 8
        %s919 = smul.addr %s918, 8
        %s920 = scalar_lea.vmem %s18, %s919
        %p921 = scmp.lt.s32.totalorder %s33, 2
        %s922 = scalar_select %p921, %s33, 2
        %s923 = scalar_lea.vmem %s19, %s922
        %p924 = scmp.lt.s32.totalorder %s33, 2
        %s925 = scalar_select %p924, %s33, 2
        %s926 = smul.addr %s925, 2
        %s927 = scalar_lea.vmem %s20, %s926
        %v928 = vld [vmem:[%s0] sm:$0xff]
        %v929 = vld [vmem:[%s0 + $0x8] sm:$0xff]
        %v930 = vld [vmem:[%s0 + $0x10] sm:$0xff]
        %v931 = vld [vmem:[%s0 + $0x18] sm:$0xff]
        %v932 = vld [vmem:[%s0 + $0x20] sm:$0xff]
        %v933 = vld [vmem:[%s0 + $0x28] sm:$0xff]
        %v934 = vld [vmem:[%s0 + $0x30] sm:$0xff]
        %v935 = vld [vmem:[%s0 + $0x38] sm:$0xff]
        %v936 = vld [vmem:[%s0 + $0x40] sm:$0xff]
        %v937 = vld [vmem:[%s0 + $0x48] sm:$0xff]
        %v938 = vld [vmem:[%s0 + $0x50] sm:$0xff]
        %v939 = vld [vmem:[%s0 + $0x58] sm:$0xff]
        %v940 = vld [vmem:[%s0 + $0x60] sm:$0xff]
        %v941 = vld [vmem:[%s0 + $0x68] sm:$0xff]
        %v942 = vld [vmem:[%s0 + $0x70] sm:$0xff]
        %v943 = vld [vmem:[%s0 + $0x78] sm:$0xff]
        %v944 = vld [vmem:[%s0 + $0x80] sm:$0xff]
        %v945 = vld [vmem:[%s0 + $0x88] sm:$0xff]
        %v946 = vld [vmem:[%s0 + $0x90] sm:$0xff]
        %v947 = vld [vmem:[%s0 + $0x98] sm:$0xff]
        %v948 = vld [vmem:[%s0 + $0xa0] sm:$0xff]
        %v949 = vld [vmem:[%s0 + $0xa8] sm:$0xff]
        %v950 = vld [vmem:[%s0 + $0xb0] sm:$0xff]
        %v951 = vld [vmem:[%s0 + $0xb8] sm:$0xff]
        %v952 = vld [vmem:[%s0 + $0xc0] sm:$0xff]
        %v953 = vld [vmem:[%s0 + $0xc8] sm:$0xff]
        %v954 = vld [vmem:[%s0 + $0xd0] sm:$0xff]
        %v955 = vld [vmem:[%s0 + $0xd8] sm:$0xff]
        %v956 = vld [vmem:[%s0 + $0xe0] sm:$0xff]
        %v957 = vld [vmem:[%s0 + $0xe8] sm:$0xff]
        %v958 = vld [vmem:[%s0 + $0xf0] sm:$0xff]
        %v959 = vld [vmem:[%s0 + $0xf8] sm:$0xff]
        %v960 = vld [vmem:[%s0 + $0x100] sm:$0xff]
        %v961 = vld [vmem:[%s0 + $0x108] sm:$0xff]
        %v962 = vld [vmem:[%s0 + $0x110] sm:$0xff]
        %v963 = vld [vmem:[%s0 + $0x118] sm:$0xff]
        %v964 = vld [vmem:[%s0 + $0x120] sm:$0xff]
        %v965 = vld [vmem:[%s0 + $0x128] sm:$0xff]
        %v966 = vld [vmem:[%s0 + $0x130] sm:$0xff]
        %v967 = vld [vmem:[%s0 + $0x138] sm:$0xff]
        %v968 = vld [vmem:[%s0 + $0x140] sm:$0xff]
        %v969 = vld [vmem:[%s0 + $0x148] sm:$0xff]
        %v970 = vld [vmem:[%s0 + $0x150] sm:$0xff]
        %v971 = vld [vmem:[%s0 + $0x158] sm:$0xff]
        %v972 = vld [vmem:[%s0 + $0x160] sm:$0xff]
        %v973 = vld [vmem:[%s0 + $0x168] sm:$0xff]
        %v974 = vld [vmem:[%s0 + $0x170] sm:$0xff]
        %v975 = vld [vmem:[%s0 + $0x178] sm:$0xff]
        %v976 = vld [vmem:[%s0 + $0x180] sm:$0xff]
        %v977 = vld [vmem:[%s0 + $0x188] sm:$0xff]
        %v978 = vld [vmem:[%s0 + $0x190] sm:$0xff]
        %v979 = vld [vmem:[%s0 + $0x198] sm:$0xff]
        %v980 = vld [vmem:[%s0 + $0x1a0] sm:$0xff]
        %v981 = vld [vmem:[%s0 + $0x1a8] sm:$0xff]
        %v982 = vld [vmem:[%s0 + $0x1b0] sm:$0xff]
        %v983 = vld [vmem:[%s0 + $0x1b8] sm:$0xff]
        %v984 = vld [vmem:[%s864] sm:$0xff]
        %v985 = vld [vmem:[%s864 + $0x8] sm:$0xff]
        %v986 = vld [vmem:[%s864 + $0x10] sm:$0xff]
        %v987 = vld [vmem:[%s864 + $0x18] sm:$0xff]
        %v988 = vld [vmem:[%s864 + $0x20] sm:$0xff]
        %v989 = vld [vmem:[%s864 + $0x28] sm:$0xff]
        %v990 = vld [vmem:[%s864 + $0x30] sm:$0xff]
        %v991 = vld [vmem:[%s864 + $0x38] sm:$0xff]
        %v992 = vld [vmem:[%s864 + $0x40] sm:$0xff]
        %v993 = vld [vmem:[%s864 + $0x48] sm:$0xff]
        %v994 = vld [vmem:[%s864 + $0x50] sm:$0xff]
        %v995 = vld [vmem:[%s864 + $0x58] sm:$0xff]
        %v996 = vld [vmem:[%s864 + $0x60] sm:$0xff]
        %v997 = vld [vmem:[%s864 + $0x68] sm:$0xff]
        %v998 = vld [vmem:[%s864 + $0x70] sm:$0xff]
        %v999 = vld [vmem:[%s864 + $0x78] sm:$0xff]
        %v1000 = vld [vmem:[%s864 + $0x80] sm:$0xff]
        %v1001 = vld [vmem:[%s864 + $0x88] sm:$0xff]
        %v1002 = vld [vmem:[%s864 + $0x90] sm:$0xff]
        %v1003 = vld [vmem:[%s864 + $0x98] sm:$0xff]
        %v1004 = vld [vmem:[%s864 + $0xa0] sm:$0xff]
        %v1005 = vld [vmem:[%s864 + $0xa8] sm:$0xff]
        %v1006 = vld [vmem:[%s864 + $0xb0] sm:$0xff]
        %v1007 = vld [vmem:[%s864 + $0xb8] sm:$0xff]
        %v1008 = vld [vmem:[%s864 + $0xc0] sm:$0xff]
        %v1009 = vld [vmem:[%s864 + $0xc8] sm:$0xff]
        %v1010 = vld [vmem:[%s864 + $0xd0] sm:$0xff]
        %v1011 = vld [vmem:[%s864 + $0xd8] sm:$0xff]
        %v1012 = vld [vmem:[%s864 + $0xe0] sm:$0xff]
        %v1013 = vld [vmem:[%s864 + $0xe8] sm:$0xff]
        %v1014 = vld [vmem:[%s864 + $0xf0] sm:$0xff]
        %v1015 = vld [vmem:[%s864 + $0xf8] sm:$0xff]
        %v1016 = vld [vmem:[%s864 + $0x100] sm:$0xff]
        %v1017 = vld [vmem:[%s864 + $0x108] sm:$0xff]
        %v1018 = vld [vmem:[%s864 + $0x110] sm:$0xff]
        %v1019 = vld [vmem:[%s864 + $0x118] sm:$0xff]
        %v1020 = vld [vmem:[%s864 + $0x120] sm:$0xff]
        %v1021 = vld [vmem:[%s864 + $0x128] sm:$0xff]
        %v1022 = vld [vmem:[%s864 + $0x130] sm:$0xff]
        %v1023 = vld [vmem:[%s864 + $0x138] sm:$0xff]
        %v1024 = vld [vmem:[%s864 + $0x140] sm:$0xff]
        %v1025 = vld [vmem:[%s864 + $0x148] sm:$0xff]
        %v1026 = vld [vmem:[%s864 + $0x150] sm:$0xff]
        %v1027 = vld [vmem:[%s864 + $0x158] sm:$0xff]
        %v1028 = vld [vmem:[%s864 + $0x160] sm:$0xff]
        %v1029 = vld [vmem:[%s864 + $0x168] sm:$0xff]
        %v1030 = vld [vmem:[%s864 + $0x170] sm:$0xff]
        %v1031 = vld [vmem:[%s864 + $0x178] sm:$0xff]
        %v1032 = vld [vmem:[%s864 + $0x180] sm:$0xff]
        %v1033 = vld [vmem:[%s864 + $0x188] sm:$0xff]
        %v1034 = vld [vmem:[%s864 + $0x190] sm:$0xff]
        %v1035 = vld [vmem:[%s864 + $0x198] sm:$0xff]
        %v1036 = vld [vmem:[%s864 + $0x1a0] sm:$0xff]
        %v1037 = vld [vmem:[%s864 + $0x1a8] sm:$0xff]
        %v1038 = vld [vmem:[%s864 + $0x1b0] sm:$0xff]
        %v1039 = vld [vmem:[%s864 + $0x1b8] sm:$0xff]
        %v1040 = vld [vmem:[%s864 + $0x1c0] sm:$0xff]
        %v1041 = vld [vmem:[%s864 + $0x1c8] sm:$0xff]
        %v1042 = vld [vmem:[%s864 + $0x1d0] sm:$0xff]
        %v1043 = vld [vmem:[%s864 + $0x1d8] sm:$0xff]
        %v1044 = vld [vmem:[%s864 + $0x1e0] sm:$0xff]
        %v1045 = vld [vmem:[%s864 + $0x1e8] sm:$0xff]
        %v1046 = vld [vmem:[%s864 + $0x1f0] sm:$0xff]
        %v1047 = vld [vmem:[%s864 + $0x1f8] sm:$0xff]
        %v1048 = vld [vmem:[%s864 + $0x200] sm:$0xff]
        %v1049 = vld [vmem:[%s864 + $0x208] sm:$0xff]
        %v1050 = vld [vmem:[%s864 + $0x210] sm:$0xff]
        %v1051 = vld [vmem:[%s864 + $0x218] sm:$0xff]
        %v1052 = vld [vmem:[%s864 + $0x220] sm:$0xff]
        %v1053 = vld [vmem:[%s864 + $0x228] sm:$0xff]
        %v1054 = vld [vmem:[%s864 + $0x230] sm:$0xff]
        %v1055 = vld [vmem:[%s864 + $0x238] sm:$0xff]
        %v1056 = vld [vmem:[%s864 + $0x240] sm:$0xff]
        %v1057 = vld [vmem:[%s864 + $0x248] sm:$0xff]
        %v1058 = vld [vmem:[%s864 + $0x250] sm:$0xff]
        %v1059 = vld [vmem:[%s864 + $0x258] sm:$0xff]
        %v1060 = vld [vmem:[%s864 + $0x260] sm:$0xff]
        %v1061 = vld [vmem:[%s864 + $0x268] sm:$0xff]
        %v1062 = vld [vmem:[%s864 + $0x270] sm:$0xff]
        %v1063 = vld [vmem:[%s864 + $0x278] sm:$0xff]
        %v1064 = vld [vmem:[%s864 + $0x280] sm:$0xff]
        %v1065 = vld [vmem:[%s864 + $0x288] sm:$0xff]
        %v1066 = vld [vmem:[%s864 + $0x290] sm:$0xff]
        %v1067 = vld [vmem:[%s864 + $0x298] sm:$0xff]
        %v1068 = vld [vmem:[%s864 + $0x2a0] sm:$0xff]
        %v1069 = vld [vmem:[%s864 + $0x2a8] sm:$0xff]
        %v1070 = vld [vmem:[%s864 + $0x2b0] sm:$0xff]
        %v1071 = vld [vmem:[%s864 + $0x2b8] sm:$0xff]
        %v1072 = vld [vmem:[%s864 + $0x2c0] sm:$0xff]
        %v1073 = vld [vmem:[%s864 + $0x2c8] sm:$0xff]
        %v1074 = vld [vmem:[%s864 + $0x2d0] sm:$0xff]
        %v1075 = vld [vmem:[%s864 + $0x2d8] sm:$0xff]
        %v1076 = vld [vmem:[%s864 + $0x2e0] sm:$0xff]
        %v1077 = vld [vmem:[%s864 + $0x2e8] sm:$0xff]
        %v1078 = vld [vmem:[%s864 + $0x2f0] sm:$0xff]
        %v1079 = vld [vmem:[%s864 + $0x2f8] sm:$0xff]
        %v1080 = vld [vmem:[%s864 + $0x300] sm:$0xff]
        %v1081 = vld [vmem:[%s864 + $0x308] sm:$0xff]
        %v1082 = vld [vmem:[%s864 + $0x310] sm:$0xff]
        %v1083 = vld [vmem:[%s864 + $0x318] sm:$0xff]
        %v1084 = vld [vmem:[%s864 + $0x320] sm:$0xff]
        %v1085 = vld [vmem:[%s864 + $0x328] sm:$0xff]
        %v1086 = vld [vmem:[%s864 + $0x330] sm:$0xff]
        %v1087 = vld [vmem:[%s864 + $0x338] sm:$0xff]
        %v1088 = vld [vmem:[%s864 + $0x340] sm:$0xff]
        %v1089 = vld [vmem:[%s864 + $0x348] sm:$0xff]
        %v1090 = vld [vmem:[%s864 + $0x350] sm:$0xff]
        %v1091 = vld [vmem:[%s864 + $0x358] sm:$0xff]
        %v1092 = vld [vmem:[%s872] sm:$0x1]
        %v1094 = vperm.slane %v1092, 0
        %vm1096 = vcmask 785408
        %v1098 = vsel %vm1096, %v934, 0
        %v1101 = vsel %vm1096, %v941, 0
        %v1104 = vsel %vm1096, %v948, 0
        %v1107 = vsel %vm1096, %v955, 0
        %v1110 = vsel %vm1096, %v962, 0
        %v1113 = vsel %vm1096, %v969, 0
        %v1116 = vsel %vm1096, %v976, 0
        %v1119 = vsel %vm1096, %v983, 0
        %1121 = vmatpush.msra.mxu0 %v999
        %1122 = vmatpush.msra.mxu0 %v998
        %1123 = vmatpush.msra.mxu0 %v997
        %1124 = vmatpush.msra.mxu0 %v996
        %1125 = vmatpush.msra.mxu0 %v995
        %1126 = vmatpush.msra.mxu0 %v994
        %1127 = vmatpush.msra.mxu0 %v993
        %1128 = vmatpush.msra.mxu0 %v992
        %1129 = vmatpush.msra.mxu0 %v991
        %1130 = vmatpush.msra.mxu0 %v990
        %1131 = vmatpush.msra.mxu0 %v989
        %1132 = vmatpush.msra.mxu0 %v988
        %1133 = vmatpush.msra.mxu0 %v987
        %1134 = vmatpush.msra.mxu0 %v986
        %1135 = vmatpush.msra.mxu0 %v985
        %1136 = vmatpush.msra.mxu0 %v984
        %1137 = vmatmul.f32.gmra.mxu0 %v928
        %v1138 = vpop.f32.mrf.mxu0
        %v1139 = vadd.f32 %v1094, %v1138
        %1140 = vmatmul.f32.gmra.mxu0 %v935
        %v1141 = vpop.f32.mrf.mxu0
        %v1142 = vadd.f32 %v1094, %v1141
        %1143 = vmatmul.f32.gmra.mxu0 %v942
        %v1144 = vpop.f32.mrf.mxu0
        %v1145 = vadd.f32 %v1094, %v1144
        %1146 = vmatmul.f32.gmra.mxu0 %v949
        %v1147 = vpop.f32.mrf.mxu0
        %v1148 = vadd.f32 %v1094, %v1147
        %1149 = vmatmul.f32.gmra.mxu0 %v956
        %v1150 = vpop.f32.mrf.mxu0
        %v1151 = vadd.f32 %v1094, %v1150
        %1152 = vmatmul.f32.gmra.mxu0 %v963
        %v1153 = vpop.f32.mrf.mxu0
        %v1154 = vadd.f32 %v1094, %v1153
        %1155 = vmatmul.f32.gmra.mxu0 %v970
        %v1156 = vpop.f32.mrf.mxu0
        %v1157 = vadd.f32 %v1094, %v1156
        %1158 = vmatmul.f32.gmra.mxu0 %v977
        %v1159 = vpop.f32.mrf.mxu0
        %v1160 = vadd.f32 %v1094, %v1159
        %1161 = vdwg.mxu0
        %1162 = vmatpush.msra.mxu0 %v1015
        %1163 = vmatpush.msra.mxu0 %v1014
        %1164 = vmatpush.msra.mxu0 %v1013
        %1165 = vmatpush.msra.mxu0 %v1012
        %1166 = vmatpush.msra.mxu0 %v1011
        %1167 = vmatpush.msra.mxu0 %v1010
        %1168 = vmatpush.msra.mxu0 %v1009
        %1169 = vmatpush.msra.mxu0 %v1008
        %1170 = vmatpush.msra.mxu0 %v1007
        %1171 = vmatpush.msra.mxu0 %v1006
        %1172 = vmatpush.msra.mxu0 %v1005
        %1173 = vmatpush.msra.mxu0 %v1004
        %1174 = vmatpush.msra.mxu0 %v1003
        %1175 = vmatpush.msra.mxu0 %v1002
        %1176 = vmatpush.msra.mxu0 %v1001
        %1177 = vmatpush.msra.mxu0 %v1000
        %1178 = vmatmul.f32.gmra.mxu0 %v929
        %v1179 = vpop.f32.mrf.mxu0
        %v1180 = vadd.f32 %v1139, %v1179
        %1181 = vmatmul.f32.gmra.mxu0 %v936
        %v1182 = vpop.f32.mrf.mxu0
        %v1183 = vadd.f32 %v1142, %v1182
        %1184 = vmatmul.f32.gmra.mxu0 %v943
        %v1185 = vpop.f32.mrf.mxu0
        %v1186 = vadd.f32 %v1145, %v1185
        %1187 = vmatmul.f32.gmra.mxu0 %v950
        %v1188 = vpop.f32.mrf.mxu0
        %v1189 = vadd.f32 %v1148, %v1188
        %1190 = vmatmul.f32.gmra.mxu0 %v957
        %v1191 = vpop.f32.mrf.mxu0
        %v1192 = vadd.f32 %v1151, %v1191
        %1193 = vmatmul.f32.gmra.mxu0 %v964
        %v1194 = vpop.f32.mrf.mxu0
        %v1195 = vadd.f32 %v1154, %v1194
        %1196 = vmatmul.f32.gmra.mxu0 %v971
        %v1197 = vpop.f32.mrf.mxu0
        %v1198 = vadd.f32 %v1157, %v1197
        %1199 = vmatmul.f32.gmra.mxu0 %v978
        %v1200 = vpop.f32.mrf.mxu0
        %v1201 = vadd.f32 %v1160, %v1200
        %1202 = vdwg.mxu0
        %1203 = vmatpush.msra.mxu0 %v1031
        %1204 = vmatpush.msra.mxu0 %v1030
        %1205 = vmatpush.msra.mxu0 %v1029
        %1206 = vmatpush.msra.mxu0 %v1028
        %1207 = vmatpush.msra.mxu0 %v1027
        %1208 = vmatpush.msra.mxu0 %v1026
        %1209 = vmatpush.msra.mxu0 %v1025
        %1210 = vmatpush.msra.mxu0 %v1024
        %1211 = vmatpush.msra.mxu0 %v1023
        %1212 = vmatpush.msra.mxu0 %v1022
        %1213 = vmatpush.msra.mxu0 %v1021
        %1214 = vmatpush.msra.mxu0 %v1020
        %1215 = vmatpush.msra.mxu0 %v1019
        %1216 = vmatpush.msra.mxu0 %v1018
        %1217 = vmatpush.msra.mxu0 %v1017
        %1218 = vmatpush.msra.mxu0 %v1016
        %1219 = vmatmul.f32.gmra.mxu0 %v930
        %v1220 = vpop.f32.mrf.mxu0
        %v1221 = vadd.f32 %v1180, %v1220
        %1222 = vmatmul.f32.gmra.mxu0 %v937
        %v1223 = vpop.f32.mrf.mxu0
        %v1224 = vadd.f32 %v1183, %v1223
        %1225 = vmatmul.f32.gmra.mxu0 %v944
        %v1226 = vpop.f32.mrf.mxu0
        %v1227 = vadd.f32 %v1186, %v1226
        %1228 = vmatmul.f32.gmra.mxu0 %v951
        %v1229 = vpop.f32.mrf.mxu0
        %v1230 = vadd.f32 %v1189, %v1229
        %1231 = vmatmul.f32.gmra.mxu0 %v958
        %v1232 = vpop.f32.mrf.mxu0
        %v1233 = vadd.f32 %v1192, %v1232
        %1234 = vmatmul.f32.gmra.mxu0 %v965
        %v1235 = vpop.f32.mrf.mxu0
        %v1236 = vadd.f32 %v1195, %v1235
        %1237 = vmatmul.f32.gmra.mxu0 %v972
        %v1238 = vpop.f32.mrf.mxu0
        %v1239 = vadd.f32 %v1198, %v1238
        %1240 = vmatmul.f32.gmra.mxu0 %v979
        %v1241 = vpop.f32.mrf.mxu0
        %v1242 = vadd.f32 %v1201, %v1241
        %1243 = vdwg.mxu0
        %1244 = vmatpush.msra.mxu0 %v1047
        %1245 = vmatpush.msra.mxu0 %v1046
        %1246 = vmatpush.msra.mxu0 %v1045
        %1247 = vmatpush.msra.mxu0 %v1044
        %1248 = vmatpush.msra.mxu0 %v1043
        %1249 = vmatpush.msra.mxu0 %v1042
        %1250 = vmatpush.msra.mxu0 %v1041
        %1251 = vmatpush.msra.mxu0 %v1040
        %1252 = vmatpush.msra.mxu0 %v1039
        %1253 = vmatpush.msra.mxu0 %v1038
        %1254 = vmatpush.msra.mxu0 %v1037
        %1255 = vmatpush.msra.mxu0 %v1036
        %1256 = vmatpush.msra.mxu0 %v1035
        %1257 = vmatpush.msra.mxu0 %v1034
        %1258 = vmatpush.msra.mxu0 %v1033
        %1259 = vmatpush.msra.mxu0 %v1032
        %1260 = vmatmul.f32.gmra.mxu0 %v931
        %v1261 = vpop.f32.mrf.mxu0
        %v1262 = vadd.f32 %v1221, %v1261
        %1263 = vmatmul.f32.gmra.mxu0 %v938
        %v1264 = vpop.f32.mrf.mxu0
        %v1265 = vadd.f32 %v1224, %v1264
        %1266 = vmatmul.f32.gmra.mxu0 %v945
        %v1267 = vpop.f32.mrf.mxu0
        %v1268 = vadd.f32 %v1227, %v1267
        %1269 = vmatmul.f32.gmra.mxu0 %v952
        %v1270 = vpop.f32.mrf.mxu0
        %v1271 = vadd.f32 %v1230, %v1270
        %1272 = vmatmul.f32.gmra.mxu0 %v959
        %v1273 = vpop.f32.mrf.mxu0
        %v1274 = vadd.f32 %v1233, %v1273
        %1275 = vmatmul.f32.gmra.mxu0 %v966
        %v1276 = vpop.f32.mrf.mxu0
        %v1277 = vadd.f32 %v1236, %v1276
        %1278 = vmatmul.f32.gmra.mxu0 %v973
        %v1279 = vpop.f32.mrf.mxu0
        %v1280 = vadd.f32 %v1239, %v1279
        %1281 = vmatmul.f32.gmra.mxu0 %v980
        %v1282 = vpop.f32.mrf.mxu0
        %v1283 = vadd.f32 %v1242, %v1282
        %1284 = vdwg.mxu0
        %1285 = vmatpush.msra.mxu0 %v1063
        %1286 = vmatpush.msra.mxu0 %v1062
        %1287 = vmatpush.msra.mxu0 %v1061
        %1288 = vmatpush.msra.mxu0 %v1060
        %1289 = vmatpush.msra.mxu0 %v1059
        %1290 = vmatpush.msra.mxu0 %v1058
        %1291 = vmatpush.msra.mxu0 %v1057
        %1292 = vmatpush.msra.mxu0 %v1056
        %1293 = vmatpush.msra.mxu0 %v1055
        %1294 = vmatpush.msra.mxu0 %v1054
        %1295 = vmatpush.msra.mxu0 %v1053
        %1296 = vmatpush.msra.mxu0 %v1052
        %1297 = vmatpush.msra.mxu0 %v1051
        %1298 = vmatpush.msra.mxu0 %v1050
        %1299 = vmatpush.msra.mxu0 %v1049
        %1300 = vmatpush.msra.mxu0 %v1048
        %1301 = vmatmul.f32.gmra.mxu0 %v932
        %v1302 = vpop.f32.mrf.mxu0
        %v1303 = vadd.f32 %v1262, %v1302
        %1304 = vmatmul.f32.gmra.mxu0 %v939
        %v1305 = vpop.f32.mrf.mxu0
        %v1306 = vadd.f32 %v1265, %v1305
        %1307 = vmatmul.f32.gmra.mxu0 %v946
        %v1308 = vpop.f32.mrf.mxu0
        %v1309 = vadd.f32 %v1268, %v1308
        %1310 = vmatmul.f32.gmra.mxu0 %v953
        %v1311 = vpop.f32.mrf.mxu0
        %v1312 = vadd.f32 %v1271, %v1311
        %1313 = vmatmul.f32.gmra.mxu0 %v960
        %v1314 = vpop.f32.mrf.mxu0
        %v1315 = vadd.f32 %v1274, %v1314
        %1316 = vmatmul.f32.gmra.mxu0 %v967
        %v1317 = vpop.f32.mrf.mxu0
        %v1318 = vadd.f32 %v1277, %v1317
        %1319 = vmatmul.f32.gmra.mxu0 %v974
        %v1320 = vpop.f32.mrf.mxu0
        %v1321 = vadd.f32 %v1280, %v1320
        %1322 = vmatmul.f32.gmra.mxu0 %v981
        %v1323 = vpop.f32.mrf.mxu0
        %v1324 = vadd.f32 %v1283, %v1323
        %1325 = vdwg.mxu0
        %1326 = vmatpush.msra.mxu0 %v1079
        %1327 = vmatpush.msra.mxu0 %v1078
        %1328 = vmatpush.msra.mxu0 %v1077
        %1329 = vmatpush.msra.mxu0 %v1076
        %1330 = vmatpush.msra.mxu0 %v1075
        %1331 = vmatpush.msra.mxu0 %v1074
        %1332 = vmatpush.msra.mxu0 %v1073
        %1333 = vmatpush.msra.mxu0 %v1072
        %1334 = vmatpush.msra.mxu0 %v1071
        %1335 = vmatpush.msra.mxu0 %v1070
        %1336 = vmatpush.msra.mxu0 %v1069
        %1337 = vmatpush.msra.mxu0 %v1068
        %1338 = vmatpush.msra.mxu0 %v1067
        %1339 = vmatpush.msra.mxu0 %v1066
        %1340 = vmatpush.msra.mxu0 %v1065
        %1341 = vmatpush.msra.mxu0 %v1064
        %1342 = vmatmul.f32.gmra.mxu0 %v933
        %v1343 = vpop.f32.mrf.mxu0
        %v1344 = vadd.f32 %v1303, %v1343
        %1345 = vmatmul.f32.gmra.mxu0 %v940
        %v1346 = vpop.f32.mrf.mxu0
        %v1347 = vadd.f32 %v1306, %v1346
        %1348 = vmatmul.f32.gmra.mxu0 %v947
        %v1349 = vpop.f32.mrf.mxu0
        %v1350 = vadd.f32 %v1309, %v1349
        %1351 = vmatmul.f32.gmra.mxu0 %v954
        %v1352 = vpop.f32.mrf.mxu0
        %v1353 = vadd.f32 %v1312, %v1352
        %1354 = vmatmul.f32.gmra.mxu0 %v961
        %v1355 = vpop.f32.mrf.mxu0
        %v1356 = vadd.f32 %v1315, %v1355
        %1357 = vmatmul.f32.gmra.mxu0 %v968
        %v1358 = vpop.f32.mrf.mxu0
        %v1359 = vadd.f32 %v1318, %v1358
        %1360 = vmatmul.f32.gmra.mxu0 %v975
        %v1361 = vpop.f32.mrf.mxu0
        %v1362 = vadd.f32 %v1321, %v1361
        %1363 = vmatmul.f32.gmra.mxu0 %v982
        %v1364 = vpop.f32.mrf.mxu0
        %v1365 = vadd.f32 %v1324, %v1364
        %1366 = vdwg.mxu0
        %1367 = vmatpush.msra.mxu0 0.0
        %1368 = vmatpush.msra.mxu0 0.0
        %1369 = vmatpush.msra.mxu0 0.0
        %1370 = vmatpush.msra.mxu0 0.0
        %1371 = vmatpush.msra.mxu0 %v1091
        %1372 = vmatpush.msra.mxu0 %v1090
        %1373 = vmatpush.msra.mxu0 %v1089
        %1374 = vmatpush.msra.mxu0 %v1088
        %1375 = vmatpush.msra.mxu0 %v1087
        %1376 = vmatpush.msra.mxu0 %v1086
        %1377 = vmatpush.msra.mxu0 %v1085
        %1378 = vmatpush.msra.mxu0 %v1084
        %1379 = vmatpush.msra.mxu0 %v1083
        %1380 = vmatpush.msra.mxu0 %v1082
        %1381 = vmatpush.msra.mxu0 %v1081
        %1382 = vmatpush.msra.mxu0 %v1080
        %1383 = vmatmul.f32.gmra.mxu0 %v1098
        %v1384 = vpop.f32.mrf.mxu0
        %v1385 = vadd.f32 %v1344, %v1384
        %1386 = vmatmul.f32.gmra.mxu0 %v1101
        %v1387 = vpop.f32.mrf.mxu0
        %v1388 = vadd.f32 %v1347, %v1387
        %1389 = vmatmul.f32.gmra.mxu0 %v1104
        %v1390 = vpop.f32.mrf.mxu0
        %v1391 = vadd.f32 %v1350, %v1390
        %1392 = vmatmul.f32.gmra.mxu0 %v1107
        %v1393 = vpop.f32.mrf.mxu0
        %v1394 = vadd.f32 %v1353, %v1393
        %1395 = vmatmul.f32.gmra.mxu0 %v1110
        %v1396 = vpop.f32.mrf.mxu0
        %v1397 = vadd.f32 %v1356, %v1396
        %1398 = vmatmul.f32.gmra.mxu0 %v1113
        %v1399 = vpop.f32.mrf.mxu0
        %v1400 = vadd.f32 %v1359, %v1399
        %1401 = vmatmul.f32.gmra.mxu0 %v1116
        %v1402 = vpop.f32.mrf.mxu0
        %v1403 = vadd.f32 %v1362, %v1402
        %1404 = vmatmul.f32.gmra.mxu0 %v1119
        %v1405 = vpop.f32.mrf.mxu0
        %v1406 = vadd.f32 %v1365, %v1405
        %1407 = vdwg.mxu0
        %v1408 = vmax.f32 %v1385, 0.0
        %v1409 = vmax.f32 %v1388, 0.0
        %v1410 = vmax.f32 %v1391, 0.0
        %v1411 = vmax.f32 %v1394, 0.0
        %v1412 = vmax.f32 %v1397, 0.0
        %v1413 = vmax.f32 %v1400, 0.0
        %v1414 = vmax.f32 %v1403, 0.0
        %v1415 = vmax.f32 %v1406, 0.0
        %v1416 = vld [vmem:[%s869] sm:$0xff]
        %v1417 = vld [vmem:[%s869 + $0x8] sm:$0xff]
        %v1418 = vld [vmem:[%s869 + $0x10] sm:$0xff]
        %v1419 = vld [vmem:[%s869 + $0x18] sm:$0xff]
        %v1420 = vld [vmem:[%s869 + $0x20] sm:$0xff]
        %v1421 = vld [vmem:[%s869 + $0x28] sm:$0xff]
        %v1422 = vld [vmem:[%s869 + $0x30] sm:$0xff]
        %v1423 = vld [vmem:[%s869 + $0x38] sm:$0xff]
        %v1424 = vld [vmem:[%s869 + $0x40] sm:$0xff]
        %v1425 = vld [vmem:[%s869 + $0x48] sm:$0xff]
        %v1426 = vld [vmem:[%s869 + $0x50] sm:$0xff]
        %v1427 = vld [vmem:[%s869 + $0x58] sm:$0xff]
        %v1428 = vld [vmem:[%s869 + $0x60] sm:$0xff]
        %v1429 = vld [vmem:[%s869 + $0x68] sm:$0xff]
        %v1430 = vld [vmem:[%s869 + $0x70] sm:$0xff]
        %v1431 = vld [vmem:[%s869 + $0x78] sm:$0xff]
        %v1432 = vld [vmem:[%s869 + $0x80] sm:$0xff]
        %v1433 = vld [vmem:[%s869 + $0x88] sm:$0xff]
        %v1434 = vld [vmem:[%s869 + $0x90] sm:$0xff]
        %v1435 = vld [vmem:[%s869 + $0x98] sm:$0xff]
        %v1436 = vld [vmem:[%s869 + $0xa0] sm:$0xff]
        %v1437 = vld [vmem:[%s869 + $0xa8] sm:$0xff]
        %v1438 = vld [vmem:[%s869 + $0xb0] sm:$0xff]
        %v1439 = vld [vmem:[%s869 + $0xb8] sm:$0xff]
        %v1440 = vld [vmem:[%s869 + $0xc0] sm:$0xff]
        %v1441 = vld [vmem:[%s869 + $0xc8] sm:$0xff]
        %v1442 = vld [vmem:[%s869 + $0xd0] sm:$0xff]
        %v1443 = vld [vmem:[%s869 + $0xd8] sm:$0xff]
        %v1444 = vld [vmem:[%s869 + $0xe0] sm:$0xff]
        %v1445 = vld [vmem:[%s869 + $0xe8] sm:$0xff]
        %v1446 = vld [vmem:[%s869 + $0xf0] sm:$0xff]
        %v1447 = vld [vmem:[%s869 + $0xf8] sm:$0xff]
        %v1448 = vld [vmem:[%s869 + $0x100] sm:$0xff]
        %v1449 = vld [vmem:[%s869 + $0x108] sm:$0xff]
        %v1450 = vld [vmem:[%s869 + $0x110] sm:$0xff]
        %v1451 = vld [vmem:[%s869 + $0x118] sm:$0xff]
        %v1452 = vld [vmem:[%s869 + $0x120] sm:$0xff]
        %v1453 = vld [vmem:[%s869 + $0x128] sm:$0xff]
        %v1454 = vld [vmem:[%s869 + $0x130] sm:$0xff]
        %v1455 = vld [vmem:[%s869 + $0x138] sm:$0xff]
        %v1456 = vld [vmem:[%s869 + $0x140] sm:$0xff]
        %v1457 = vld [vmem:[%s869 + $0x148] sm:$0xff]
        %v1458 = vld [vmem:[%s869 + $0x150] sm:$0xff]
        %v1459 = vld [vmem:[%s869 + $0x158] sm:$0xff]
        %v1460 = vld [vmem:[%s869 + $0x160] sm:$0xff]
        %v1461 = vld [vmem:[%s869 + $0x168] sm:$0xff]
        %v1462 = vld [vmem:[%s869 + $0x170] sm:$0xff]
        %v1463 = vld [vmem:[%s869 + $0x178] sm:$0xff]
        %v1464 = vld [vmem:[%s869 + $0x180] sm:$0xff]
        %v1465 = vld [vmem:[%s869 + $0x188] sm:$0xff]
        %v1466 = vld [vmem:[%s869 + $0x190] sm:$0xff]
        %v1467 = vld [vmem:[%s869 + $0x198] sm:$0xff]
        %v1468 = vld [vmem:[%s869 + $0x1a0] sm:$0xff]
        %v1469 = vld [vmem:[%s869 + $0x1a8] sm:$0xff]
        %v1470 = vld [vmem:[%s869 + $0x1b0] sm:$0xff]
        %v1471 = vld [vmem:[%s869 + $0x1b8] sm:$0xff]
        %v1472 = vld [vmem:[%s869 + $0x1c0] sm:$0xff]
        %v1473 = vld [vmem:[%s869 + $0x1c8] sm:$0xff]
        %v1474 = vld [vmem:[%s869 + $0x1d0] sm:$0xff]
        %v1475 = vld [vmem:[%s869 + $0x1d8] sm:$0xff]
        %v1476 = vld [vmem:[%s869 + $0x1e0] sm:$0xff]
        %v1477 = vld [vmem:[%s869 + $0x1e8] sm:$0xff]
        %v1478 = vld [vmem:[%s869 + $0x1f0] sm:$0xff]
        %v1479 = vld [vmem:[%s869 + $0x1f8] sm:$0xff]
        %v1480 = vld [vmem:[%s869 + $0x200] sm:$0xff]
        %v1481 = vld [vmem:[%s869 + $0x208] sm:$0xff]
        %v1482 = vld [vmem:[%s869 + $0x210] sm:$0xff]
        %v1483 = vld [vmem:[%s869 + $0x218] sm:$0xff]
        %v1484 = vld [vmem:[%s869 + $0x220] sm:$0xff]
        %v1485 = vld [vmem:[%s869 + $0x228] sm:$0xff]
        %v1486 = vld [vmem:[%s869 + $0x230] sm:$0xff]
        %v1487 = vld [vmem:[%s869 + $0x238] sm:$0xff]
        %v1488 = vld [vmem:[%s869 + $0x240] sm:$0xff]
        %v1489 = vld [vmem:[%s869 + $0x248] sm:$0xff]
        %v1490 = vld [vmem:[%s869 + $0x250] sm:$0xff]
        %v1491 = vld [vmem:[%s869 + $0x258] sm:$0xff]
        %v1492 = vld [vmem:[%s869 + $0x260] sm:$0xff]
        %v1493 = vld [vmem:[%s869 + $0x268] sm:$0xff]
        %v1494 = vld [vmem:[%s869 + $0x270] sm:$0xff]
        %v1495 = vld [vmem:[%s869 + $0x278] sm:$0xff]
        %v1496 = vld [vmem:[%s869 + $0x280] sm:$0xff]
        %v1497 = vld [vmem:[%s869 + $0x288] sm:$0xff]
        %v1498 = vld [vmem:[%s869 + $0x290] sm:$0xff]
        %v1499 = vld [vmem:[%s869 + $0x298] sm:$0xff]
        %v1500 = vld [vmem:[%s869 + $0x2a0] sm:$0xff]
        %v1501 = vld [vmem:[%s869 + $0x2a8] sm:$0xff]
        %v1502 = vld [vmem:[%s869 + $0x2b0] sm:$0xff]
        %v1503 = vld [vmem:[%s869 + $0x2b8] sm:$0xff]
        %v1504 = vld [vmem:[%s869 + $0x2c0] sm:$0xff]
        %v1505 = vld [vmem:[%s869 + $0x2c8] sm:$0xff]
        %v1506 = vld [vmem:[%s869 + $0x2d0] sm:$0xff]
        %v1507 = vld [vmem:[%s869 + $0x2d8] sm:$0xff]
        %v1508 = vld [vmem:[%s869 + $0x2e0] sm:$0xff]
        %v1509 = vld [vmem:[%s869 + $0x2e8] sm:$0xff]
        %v1510 = vld [vmem:[%s869 + $0x2f0] sm:$0xff]
        %v1511 = vld [vmem:[%s869 + $0x2f8] sm:$0xff]
        %v1512 = vld [vmem:[%s869 + $0x300] sm:$0xff]
        %v1513 = vld [vmem:[%s869 + $0x308] sm:$0xff]
        %v1514 = vld [vmem:[%s869 + $0x310] sm:$0xff]
        %v1515 = vld [vmem:[%s869 + $0x318] sm:$0xff]
        %v1516 = vld [vmem:[%s869 + $0x320] sm:$0xff]
        %v1517 = vld [vmem:[%s869 + $0x328] sm:$0xff]
        %v1518 = vld [vmem:[%s869 + $0x330] sm:$0xff]
        %v1519 = vld [vmem:[%s869 + $0x338] sm:$0xff]
        %v1520 = vld [vmem:[%s869 + $0x340] sm:$0xff]
        %v1521 = vld [vmem:[%s869 + $0x348] sm:$0xff]
        %v1522 = vld [vmem:[%s869 + $0x350] sm:$0xff]
        %v1523 = vld [vmem:[%s869 + $0x358] sm:$0xff]
        %v1524 = vld [vmem:[%s869 + $0x360] sm:$0xff]
        %v1525 = vld [vmem:[%s869 + $0x368] sm:$0xff]
        %v1526 = vld [vmem:[%s869 + $0x370] sm:$0xff]
        %v1527 = vld [vmem:[%s869 + $0x378] sm:$0xff]
        %v1528 = vld [vmem:[%s869 + $0x380] sm:$0xff]
        %v1529 = vld [vmem:[%s869 + $0x388] sm:$0xff]
        %v1530 = vld [vmem:[%s869 + $0x390] sm:$0xff]
        %v1531 = vld [vmem:[%s869 + $0x398] sm:$0xff]
        %v1532 = vld [vmem:[%s869 + $0x3a0] sm:$0xff]
        %v1533 = vld [vmem:[%s869 + $0x3a8] sm:$0xff]
        %v1534 = vld [vmem:[%s869 + $0x3b0] sm:$0xff]
        %v1535 = vld [vmem:[%s869 + $0x3b8] sm:$0xff]
        %v1536 = vld [vmem:[%s869 + $0x3c0] sm:$0xff]
        %v1537 = vld [vmem:[%s869 + $0x3c8] sm:$0xff]
        %v1538 = vld [vmem:[%s869 + $0x3d0] sm:$0xff]
        %v1539 = vld [vmem:[%s869 + $0x3d8] sm:$0xff]
        %v1540 = vld [vmem:[%s869 + $0x3e0] sm:$0xff]
        %v1541 = vld [vmem:[%s869 + $0x3e8] sm:$0xff]
        %v1542 = vld [vmem:[%s869 + $0x3f0] sm:$0xff]
        %v1543 = vld [vmem:[%s869 + $0x3f8] sm:$0xff]
        %v1544 = vld [vmem:[%s869 + $0x400] sm:$0xff]
        %v1545 = vld [vmem:[%s869 + $0x408] sm:$0xff]
        %v1546 = vld [vmem:[%s869 + $0x410] sm:$0xff]
        %v1547 = vld [vmem:[%s869 + $0x418] sm:$0xff]
        %v1548 = vld [vmem:[%s869 + $0x420] sm:$0xff]
        %v1549 = vld [vmem:[%s869 + $0x428] sm:$0xff]
        %v1550 = vld [vmem:[%s869 + $0x430] sm:$0xff]
        %v1551 = vld [vmem:[%s869 + $0x438] sm:$0xff]
        %v1552 = vld [vmem:[%s869 + $0x440] sm:$0xff]
        %v1553 = vld [vmem:[%s869 + $0x448] sm:$0xff]
        %v1554 = vld [vmem:[%s869 + $0x450] sm:$0xff]
        %v1555 = vld [vmem:[%s869 + $0x458] sm:$0xff]
        %v1556 = vld [vmem:[%s869 + $0x460] sm:$0xff]
        %v1557 = vld [vmem:[%s869 + $0x468] sm:$0xff]
        %v1558 = vld [vmem:[%s869 + $0x470] sm:$0xff]
        %v1559 = vld [vmem:[%s869 + $0x478] sm:$0xff]
        %1560 = vmatpush.msra.mxu0 %v1551
        %1561 = vmatpush.msra.mxu0 %v1542
        %1562 = vmatpush.msra.mxu0 %v1533
        %1563 = vmatpush.msra.mxu0 %v1524
        %1564 = vmatpush.msra.mxu0 %v1515
        %1565 = vmatpush.msra.mxu0 %v1506
        %1566 = vmatpush.msra.mxu0 %v1497
        %1567 = vmatpush.msra.mxu0 %v1488
        %1568 = vmatpush.msra.mxu0 %v1479
        %1569 = vmatpush.msra.mxu0 %v1470
        %1570 = vmatpush.msra.mxu0 %v1461
        %1571 = vmatpush.msra.mxu0 %v1452
        %1572 = vmatpush.msra.mxu0 %v1443
        %1573 = vmatpush.msra.mxu0 %v1434
        %1574 = vmatpush.msra.mxu0 %v1425
        %1575 = vmatpush.msra.mxu0 %v1416
        %1576 = vmatmul.f32.gmra.mxu0 %v1408
        %v1577 = vpop.f32.mrf.mxu0
        %v1578 = vadd.f32 0.0, %v1577
        %1579 = vmatmul.f32.gmra.mxu0 %v1409
        %v1580 = vpop.f32.mrf.mxu0
        %v1581 = vadd.f32 0.0, %v1580
        %1582 = vmatmul.f32.gmra.mxu0 %v1410
        %v1583 = vpop.f32.mrf.mxu0
        %v1584 = vadd.f32 0.0, %v1583
        %1585 = vmatmul.f32.gmra.mxu0 %v1411
        %v1586 = vpop.f32.mrf.mxu0
        %v1587 = vadd.f32 0.0, %v1586
        %1588 = vmatmul.f32.gmra.mxu0 %v1412
        %v1589 = vpop.f32.mrf.mxu0
        %v1590 = vadd.f32 0.0, %v1589
        %1591 = vmatmul.f32.gmra.mxu0 %v1413
        %v1592 = vpop.f32.mrf.mxu0
        %v1593 = vadd.f32 0.0, %v1592
        %1594 = vmatmul.f32.gmra.mxu0 %v1414
        %v1595 = vpop.f32.mrf.mxu0
        %v1596 = vadd.f32 0.0, %v1595
        %1597 = vmatmul.f32.gmra.mxu0 %v1415
        %v1598 = vpop.f32.mrf.mxu0
        %v1599 = vadd.f32 0.0, %v1598
        %1600 = vdwg.mxu0
        %1601 = vmatpush.msra.mxu0 %v1552
        %1602 = vmatpush.msra.mxu0 %v1543
        %1603 = vmatpush.msra.mxu0 %v1534
        %1604 = vmatpush.msra.mxu0 %v1525
        %1605 = vmatpush.msra.mxu0 %v1516
        %1606 = vmatpush.msra.mxu0 %v1507
        %1607 = vmatpush.msra.mxu0 %v1498
        %1608 = vmatpush.msra.mxu0 %v1489
        %1609 = vmatpush.msra.mxu0 %v1480
        %1610 = vmatpush.msra.mxu0 %v1471
        %1611 = vmatpush.msra.mxu0 %v1462
        %1612 = vmatpush.msra.mxu0 %v1453
        %1613 = vmatpush.msra.mxu0 %v1444
        %1614 = vmatpush.msra.mxu0 %v1435
        %1615 = vmatpush.msra.mxu0 %v1426
        %1616 = vmatpush.msra.mxu0 %v1417
        %1617 = vmatmul.f32.gmra.mxu0 %v1408
        %v1618 = vpop.f32.mrf.mxu0
        %v1619 = vadd.f32 0.0, %v1618
        %1620 = vmatmul.f32.gmra.mxu0 %v1409
        %v1621 = vpop.f32.mrf.mxu0
        %v1622 = vadd.f32 0.0, %v1621
        %1623 = vmatmul.f32.gmra.mxu0 %v1410
        %v1624 = vpop.f32.mrf.mxu0
        %v1625 = vadd.f32 0.0, %v1624
        %1626 = vmatmul.f32.gmra.mxu0 %v1411
        %v1627 = vpop.f32.mrf.mxu0
        %v1628 = vadd.f32 0.0, %v1627
        %1629 = vmatmul.f32.gmra.mxu0 %v1412
        %v1630 = vpop.f32.mrf.mxu0
        %v1631 = vadd.f32 0.0, %v1630
        %1632 = vmatmul.f32.gmra.mxu0 %v1413
        %v1633 = vpop.f32.mrf.mxu0
        %v1634 = vadd.f32 0.0, %v1633
        %1635 = vmatmul.f32.gmra.mxu0 %v1414
        %v1636 = vpop.f32.mrf.mxu0
        %v1637 = vadd.f32 0.0, %v1636
        %1638 = vmatmul.f32.gmra.mxu0 %v1415
        %v1639 = vpop.f32.mrf.mxu0
        %v1640 = vadd.f32 0.0, %v1639
        %1641 = vdwg.mxu0
        %1642 = vmatpush.msra.mxu0 %v1553
        %1643 = vmatpush.msra.mxu0 %v1544
        %1644 = vmatpush.msra.mxu0 %v1535
        %1645 = vmatpush.msra.mxu0 %v1526
        %1646 = vmatpush.msra.mxu0 %v1517
        %1647 = vmatpush.msra.mxu0 %v1508
        %1648 = vmatpush.msra.mxu0 %v1499
        %1649 = vmatpush.msra.mxu0 %v1490
        %1650 = vmatpush.msra.mxu0 %v1481
        %1651 = vmatpush.msra.mxu0 %v1472
        %1652 = vmatpush.msra.mxu0 %v1463
        %1653 = vmatpush.msra.mxu0 %v1454
        %1654 = vmatpush.msra.mxu0 %v1445
        %1655 = vmatpush.msra.mxu0 %v1436
        %1656 = vmatpush.msra.mxu0 %v1427
        %1657 = vmatpush.msra.mxu0 %v1418
        %1658 = vmatmul.f32.gmra.mxu0 %v1408
        %v1659 = vpop.f32.mrf.mxu0
        %v1660 = vadd.f32 0.0, %v1659
        %1661 = vmatmul.f32.gmra.mxu0 %v1409
        %v1662 = vpop.f32.mrf.mxu0
        %v1663 = vadd.f32 0.0, %v1662
        %1664 = vmatmul.f32.gmra.mxu0 %v1410
        %v1665 = vpop.f32.mrf.mxu0
        %v1666 = vadd.f32 0.0, %v1665
        %1667 = vmatmul.f32.gmra.mxu0 %v1411
        %v1668 = vpop.f32.mrf.mxu0
        %v1669 = vadd.f32 0.0, %v1668
        %1670 = vmatmul.f32.gmra.mxu0 %v1412
        %v1671 = vpop.f32.mrf.mxu0
        %v1672 = vadd.f32 0.0, %v1671
        %1673 = vmatmul.f32.gmra.mxu0 %v1413
        %v1674 = vpop.f32.mrf.mxu0
        %v1675 = vadd.f32 0.0, %v1674
        %1676 = vmatmul.f32.gmra.mxu0 %v1414
        %v1677 = vpop.f32.mrf.mxu0
        %v1678 = vadd.f32 0.0, %v1677
        %1679 = vmatmul.f32.gmra.mxu0 %v1415
        %v1680 = vpop.f32.mrf.mxu0
        %v1681 = vadd.f32 0.0, %v1680
        %1682 = vdwg.mxu0
        %1683 = vmatpush.msra.mxu0 %v1554
        %1684 = vmatpush.msra.mxu0 %v1545
        %1685 = vmatpush.msra.mxu0 %v1536
        %1686 = vmatpush.msra.mxu0 %v1527
        %1687 = vmatpush.msra.mxu0 %v1518
        %1688 = vmatpush.msra.mxu0 %v1509
        %1689 = vmatpush.msra.mxu0 %v1500
        %1690 = vmatpush.msra.mxu0 %v1491
        %1691 = vmatpush.msra.mxu0 %v1482
        %1692 = vmatpush.msra.mxu0 %v1473
        %1693 = vmatpush.msra.mxu0 %v1464
        %1694 = vmatpush.msra.mxu0 %v1455
        %1695 = vmatpush.msra.mxu0 %v1446
        %1696 = vmatpush.msra.mxu0 %v1437
        %1697 = vmatpush.msra.mxu0 %v1428
        %1698 = vmatpush.msra.mxu0 %v1419
        %1699 = vmatmul.f32.gmra.mxu0 %v1408
        %v1700 = vpop.f32.mrf.mxu0
        %v1701 = vadd.f32 0.0, %v1700
        %1702 = vmatmul.f32.gmra.mxu0 %v1409
        %v1703 = vpop.f32.mrf.mxu0
        %v1704 = vadd.f32 0.0, %v1703
        %1705 = vmatmul.f32.gmra.mxu0 %v1410
        %v1706 = vpop.f32.mrf.mxu0
        %v1707 = vadd.f32 0.0, %v1706
        %1708 = vmatmul.f32.gmra.mxu0 %v1411
        %v1709 = vpop.f32.mrf.mxu0
        %v1710 = vadd.f32 0.0, %v1709
        %1711 = vmatmul.f32.gmra.mxu0 %v1412
        %v1712 = vpop.f32.mrf.mxu0
        %v1713 = vadd.f32 0.0, %v1712
        %1714 = vmatmul.f32.gmra.mxu0 %v1413
        %v1715 = vpop.f32.mrf.mxu0
        %v1716 = vadd.f32 0.0, %v1715
        %1717 = vmatmul.f32.gmra.mxu0 %v1414
        %v1718 = vpop.f32.mrf.mxu0
        %v1719 = vadd.f32 0.0, %v1718
        %1720 = vmatmul.f32.gmra.mxu0 %v1415
        %v1721 = vpop.f32.mrf.mxu0
        %v1722 = vadd.f32 0.0, %v1721
        %1723 = vdwg.mxu0
        %1724 = vmatpush.msra.mxu0 %v1555
        %1725 = vmatpush.msra.mxu0 %v1546
        %1726 = vmatpush.msra.mxu0 %v1537
        %1727 = vmatpush.msra.mxu0 %v1528
        %1728 = vmatpush.msra.mxu0 %v1519
        %1729 = vmatpush.msra.mxu0 %v1510
        %1730 = vmatpush.msra.mxu0 %v1501
        %1731 = vmatpush.msra.mxu0 %v1492
        %1732 = vmatpush.msra.mxu0 %v1483
        %1733 = vmatpush.msra.mxu0 %v1474
        %1734 = vmatpush.msra.mxu0 %v1465
        %1735 = vmatpush.msra.mxu0 %v1456
        %1736 = vmatpush.msra.mxu0 %v1447
        %1737 = vmatpush.msra.mxu0 %v1438
        %1738 = vmatpush.msra.mxu0 %v1429
        %1739 = vmatpush.msra.mxu0 %v1420
        %1740 = vmatmul.f32.gmra.mxu0 %v1408
        %v1741 = vpop.f32.mrf.mxu0
        %v1742 = vadd.f32 0.0, %v1741
        %1743 = vmatmul.f32.gmra.mxu0 %v1409
        %v1744 = vpop.f32.mrf.mxu0
        %v1745 = vadd.f32 0.0, %v1744
        %1746 = vmatmul.f32.gmra.mxu0 %v1410
        %v1747 = vpop.f32.mrf.mxu0
        %v1748 = vadd.f32 0.0, %v1747
        %1749 = vmatmul.f32.gmra.mxu0 %v1411
        %v1750 = vpop.f32.mrf.mxu0
        %v1751 = vadd.f32 0.0, %v1750
        %1752 = vmatmul.f32.gmra.mxu0 %v1412
        %v1753 = vpop.f32.mrf.mxu0
        %v1754 = vadd.f32 0.0, %v1753
        %1755 = vmatmul.f32.gmra.mxu0 %v1413
        %v1756 = vpop.f32.mrf.mxu0
        %v1757 = vadd.f32 0.0, %v1756
        %1758 = vmatmul.f32.gmra.mxu0 %v1414
        %v1759 = vpop.f32.mrf.mxu0
        %v1760 = vadd.f32 0.0, %v1759
        %1761 = vmatmul.f32.gmra.mxu0 %v1415
        %v1762 = vpop.f32.mrf.mxu0
        %v1763 = vadd.f32 0.0, %v1762
        %1764 = vdwg.mxu0
        %1765 = vmatpush.msra.mxu0 %v1556
        %1766 = vmatpush.msra.mxu0 %v1547
        %1767 = vmatpush.msra.mxu0 %v1538
        %1768 = vmatpush.msra.mxu0 %v1529
        %1769 = vmatpush.msra.mxu0 %v1520
        %1770 = vmatpush.msra.mxu0 %v1511
        %1771 = vmatpush.msra.mxu0 %v1502
        %1772 = vmatpush.msra.mxu0 %v1493
        %1773 = vmatpush.msra.mxu0 %v1484
        %1774 = vmatpush.msra.mxu0 %v1475
        %1775 = vmatpush.msra.mxu0 %v1466
        %1776 = vmatpush.msra.mxu0 %v1457
        %1777 = vmatpush.msra.mxu0 %v1448
        %1778 = vmatpush.msra.mxu0 %v1439
        %1779 = vmatpush.msra.mxu0 %v1430
        %1780 = vmatpush.msra.mxu0 %v1421
        %1781 = vmatmul.f32.gmra.mxu0 %v1408
        %v1782 = vpop.f32.mrf.mxu0
        %v1783 = vadd.f32 0.0, %v1782
        %1784 = vmatmul.f32.gmra.mxu0 %v1409
        %v1785 = vpop.f32.mrf.mxu0
        %v1786 = vadd.f32 0.0, %v1785
        %1787 = vmatmul.f32.gmra.mxu0 %v1410
        %v1788 = vpop.f32.mrf.mxu0
        %v1789 = vadd.f32 0.0, %v1788
        %1790 = vmatmul.f32.gmra.mxu0 %v1411
        %v1791 = vpop.f32.mrf.mxu0
        %v1792 = vadd.f32 0.0, %v1791
        %1793 = vmatmul.f32.gmra.mxu0 %v1412
        %v1794 = vpop.f32.mrf.mxu0
        %v1795 = vadd.f32 0.0, %v1794
        %1796 = vmatmul.f32.gmra.mxu0 %v1413
        %v1797 = vpop.f32.mrf.mxu0
        %v1798 = vadd.f32 0.0, %v1797
        %1799 = vmatmul.f32.gmra.mxu0 %v1414
        %v1800 = vpop.f32.mrf.mxu0
        %v1801 = vadd.f32 0.0, %v1800
        %1802 = vmatmul.f32.gmra.mxu0 %v1415
        %v1803 = vpop.f32.mrf.mxu0
        %v1804 = vadd.f32 0.0, %v1803
        %1805 = vdwg.mxu0
        %1806 = vmatpush.msra.mxu0 %v1557
        %1807 = vmatpush.msra.mxu0 %v1548
        %1808 = vmatpush.msra.mxu0 %v1539
        %1809 = vmatpush.msra.mxu0 %v1530
        %1810 = vmatpush.msra.mxu0 %v1521
        %1811 = vmatpush.msra.mxu0 %v1512
        %1812 = vmatpush.msra.mxu0 %v1503
        %1813 = vmatpush.msra.mxu0 %v1494
        %1814 = vmatpush.msra.mxu0 %v1485
        %1815 = vmatpush.msra.mxu0 %v1476
        %1816 = vmatpush.msra.mxu0 %v1467
        %1817 = vmatpush.msra.mxu0 %v1458
        %1818 = vmatpush.msra.mxu0 %v1449
        %1819 = vmatpush.msra.mxu0 %v1440
        %1820 = vmatpush.msra.mxu0 %v1431
        %1821 = vmatpush.msra.mxu0 %v1422
        %1822 = vmatmul.f32.gmra.mxu0 %v1408
        %v1823 = vpop.f32.mrf.mxu0
        %v1824 = vadd.f32 0.0, %v1823
        %1825 = vmatmul.f32.gmra.mxu0 %v1409
        %v1826 = vpop.f32.mrf.mxu0
        %v1827 = vadd.f32 0.0, %v1826
        %1828 = vmatmul.f32.gmra.mxu0 %v1410
        %v1829 = vpop.f32.mrf.mxu0
        %v1830 = vadd.f32 0.0, %v1829
        %1831 = vmatmul.f32.gmra.mxu0 %v1411
        %v1832 = vpop.f32.mrf.mxu0
        %v1833 = vadd.f32 0.0, %v1832
        %1834 = vmatmul.f32.gmra.mxu0 %v1412
        %v1835 = vpop.f32.mrf.mxu0
        %v1836 = vadd.f32 0.0, %v1835
        %1837 = vmatmul.f32.gmra.mxu0 %v1413
        %v1838 = vpop.f32.mrf.mxu0
        %v1839 = vadd.f32 0.0, %v1838
        %1840 = vmatmul.f32.gmra.mxu0 %v1414
        %v1841 = vpop.f32.mrf.mxu0
        %v1842 = vadd.f32 0.0, %v1841
        %1843 = vmatmul.f32.gmra.mxu0 %v1415
        %v1844 = vpop.f32.mrf.mxu0
        %v1845 = vadd.f32 0.0, %v1844
        %1846 = vdwg.mxu0
        %1847 = vmatpush.msra.mxu0 %v1558
        %1848 = vmatpush.msra.mxu0 %v1549
        %1849 = vmatpush.msra.mxu0 %v1540
        %1850 = vmatpush.msra.mxu0 %v1531
        %1851 = vmatpush.msra.mxu0 %v1522
        %1852 = vmatpush.msra.mxu0 %v1513
        %1853 = vmatpush.msra.mxu0 %v1504
        %1854 = vmatpush.msra.mxu0 %v1495
        %1855 = vmatpush.msra.mxu0 %v1486
        %1856 = vmatpush.msra.mxu0 %v1477
        %1857 = vmatpush.msra.mxu0 %v1468
        %1858 = vmatpush.msra.mxu0 %v1459
        %1859 = vmatpush.msra.mxu0 %v1450
        %1860 = vmatpush.msra.mxu0 %v1441
        %1861 = vmatpush.msra.mxu0 %v1432
        %1862 = vmatpush.msra.mxu0 %v1423
        %1863 = vmatmul.f32.gmra.mxu0 %v1408
        %v1864 = vpop.f32.mrf.mxu0
        %v1865 = vadd.f32 0.0, %v1864
        %1866 = vmatmul.f32.gmra.mxu0 %v1409
        %v1867 = vpop.f32.mrf.mxu0
        %v1868 = vadd.f32 0.0, %v1867
        %1869 = vmatmul.f32.gmra.mxu0 %v1410
        %v1870 = vpop.f32.mrf.mxu0
        %v1871 = vadd.f32 0.0, %v1870
        %1872 = vmatmul.f32.gmra.mxu0 %v1411
        %v1873 = vpop.f32.mrf.mxu0
        %v1874 = vadd.f32 0.0, %v1873
        %1875 = vmatmul.f32.gmra.mxu0 %v1412
        %v1876 = vpop.f32.mrf.mxu0
        %v1877 = vadd.f32 0.0, %v1876
        %1878 = vmatmul.f32.gmra.mxu0 %v1413
        %v1879 = vpop.f32.mrf.mxu0
        %v1880 = vadd.f32 0.0, %v1879
        %1881 = vmatmul.f32.gmra.mxu0 %v1414
        %v1882 = vpop.f32.mrf.mxu0
        %v1883 = vadd.f32 0.0, %v1882
        %1884 = vmatmul.f32.gmra.mxu0 %v1415
        %v1885 = vpop.f32.mrf.mxu0
        %v1886 = vadd.f32 0.0, %v1885
        %1887 = vdwg.mxu0
        %1888 = vmatpush.msra.mxu0 %v1559
        %1889 = vmatpush.msra.mxu0 %v1550
        %1890 = vmatpush.msra.mxu0 %v1541
        %1891 = vmatpush.msra.mxu0 %v1532
        %1892 = vmatpush.msra.mxu0 %v1523
        %1893 = vmatpush.msra.mxu0 %v1514
        %1894 = vmatpush.msra.mxu0 %v1505
        %1895 = vmatpush.msra.mxu0 %v1496
        %1896 = vmatpush.msra.mxu0 %v1487
        %1897 = vmatpush.msra.mxu0 %v1478
        %1898 = vmatpush.msra.mxu0 %v1469
        %1899 = vmatpush.msra.mxu0 %v1460
        %1900 = vmatpush.msra.mxu0 %v1451
        %1901 = vmatpush.msra.mxu0 %v1442
        %1902 = vmatpush.msra.mxu0 %v1433
        %1903 = vmatpush.msra.mxu0 %v1424
        %1904 = vmatmul.f32.gmra.mxu0 %v1408
        %v1905 = vpop.f32.mrf.mxu0
        %v1906 = vadd.f32 0.0, %v1905
        %1907 = vmatmul.f32.gmra.mxu0 %v1409
        %v1908 = vpop.f32.mrf.mxu0
        %v1909 = vadd.f32 0.0, %v1908
        %1910 = vmatmul.f32.gmra.mxu0 %v1410
        %v1911 = vpop.f32.mrf.mxu0
        %v1912 = vadd.f32 0.0, %v1911
        %1913 = vmatmul.f32.gmra.mxu0 %v1411
        %v1914 = vpop.f32.mrf.mxu0
        %v1915 = vadd.f32 0.0, %v1914
        %1916 = vmatmul.f32.gmra.mxu0 %v1412
        %v1917 = vpop.f32.mrf.mxu0
        %v1918 = vadd.f32 0.0, %v1917
        %1919 = vmatmul.f32.gmra.mxu0 %v1413
        %v1920 = vpop.f32.mrf.mxu0
        %v1921 = vadd.f32 0.0, %v1920
        %1922 = vmatmul.f32.gmra.mxu0 %v1414
        %v1923 = vpop.f32.mrf.mxu0
        %v1924 = vadd.f32 0.0, %v1923
        %1925 = vmatmul.f32.gmra.mxu0 %v1415
        %v1926 = vpop.f32.mrf.mxu0
        %v1927 = vadd.f32 0.0, %v1926
        %1928 = vdwg.mxu0
        %1929 = vst [vmem:[#allocation2 + $0x48] sm:$0xff] %v1578
        %1930 = vst [vmem:[#allocation2 + $0x50] sm:$0xff] %v1619
        %1931 = vst [vmem:[#allocation2 + $0x58] sm:$0xff] %v1660
        %1932 = vst [vmem:[#allocation2 + $0x60] sm:$0xff] %v1701
        %1933 = vst [vmem:[#allocation2 + $0x68] sm:$0xff] %v1742
        %1934 = vst [vmem:[#allocation2 + $0x70] sm:$0xff] %v1783
        %1935 = vst [vmem:[#allocation2 + $0x78] sm:$0xff] %v1824
        %1936 = vst [vmem:[#allocation2 + $0x80] sm:$0xff] %v1865
        %1937 = vst [vmem:[#allocation2 + $0x88] sm:$0xff] %v1906
        %1938 = vst [vmem:[#allocation2 + $0x90] sm:$0xff] %v1581
        %1939 = vst [vmem:[#allocation2 + $0x98] sm:$0xff] %v1622
        %1940 = vst [vmem:[#allocation2 + $0xa0] sm:$0xff] %v1663
        %1941 = vst [vmem:[#allocation2 + $0xa8] sm:$0xff] %v1704
        %1942 = vst [vmem:[#allocation2 + $0xb0] sm:$0xff] %v1745
        %1943 = vst [vmem:[#allocation2 + $0xb8] sm:$0xff] %v1786
        %1944 = vst [vmem:[#allocation2 + $0xc0] sm:$0xff] %v1827
        %1945 = vst [vmem:[#allocation2 + $0xc8] sm:$0xff] %v1868
        %1946 = vst [vmem:[#allocation2 + $0xd0] sm:$0xff] %v1909
        %1947 = vst [vmem:[#allocation2 + $0xd8] sm:$0xff] %v1584
        %1948 = vst [vmem:[#allocation2 + $0xe0] sm:$0xff] %v1625
        %1949 = vst [vmem:[#allocation2 + $0xe8] sm:$0xff] %v1666
        %1950 = vst [vmem:[#allocation2 + $0xf0] sm:$0xff] %v1707
        %1951 = vst [vmem:[#allocation2 + $0xf8] sm:$0xff] %v1748
        %1952 = vst [vmem:[#allocation2 + $0x100] sm:$0xff] %v1789
        %1953 = vst [vmem:[#allocation2 + $0x108] sm:$0xff] %v1830
        %1954 = vst [vmem:[#allocation2 + $0x110] sm:$0xff] %v1871
        %1955 = vst [vmem:[#allocation2 + $0x118] sm:$0xff] %v1912
        %1956 = vst [vmem:[#allocation2 + $0x120] sm:$0xff] %v1587
        %1957 = vst [vmem:[#allocation2 + $0x128] sm:$0xff] %v1628
        %1958 = vst [vmem:[#allocation2 + $0x130] sm:$0xff] %v1669
        %1959 = vst [vmem:[#allocation2 + $0x138] sm:$0xff] %v1710
        %1960 = vst [vmem:[#allocation2 + $0x140] sm:$0xff] %v1751
        %1961 = vst [vmem:[#allocation2 + $0x148] sm:$0xff] %v1792
        %1962 = vst [vmem:[#allocation2 + $0x150] sm:$0xff] %v1833
        %1963 = vst [vmem:[#allocation2 + $0x158] sm:$0xff] %v1874
        %1964 = vst [vmem:[#allocation2 + $0x160] sm:$0xff] %v1915
        %1965 = vst [vmem:[#allocation2 + $0x168] sm:$0xff] %v1590
        %1966 = vst [vmem:[#allocation2 + $0x170] sm:$0xff] %v1631
        %1967 = vst [vmem:[#allocation2 + $0x178] sm:$0xff] %v1672
        %1968 = vst [vmem:[#allocation2 + $0x180] sm:$0xff] %v1713
        %1969 = vst [vmem:[#allocation2 + $0x188] sm:$0xff] %v1754
        %1970 = vst [vmem:[#allocation2 + $0x190] sm:$0xff] %v1795
        %1971 = vst [vmem:[#allocation2 + $0x198] sm:$0xff] %v1836
        %1972 = vst [vmem:[#allocation2 + $0x1a0] sm:$0xff] %v1877
        %1973 = vst [vmem:[#allocation2 + $0x1a8] sm:$0xff] %v1918
        %1974 = vst [vmem:[#allocation2 + $0x1b0] sm:$0xff] %v1593
        %1975 = vst [vmem:[#allocation2 + $0x1b8] sm:$0xff] %v1634
        %1976 = vst [vmem:[#allocation2 + $0x1c0] sm:$0xff] %v1675
        %1977 = vst [vmem:[#allocation2 + $0x1c8] sm:$0xff] %v1716
        %1978 = vst [vmem:[#allocation2 + $0x1d0] sm:$0xff] %v1757
        %1979 = vst [vmem:[#allocation2 + $0x1d8] sm:$0xff] %v1798
        %1980 = vst [vmem:[#allocation2 + $0x1e0] sm:$0xff] %v1839
        %1981 = vst [vmem:[#allocation2 + $0x1e8] sm:$0xff] %v1880
        %1982 = vst [vmem:[#allocation2 + $0x1f0] sm:$0xff] %v1921
        %1983 = vst [vmem:[#allocation2 + $0x1f8] sm:$0xff] %v1596
        %1984 = vst [vmem:[#allocation2 + $0x200] sm:$0xff] %v1637
        %1985 = vst [vmem:[#allocation2 + $0x208] sm:$0xff] %v1678
        %1986 = vst [vmem:[#allocation2 + $0x210] sm:$0xff] %v1719
        %1987 = vst [vmem:[#allocation2 + $0x218] sm:$0xff] %v1760
        %1988 = vst [vmem:[#allocation2 + $0x220] sm:$0xff] %v1801
        %1989 = vst [vmem:[#allocation2 + $0x228] sm:$0xff] %v1842
        %1990 = vst [vmem:[#allocation2 + $0x230] sm:$0xff] %v1883
        %1991 = vst [vmem:[#allocation2 + $0x238] sm:$0xff] %v1924
        %1992 = vst [vmem:[#allocation2 + $0x240] sm:$0xff] %v1599
        %1993 = vst [vmem:[#allocation2 + $0x248] sm:$0xff] %v1640
        %1994 = vst [vmem:[#allocation2 + $0x250] sm:$0xff] %v1681
        %1995 = vst [vmem:[#allocation2 + $0x258] sm:$0xff] %v1722
        %1996 = vst [vmem:[#allocation2 + $0x260] sm:$0xff] %v1763
        %1997 = vst [vmem:[#allocation2 + $0x268] sm:$0xff] %v1804
        %1998 = vst [vmem:[#allocation2 + $0x270] sm:$0xff] %v1845
        %1999 = vst [vmem:[#allocation2 + $0x278] sm:$0xff] %v1886
        %2000 = vst [vmem:[#allocation2 + $0x280] sm:$0xff] %v1927
        %v2001 = vlaneseq
        %v2002 = vshrl.u32 %v2001, 7
        %v2003 = vadd.s32 %v2002, 8
        %v2004 = vadd.s32 %v2002, 16
        %v2005 = vadd.s32 %v2002, 24
        %v2006 = vld [vmem:[#allocation2] sm:$0xf0]
        %v2007 = vld [vmem:[#allocation2 + $0x48] sm:$0xff]
        %v2008 = vld [vmem:[#allocation2 + $0x90] sm:$0xff]
        %v2009 = vld [vmem:[#allocation2 + $0xd8] sm:$0xff]
        %v2010 = vld [vmem:[#allocation2 + $0x120] sm:$0xff]
        %v2011 = vld [vmem:[#allocation2 + $0x168] sm:$0xff]
        %v2012 = vld [vmem:[#allocation2 + $0x1b0] sm:$0xff]
        %v2013 = vld [vmem:[#allocation2 + $0x1f8] sm:$0xff]
        %v2014 = vld [vmem:[#allocation2 + $0x240] sm:$0xf]
        %vm2015 = vcmp.ge.s32.totalorder %v2002, 4
        %vm2016 = vcmp.ge.s32.totalorder %v2003, 4
        %vm2017 = vcmp.ge.s32.totalorder %v2004, 4
        %vm2018 = vcmp.ge.s32.totalorder %v2005, 4
        %vm2019 = vcmp.lt.s32.totalorder %v2002, 36
        %vm2020 = vcmp.lt.s32.totalorder %v2003, 36
        %vm2021 = vcmp.lt.s32.totalorder %v2004, 36
        %vm2022 = vcmp.lt.s32.totalorder %v2005, 36
        %vm2023 = vmand %vm2015, %vm2019
        %vm2024 = vmand %vm2016, %vm2020
        %vm2025 = vmand %vm2017, %vm2021
        %vm2026 = vmand %vm2018, %vm2022
        %vm2036 = vcmask 1043456
        %v2037 = vrot.slane %v2006, 4
        %v2038 = vrot.slane %v2007, 4
        %v2039 = vsel %vm2036, %v2037, %v2038
        %v2040 = vrot.slane %v2008, 4
        %v2041 = vsel %vm2036, %v2038, %v2040
        %v2042 = vrot.slane %v2009, 4
        %v2043 = vsel %vm2036, %v2040, %v2042
        %v2044 = vrot.slane %v2010, 4
        %v2045 = vsel %vm2036, %v2042, %v2044
        %v2046 = vrot.slane %v2011, 4
        %v2047 = vsel %vm2036, %v2044, %v2046
        %v2048 = vrot.slane %v2012, 4
        %v2049 = vsel %vm2036, %v2046, %v2048
        %v2050 = vrot.slane %v2013, 4
        %v2051 = vsel %vm2036, %v2048, %v2050
        %v2052 = vrot.slane %v2014, 4
        %v2053 = vsel %vm2036, %v2050, %v2052
        %v2062 = vsel %vm2023, %v2039, 0.0
        %v2063 = vsel %vm2024, %v2041, 0.0
        %v2064 = vsel %vm2025, %v2043, 0.0
        %v2065 = vsel %vm2026, %v2045, 0.0
        %v2066 = vsel %vm2023, %v2047, 0.0
        %v2067 = vsel %vm2024, %v2049, 0.0
        %v2068 = vsel %vm2025, %v2051, 0.0
        %v2069 = vsel %vm2026, %v2053, 0.0
        %v2070 = vadd.f32 %v2062, 0.0
        %v2071 = vadd.f32 %v2063, 0.0
        %v2072 = vadd.f32 %v2064, 0.0
        %v2073 = vadd.f32 %v2065, 0.0
        %v2074 = vadd.f32 %v2066, 0.0
        %v2075 = vadd.f32 %v2067, 0.0
        %v2076 = vadd.f32 %v2068, 0.0
        %v2077 = vadd.f32 %v2069, 0.0
        %v2078 = vld [vmem:[#allocation2 + $0x8] sm:$0xe0]
        %v2079 = vld [vmem:[#allocation2 + $0x50] sm:$0xff]
        %v2080 = vld [vmem:[#allocation2 + $0x98] sm:$0xff]
        %v2081 = vld [vmem:[#allocation2 + $0xe0] sm:$0xff]
        %v2082 = vld [vmem:[#allocation2 + $0x128] sm:$0xff]
        %v2083 = vld [vmem:[#allocation2 + $0x170] sm:$0xff]
        %v2084 = vld [vmem:[#allocation2 + $0x1b8] sm:$0xff]
        %v2085 = vld [vmem:[#allocation2 + $0x200] sm:$0xff]
        %v2086 = vld [vmem:[#allocation2 + $0x248] sm:$0x1f]
        %vm2087 = vcmp.ge.s32.totalorder %v2002, 3
        %vm2088 = vcmp.ge.s32.totalorder %v2003, 3
        %vm2089 = vcmp.ge.s32.totalorder %v2004, 3
        %vm2090 = vcmp.ge.s32.totalorder %v2005, 3
        %vm2091 = vcmp.lt.s32.totalorder %v2002, 35
        %vm2092 = vcmp.lt.s32.totalorder %v2003, 35
        %vm2093 = vcmp.lt.s32.totalorder %v2004, 35
        %vm2094 = vcmp.lt.s32.totalorder %v2005, 35
        %vm2095 = vmand %vm2087, %vm2091
        %vm2096 = vmand %vm2088, %vm2092
        %vm2097 = vmand %vm2089, %vm2093
        %vm2098 = vmand %vm2090, %vm2094
        %vm2108 = vcmask 1042432
        %v2109 = vrot.slane %v2078, 5
        %v2110 = vrot.slane %v2079, 5
        %v2111 = vsel %vm2108, %v2109, %v2110
        %v2112 = vrot.slane %v2080, 5
        %v2113 = vsel %vm2108, %v2110, %v2112
        %v2114 = vrot.slane %v2081, 5
        %v2115 = vsel %vm2108, %v2112, %v2114
        %v2116 = vrot.slane %v2082, 5
        %v2117 = vsel %vm2108, %v2114, %v2116
        %v2118 = vrot.slane %v2083, 5
        %v2119 = vsel %vm2108, %v2116, %v2118
        %v2120 = vrot.slane %v2084, 5
        %v2121 = vsel %vm2108, %v2118, %v2120
        %v2122 = vrot.slane %v2085, 5
        %v2123 = vsel %vm2108, %v2120, %v2122
        %v2124 = vrot.slane %v2086, 5
        %v2125 = vsel %vm2108, %v2122, %v2124
        %v2134 = vsel %vm2095, %v2111, 0.0
        %v2135 = vsel %vm2096, %v2113, 0.0
        %v2136 = vsel %vm2097, %v2115, 0.0
        %v2137 = vsel %vm2098, %v2117, 0.0
        %v2138 = vsel %vm2095, %v2119, 0.0
        %v2139 = vsel %vm2096, %v2121, 0.0
        %v2140 = vsel %vm2097, %v2123, 0.0
        %v2141 = vsel %vm2098, %v2125, 0.0
        %v2142 = vadd.f32 %v2070, %v2134
        %v2143 = vadd.f32 %v2071, %v2135
        %v2144 = vadd.f32 %v2072, %v2136
        %v2145 = vadd.f32 %v2073, %v2137
        %v2146 = vadd.f32 %v2074, %v2138
        %v2147 = vadd.f32 %v2075, %v2139
        %v2148 = vadd.f32 %v2076, %v2140
        %v2149 = vadd.f32 %v2077, %v2141
        %v2150 = vld [vmem:[#allocation2 + $0x10] sm:$0xc0]
        %v2151 = vld [vmem:[#allocation2 + $0x58] sm:$0xff]
        %v2152 = vld [vmem:[#allocation2 + $0xa0] sm:$0xff]
        %v2153 = vld [vmem:[#allocation2 + $0xe8] sm:$0xff]
        %v2154 = vld [vmem:[#allocation2 + $0x130] sm:$0xff]
        %v2155 = vld [vmem:[#allocation2 + $0x178] sm:$0xff]
        %v2156 = vld [vmem:[#allocation2 + $0x1c0] sm:$0xff]
        %v2157 = vld [vmem:[#allocation2 + $0x208] sm:$0xff]
        %v2158 = vld [vmem:[#allocation2 + $0x250] sm:$0x3f]
        %vm2159 = vcmp.ge.s32.totalorder %v2002, 2
        %vm2160 = vcmp.ge.s32.totalorder %v2003, 2
        %vm2161 = vcmp.ge.s32.totalorder %v2004, 2
        %vm2162 = vcmp.ge.s32.totalorder %v2005, 2
        %vm2163 = vcmp.lt.s32.totalorder %v2002, 34
        %vm2164 = vcmp.lt.s32.totalorder %v2003, 34
        %vm2165 = vcmp.lt.s32.totalorder %v2004, 34
        %vm2166 = vcmp.lt.s32.totalorder %v2005, 34
        %vm2167 = vmand %vm2159, %vm2163
        %vm2168 = vmand %vm2160, %vm2164
        %vm2169 = vmand %vm2161, %vm2165
        %vm2170 = vmand %vm2162, %vm2166
        %vm2180 = vcmask 1041408
        %v2181 = vrot.slane %v2150, 6
        %v2182 = vrot.slane %v2151, 6
        %v2183 = vsel %vm2180, %v2181, %v2182
        %v2184 = vrot.slane %v2152, 6
        %v2185 = vsel %vm2180, %v2182, %v2184
        %v2186 = vrot.slane %v2153, 6
        %v2187 = vsel %vm2180, %v2184, %v2186
        %v2188 = vrot.slane %v2154, 6
        %v2189 = vsel %vm2180, %v2186, %v2188
        %v2190 = vrot.slane %v2155, 6
        %v2191 = vsel %vm2180, %v2188, %v2190
        %v2192 = vrot.slane %v2156, 6
        %v2193 = vsel %vm2180, %v2190, %v2192
        %v2194 = vrot.slane %v2157, 6
        %v2195 = vsel %vm2180, %v2192, %v2194
        %v2196 = vrot.slane %v2158, 6
        %v2197 = vsel %vm2180, %v2194, %v2196
        %v2206 = vsel %vm2167, %v2183, 0.0
        %v2207 = vsel %vm2168, %v2185, 0.0
        %v2208 = vsel %vm2169, %v2187, 0.0
        %v2209 = vsel %vm2170, %v2189, 0.0
        %v2210 = vsel %vm2167, %v2191, 0.0
        %v2211 = vsel %vm2168, %v2193, 0.0
        %v2212 = vsel %vm2169, %v2195, 0.0
        %v2213 = vsel %vm2170, %v2197, 0.0
        %v2214 = vadd.f32 %v2142, %v2206
        %v2215 = vadd.f32 %v2143, %v2207
        %v2216 = vadd.f32 %v2144, %v2208
        %v2217 = vadd.f32 %v2145, %v2209
        %v2218 = vadd.f32 %v2146, %v2210
        %v2219 = vadd.f32 %v2147, %v2211
        %v2220 = vadd.f32 %v2148, %v2212
        %v2221 = vadd.f32 %v2149, %v2213
        %v2222 = vld [vmem:[#allocation2 + $0x18] sm:$0x80]
        %v2223 = vld [vmem:[#allocation2 + $0x60] sm:$0xff]
        %v2224 = vld [vmem:[#allocation2 + $0xa8] sm:$0xff]
        %v2225 = vld [vmem:[#allocation2 + $0xf0] sm:$0xff]
        %v2226 = vld [vmem:[#allocation2 + $0x138] sm:$0xff]
        %v2227 = vld [vmem:[#allocation2 + $0x180] sm:$0xff]
        %v2228 = vld [vmem:[#allocation2 + $0x1c8] sm:$0xff]
        %v2229 = vld [vmem:[#allocation2 + $0x210] sm:$0xff]
        %v2230 = vld [vmem:[#allocation2 + $0x258] sm:$0x7f]
        %vm2231 = vcmp.ge.s32.totalorder %v2002, 1
        %vm2232 = vcmp.ge.s32.totalorder %v2003, 1
        %vm2233 = vcmp.ge.s32.totalorder %v2004, 1
        %vm2234 = vcmp.ge.s32.totalorder %v2005, 1
        %vm2235 = vcmp.lt.s32.totalorder %v2002, 33
        %vm2236 = vcmp.lt.s32.totalorder %v2003, 33
        %vm2237 = vcmp.lt.s32.totalorder %v2004, 33
        %vm2238 = vcmp.lt.s32.totalorder %v2005, 33
        %vm2239 = vmand %vm2231, %vm2235
        %vm2240 = vmand %vm2232, %vm2236
        %vm2241 = vmand %vm2233, %vm2237
        %vm2242 = vmand %vm2234, %vm2238
        %vm2252 = vcmask 1040384
        %v2253 = vrot.slane %v2222, 7
        %v2254 = vrot.slane %v2223, 7
        %v2255 = vsel %vm2252, %v2253, %v2254
        %v2256 = vrot.slane %v2224, 7
        %v2257 = vsel %vm2252, %v2254, %v2256
        %v2258 = vrot.slane %v2225, 7
        %v2259 = vsel %vm2252, %v2256, %v2258
        %v2260 = vrot.slane %v2226, 7
        %v2261 = vsel %vm2252, %v2258, %v2260
        %v2262 = vrot.slane %v2227, 7
        %v2263 = vsel %vm2252, %v2260, %v2262
        %v2264 = vrot.slane %v2228, 7
        %v2265 = vsel %vm2252, %v2262, %v2264
        %v2266 = vrot.slane %v2229, 7
        %v2267 = vsel %vm2252, %v2264, %v2266
        %v2268 = vrot.slane %v2230, 7
        %v2269 = vsel %vm2252, %v2266, %v2268
        %v2278 = vsel %vm2239, %v2255, 0.0
        %v2279 = vsel %vm2240, %v2257, 0.0
        %v2280 = vsel %vm2241, %v2259, 0.0
        %v2281 = vsel %vm2242, %v2261, 0.0
        %v2282 = vsel %vm2239, %v2263, 0.0
        %v2283 = vsel %vm2240, %v2265, 0.0
        %v2284 = vsel %vm2241, %v2267, 0.0
        %v2285 = vsel %vm2242, %v2269, 0.0
        %v2286 = vadd.f32 %v2214, %v2278
        %v2287 = vadd.f32 %v2215, %v2279
        %v2288 = vadd.f32 %v2216, %v2280
        %v2289 = vadd.f32 %v2217, %v2281
        %v2290 = vadd.f32 %v2218, %v2282
        %v2291 = vadd.f32 %v2219, %v2283
        %v2292 = vadd.f32 %v2220, %v2284
        %v2293 = vadd.f32 %v2221, %v2285
        %v2294 = vld [vmem:[#allocation2 + $0x68] sm:$0xff]
        %v2295 = vld [vmem:[#allocation2 + $0xb0] sm:$0xff]
        %v2296 = vld [vmem:[#allocation2 + $0xf8] sm:$0xff]
        %v2297 = vld [vmem:[#allocation2 + $0x140] sm:$0xff]
        %v2298 = vld [vmem:[#allocation2 + $0x188] sm:$0xff]
        %v2299 = vld [vmem:[#allocation2 + $0x1d0] sm:$0xff]
        %v2300 = vld [vmem:[#allocation2 + $0x218] sm:$0xff]
        %v2301 = vld [vmem:[#allocation2 + $0x260] sm:$0xff]
        %v2302 = vadd.f32 %v2286, %v2294
        %v2303 = vadd.f32 %v2287, %v2295
        %v2304 = vadd.f32 %v2288, %v2296
        %v2305 = vadd.f32 %v2289, %v2297
        %v2306 = vadd.f32 %v2290, %v2298
        %v2307 = vadd.f32 %v2291, %v2299
        %v2308 = vadd.f32 %v2292, %v2300
        %v2309 = vadd.f32 %v2293, %v2301
        %v2310 = vld [vmem:[#allocation2 + $0x70] sm:$0xfe]
        %v2311 = vld [vmem:[#allocation2 + $0xb8] sm:$0xff]
        %v2312 = vld [vmem:[#allocation2 + $0x100] sm:$0xff]
        %v2313 = vld [vmem:[#allocation2 + $0x148] sm:$0xff]
        %v2314 = vld [vmem:[#allocation2 + $0x190] sm:$0xff]
        %v2315 = vld [vmem:[#allocation2 + $0x1d8] sm:$0xff]
        %v2316 = vld [vmem:[#allocation2 + $0x220] sm:$0xff]
        %v2317 = vld [vmem:[#allocation2 + $0x268] sm:$0xff]
        %v2318 = vld [vmem:[#allocation2 + $0x2b0] sm:$0x1]
        %vm2319 = vcmp.ge.s32.totalorder %v2002, 4294967295
        %vm2320 = vcmp.ge.s32.totalorder %v2003, 4294967295
        %vm2321 = vcmp.ge.s32.totalorder %v2004, 4294967295
        %vm2322 = vcmp.ge.s32.totalorder %v2005, 4294967295
        %vm2323 = vcmp.lt.s32.totalorder %v2002, 31
        %vm2324 = vcmp.lt.s32.totalorder %v2003, 31
        %vm2325 = vcmp.lt.s32.totalorder %v2004, 31
        %vm2326 = vcmp.lt.s32.totalorder %v2005, 31
        %vm2327 = vmand %vm2319, %vm2323
        %vm2328 = vmand %vm2320, %vm2324
        %vm2329 = vmand %vm2321, %vm2325
        %vm2330 = vmand %vm2322, %vm2326
        %vm2340 = vcmask 1046528
        %v2341 = vrot.slane %v2310, 1
        %v2342 = vrot.slane %v2311, 1
        %v2343 = vsel %vm2340, %v2341, %v2342
        %v2344 = vrot.slane %v2312, 1
        %v2345 = vsel %vm2340, %v2342, %v2344
        %v2346 = vrot.slane %v2313, 1
        %v2347 = vsel %vm2340, %v2344, %v2346
        %v2348 = vrot.slane %v2314, 1
        %v2349 = vsel %vm2340, %v2346, %v2348
        %v2350 = vrot.slane %v2315, 1
        %v2351 = vsel %vm2340, %v2348, %v2350
        %v2352 = vrot.slane %v2316, 1
        %v2353 = vsel %vm2340, %v2350, %v2352
        %v2354 = vrot.slane %v2317, 1
        %v2355 = vsel %vm2340, %v2352, %v2354
        %v2356 = vrot.slane %v2318, 1
        %v2357 = vsel %vm2340, %v2354, %v2356
        %v2366 = vsel %vm2327, %v2343, 0.0
        %v2367 = vsel %vm2328, %v2345, 0.0
        %v2368 = vsel %vm2329, %v2347, 0.0
        %v2369 = vsel %vm2330, %v2349, 0.0
        %v2370 = vsel %vm2327, %v2351, 0.0
        %v2371 = vsel %vm2328, %v2353, 0.0
        %v2372 = vsel %vm2329, %v2355, 0.0
        %v2373 = vsel %vm2330, %v2357, 0.0
        %v2374 = vadd.f32 %v2302, %v2366
        %v2375 = vadd.f32 %v2303, %v2367
        %v2376 = vadd.f32 %v2304, %v2368
        %v2377 = vadd.f32 %v2305, %v2369
        %v2378 = vadd.f32 %v2306, %v2370
        %v2379 = vadd.f32 %v2307, %v2371
        %v2380 = vadd.f32 %v2308, %v2372
        %v2381 = vadd.f32 %v2309, %v2373
        %v2382 = vld [vmem:[#allocation2 + $0x78] sm:$0xfc]
        %v2383 = vld [vmem:[#allocation2 + $0xc0] sm:$0xff]
        %v2384 = vld [vmem:[#allocation2 + $0x108] sm:$0xff]
        %v2385 = vld [vmem:[#allocation2 + $0x150] sm:$0xff]
        %v2386 = vld [vmem:[#allocation2 + $0x198] sm:$0xff]
        %v2387 = vld [vmem:[#allocation2 + $0x1e0] sm:$0xff]
        %v2388 = vld [vmem:[#allocation2 + $0x228] sm:$0xff]
        %v2389 = vld [vmem:[#allocation2 + $0x270] sm:$0xff]
        %v2390 = vld [vmem:[#allocation2 + $0x2b8] sm:$0x3]
        %vm2391 = vcmp.ge.s32.totalorder %v2002, 4294967294
        %vm2392 = vcmp.ge.s32.totalorder %v2003, 4294967294
        %vm2393 = vcmp.ge.s32.totalorder %v2004, 4294967294
        %vm2394 = vcmp.ge.s32.totalorder %v2005, 4294967294
        %vm2395 = vcmp.lt.s32.totalorder %v2002, 30
        %vm2396 = vcmp.lt.s32.totalorder %v2003, 30
        %vm2397 = vcmp.lt.s32.totalorder %v2004, 30
        %vm2398 = vcmp.lt.s32.totalorder %v2005, 30
        %vm2399 = vmand %vm2391, %vm2395
        %vm2400 = vmand %vm2392, %vm2396
        %vm2401 = vmand %vm2393, %vm2397
        %vm2402 = vmand %vm2394, %vm2398
        %vm2412 = vcmask 1045504
        %v2413 = vrot.slane %v2382, 2
        %v2414 = vrot.slane %v2383, 2
        %v2415 = vsel %vm2412, %v2413, %v2414
        %v2416 = vrot.slane %v2384, 2
        %v2417 = vsel %vm2412, %v2414, %v2416
        %v2418 = vrot.slane %v2385, 2
        %v2419 = vsel %vm2412, %v2416, %v2418
        %v2420 = vrot.slane %v2386, 2
        %v2421 = vsel %vm2412, %v2418, %v2420
        %v2422 = vrot.slane %v2387, 2
        %v2423 = vsel %vm2412, %v2420, %v2422
        %v2424 = vrot.slane %v2388, 2
        %v2425 = vsel %vm2412, %v2422, %v2424
        %v2426 = vrot.slane %v2389, 2
        %v2427 = vsel %vm2412, %v2424, %v2426
        %v2428 = vrot.slane %v2390, 2
        %v2429 = vsel %vm2412, %v2426, %v2428
        %v2438 = vsel %vm2399, %v2415, 0.0
        %v2439 = vsel %vm2400, %v2417, 0.0
        %v2440 = vsel %vm2401, %v2419, 0.0
        %v2441 = vsel %vm2402, %v2421, 0.0
        %v2442 = vsel %vm2399, %v2423, 0.0
        %v2443 = vsel %vm2400, %v2425, 0.0
        %v2444 = vsel %vm2401, %v2427, 0.0
        %v2445 = vsel %vm2402, %v2429, 0.0
        %v2446 = vadd.f32 %v2374, %v2438
        %v2447 = vadd.f32 %v2375, %v2439
        %v2448 = vadd.f32 %v2376, %v2440
        %v2449 = vadd.f32 %v2377, %v2441
        %v2450 = vadd.f32 %v2378, %v2442
        %v2451 = vadd.f32 %v2379, %v2443
        %v2452 = vadd.f32 %v2380, %v2444
        %v2453 = vadd.f32 %v2381, %v2445
        %v2454 = vld [vmem:[#allocation2 + $0x80] sm:$0xf8]
        %v2455 = vld [vmem:[#allocation2 + $0xc8] sm:$0xff]
        %v2456 = vld [vmem:[#allocation2 + $0x110] sm:$0xff]
        %v2457 = vld [vmem:[#allocation2 + $0x158] sm:$0xff]
        %v2458 = vld [vmem:[#allocation2 + $0x1a0] sm:$0xff]
        %v2459 = vld [vmem:[#allocation2 + $0x1e8] sm:$0xff]
        %v2460 = vld [vmem:[#allocation2 + $0x230] sm:$0xff]
        %v2461 = vld [vmem:[#allocation2 + $0x278] sm:$0xff]
        %v2462 = vld [vmem:[#allocation2 + $0x2c0] sm:$0x7]
        %vm2463 = vcmp.ge.s32.totalorder %v2002, 4294967293
        %vm2464 = vcmp.ge.s32.totalorder %v2003, 4294967293
        %vm2465 = vcmp.ge.s32.totalorder %v2004, 4294967293
        %vm2466 = vcmp.ge.s32.totalorder %v2005, 4294967293
        %vm2467 = vcmp.lt.s32.totalorder %v2002, 29
        %vm2468 = vcmp.lt.s32.totalorder %v2003, 29
        %vm2469 = vcmp.lt.s32.totalorder %v2004, 29
        %vm2470 = vcmp.lt.s32.totalorder %v2005, 29
        %vm2471 = vmand %vm2463, %vm2467
        %vm2472 = vmand %vm2464, %vm2468
        %vm2473 = vmand %vm2465, %vm2469
        %vm2474 = vmand %vm2466, %vm2470
        %vm2484 = vcmask 1044480
        %v2485 = vrot.slane %v2454, 3
        %v2486 = vrot.slane %v2455, 3
        %v2487 = vsel %vm2484, %v2485, %v2486
        %v2488 = vrot.slane %v2456, 3
        %v2489 = vsel %vm2484, %v2486, %v2488
        %v2490 = vrot.slane %v2457, 3
        %v2491 = vsel %vm2484, %v2488, %v2490
        %v2492 = vrot.slane %v2458, 3
        %v2493 = vsel %vm2484, %v2490, %v2492
        %v2494 = vrot.slane %v2459, 3
        %v2495 = vsel %vm2484, %v2492, %v2494
        %v2496 = vrot.slane %v2460, 3
        %v2497 = vsel %vm2484, %v2494, %v2496
        %v2498 = vrot.slane %v2461, 3
        %v2499 = vsel %vm2484, %v2496, %v2498
        %v2500 = vrot.slane %v2462, 3
        %v2501 = vsel %vm2484, %v2498, %v2500
        %v2510 = vsel %vm2471, %v2487, 0.0
        %v2511 = vsel %vm2472, %v2489, 0.0
        %v2512 = vsel %vm2473, %v2491, 0.0
        %v2513 = vsel %vm2474, %v2493, 0.0
        %v2514 = vsel %vm2471, %v2495, 0.0
        %v2515 = vsel %vm2472, %v2497, 0.0
        %v2516 = vsel %vm2473, %v2499, 0.0
        %v2517 = vsel %vm2474, %v2501, 0.0
        %v2518 = vadd.f32 %v2446, %v2510
        %v2519 = vadd.f32 %v2447, %v2511
        %v2520 = vadd.f32 %v2448, %v2512
        %v2521 = vadd.f32 %v2449, %v2513
        %v2522 = vadd.f32 %v2450, %v2514
        %v2523 = vadd.f32 %v2451, %v2515
        %v2524 = vadd.f32 %v2452, %v2516
        %v2525 = vadd.f32 %v2453, %v2517
        %v2526 = vld [vmem:[#allocation2 + $0x88] sm:$0xf0]
        %v2527 = vld [vmem:[#allocation2 + $0xd0] sm:$0xff]
        %v2528 = vld [vmem:[#allocation2 + $0x118] sm:$0xff]
        %v2529 = vld [vmem:[#allocation2 + $0x160] sm:$0xff]
        %v2530 = vld [vmem:[#allocation2 + $0x1a8] sm:$0xff]
        %v2531 = vld [vmem:[#allocation2 + $0x1f0] sm:$0xff]
        %v2532 = vld [vmem:[#allocation2 + $0x238] sm:$0xff]
        %v2533 = vld [vmem:[#allocation2 + $0x280] sm:$0xff]
        %v2534 = vld [vmem:[#allocation2 + $0x2c8] sm:$0xf]
        %vm2535 = vcmp.ge.s32.totalorder %v2002, 4294967292
        %vm2536 = vcmp.ge.s32.totalorder %v2003, 4294967292
        %vm2537 = vcmp.ge.s32.totalorder %v2004, 4294967292
        %vm2538 = vcmp.ge.s32.totalorder %v2005, 4294967292
        %vm2539 = vcmp.lt.s32.totalorder %v2002, 28
        %vm2540 = vcmp.lt.s32.totalorder %v2003, 28
        %vm2541 = vcmp.lt.s32.totalorder %v2004, 28
        %vm2542 = vcmp.lt.s32.totalorder %v2005, 28
        %vm2543 = vmand %vm2535, %vm2539
        %vm2544 = vmand %vm2536, %vm2540
        %vm2545 = vmand %vm2537, %vm2541
        %vm2546 = vmand %vm2538, %vm2542
        %v2556 = vrot.slane %v2526, 4
        %v2557 = vrot.slane %v2527, 4
        %v2558 = vsel %vm2036, %v2556, %v2557
        %v2559 = vrot.slane %v2528, 4
        %v2560 = vsel %vm2036, %v2557, %v2559
        %v2561 = vrot.slane %v2529, 4
        %v2562 = vsel %vm2036, %v2559, %v2561
        %v2563 = vrot.slane %v2530, 4
        %v2564 = vsel %vm2036, %v2561, %v2563
        %v2565 = vrot.slane %v2531, 4
        %v2566 = vsel %vm2036, %v2563, %v2565
        %v2567 = vrot.slane %v2532, 4
        %v2568 = vsel %vm2036, %v2565, %v2567
        %v2569 = vrot.slane %v2533, 4
        %v2570 = vsel %vm2036, %v2567, %v2569
        %v2571 = vrot.slane %v2534, 4
        %v2572 = vsel %vm2036, %v2569, %v2571
        %v2581 = vsel %vm2543, %v2558, 0.0
        %v2582 = vsel %vm2544, %v2560, 0.0
        %v2583 = vsel %vm2545, %v2562, 0.0
        %v2584 = vsel %vm2546, %v2564, 0.0
        %v2585 = vsel %vm2543, %v2566, 0.0
        %v2586 = vsel %vm2544, %v2568, 0.0
        %v2587 = vsel %vm2545, %v2570, 0.0
        %v2588 = vsel %vm2546, %v2572, 0.0
        %v2589 = vadd.f32 %v2518, %v2581
        %v2590 = vadd.f32 %v2519, %v2582
        %v2591 = vadd.f32 %v2520, %v2583
        %v2592 = vadd.f32 %v2521, %v2584
        %v2593 = vadd.f32 %v2522, %v2585
        %v2594 = vadd.f32 %v2523, %v2586
        %v2595 = vadd.f32 %v2524, %v2587
        %v2596 = vadd.f32 %v2525, %v2588
        %v2597 = vld [vmem:[%s875] sm:$0x1]
        %v2599 = vperm.slane %v2597, 0
        %v2601 = vadd.f32 %v2589, %v2599
        %v2602 = vadd.f32 %v2590, %v2599
        %v2603 = vadd.f32 %v2591, %v2599
        %v2604 = vadd.f32 %v2592, %v2599
        %v2605 = vadd.f32 %v2593, %v2599
        %v2606 = vadd.f32 %v2594, %v2599
        %v2607 = vadd.f32 %v2595, %v2599
        %v2608 = vadd.f32 %v2596, %v2599
        %v2609 = vmax.f32 %v2601, 0.0
        %v2610 = vmax.f32 %v2602, 0.0
        %v2611 = vmax.f32 %v2603, 0.0
        %v2612 = vmax.f32 %v2604, 0.0
        %v2613 = vmax.f32 %v2605, 0.0
        %v2614 = vmax.f32 %v2606, 0.0
        %v2615 = vmax.f32 %v2607, 0.0
        %v2616 = vmax.f32 %v2608, 0.0
        %2617 = vst [vmem:[#allocation3] sm:$0xff] 0.0
        %vm2618 = vcmask 56320
        %2619 = vst.msk [vmem:[#allocation3 + $0x8] sm:$0xff] %vm2618, 0.0
        %2620 = vst [vmem:[#allocation3 + $0x10] sm:$0xff] 0.0
        %2621 = vst.msk [vmem:[#allocation3 + $0x18] sm:$0xff] %vm2618, 0.0
        %2622 = vst [vmem:[#allocation3 + $0x20] sm:$0xff] 0.0
        %2623 = vst.msk [vmem:[#allocation3 + $0x28] sm:$0xff] %vm2618, 0.0
        %2624 = vst [vmem:[#allocation3 + $0x30] sm:$0xff] 0.0
        %2625 = vst.msk [vmem:[#allocation3 + $0x38] sm:$0xff] %vm2618, 0.0
        %2626 = vst [vmem:[#allocation3 + $0x40] sm:$0xff] 0.0
        %2627 = vst.msk [vmem:[#allocation3 + $0x48] sm:$0xff] %vm2618, 0.0
        %2628 = vst [vmem:[#allocation3 + $0x50] sm:$0xff] 0.0
        %2629 = vst.msk [vmem:[#allocation3 + $0x58] sm:$0xff] %vm2618, 0.0
        %2630 = vst [vmem:[#allocation3 + $0x60] sm:$0xff] 0.0
        %2631 = vst.msk [vmem:[#allocation3 + $0x68] sm:$0xff] %vm2618, 0.0
        %2632 = vst [vmem:[#allocation3 + $0x70] sm:$0xff] 0.0
        %2633 = vst.msk [vmem:[#allocation3 + $0x78] sm:$0xff] %vm2618, 0.0
        %2634 = vst [vmem:[#allocation3 + $0x80] sm:$0x7f] 0.0
        %vm2635 = vcmask 55296
        %2636 = vst.msk [vmem:[#allocation3 + $0x88] sm:$0x7f] %vm2635, 0.0
        %2637 = vst [vmem:[#allocation3] sm:$0xff] %v2609
        %2638 = vst [vmem:[#allocation3 + $0x10] sm:$0xff] %v2610
        %2639 = vst [vmem:[#allocation3 + $0x20] sm:$0xff] %v2611
        %2640 = vst [vmem:[#allocation3 + $0x30] sm:$0xff] %v2612
        %2641 = vst [vmem:[#allocation3 + $0x40] sm:$0xff] %v2613
        %2642 = vst [vmem:[#allocation3 + $0x50] sm:$0xff] %v2614
        %2643 = vst [vmem:[#allocation3 + $0x60] sm:$0xff] %v2615
        %2644 = vst [vmem:[#allocation3 + $0x70] sm:$0xff] %v2616
        %v2645 = vld [vmem:[#allocation3] sm:$0xfe]
        %v2646 = vld [vmem:[#allocation3 + $0x10] sm:$0xff]
        %v2647 = vld [vmem:[#allocation3 + $0x20] sm:$0xff]
        %v2648 = vld [vmem:[#allocation3 + $0x30] sm:$0xff]
        %v2649 = vld [vmem:[#allocation3 + $0x40] sm:$0xff]
        %v2650 = vld [vmem:[#allocation3 + $0x50] sm:$0xff]
        %v2651 = vld [vmem:[#allocation3 + $0x60] sm:$0xff]
        %v2652 = vld [vmem:[#allocation3 + $0x70] sm:$0xff]
        %v2653 = vld [vmem:[#allocation3 + $0x80] sm:$0x1]
        %v2663 = vrot.slane %v2645, 1
        %v2664 = vrot.slane %v2646, 1
        %v2665 = vsel %vm2340, %v2663, %v2664
        %v2666 = vrot.slane %v2647, 1
        %v2667 = vsel %vm2340, %v2664, %v2666
        %v2668 = vrot.slane %v2648, 1
        %v2669 = vsel %vm2340, %v2666, %v2668
        %v2670 = vrot.slane %v2649, 1
        %v2671 = vsel %vm2340, %v2668, %v2670
        %v2672 = vrot.slane %v2650, 1
        %v2673 = vsel %vm2340, %v2670, %v2672
        %v2674 = vrot.slane %v2651, 1
        %v2675 = vsel %vm2340, %v2672, %v2674
        %v2676 = vrot.slane %v2652, 1
        %v2677 = vsel %vm2340, %v2674, %v2676
        %v2678 = vrot.slane %v2653, 1
        %v2679 = vsel %vm2340, %v2676, %v2678
        %v2688 = vmax.f32 %v2609, %v2665
        %v2689 = vmax.f32 %v2610, %v2667
        %v2690 = vmax.f32 %v2611, %v2669
        %v2691 = vmax.f32 %v2612, %v2671
        %v2692 = vmax.f32 %v2613, %v2673
        %v2693 = vmax.f32 %v2614, %v2675
        %v2694 = vmax.f32 %v2615, %v2677
        %v2695 = vmax.f32 %v2616, %v2679
        %v2696 = vld [vmem:[#allocation3] sm:$0xfc]
        %v2697 = vld [vmem:[#allocation3 + $0x80] sm:$0x3]
        %v2700 = vrot.slane %v2696, 2
        %v2701 = vrot.slane %v2646, 2
        %v2702 = vsel %vm2412, %v2700, %v2701
        %v2703 = vrot.slane %v2647, 2
        %v2704 = vsel %vm2412, %v2701, %v2703
        %v2705 = vrot.slane %v2648, 2
        %v2706 = vsel %vm2412, %v2703, %v2705
        %v2707 = vrot.slane %v2649, 2
        %v2708 = vsel %vm2412, %v2705, %v2707
        %v2709 = vrot.slane %v2650, 2
        %v2710 = vsel %vm2412, %v2707, %v2709
        %v2711 = vrot.slane %v2651, 2
        %v2712 = vsel %vm2412, %v2709, %v2711
        %v2713 = vrot.slane %v2652, 2
        %v2714 = vsel %vm2412, %v2711, %v2713
        %v2715 = vrot.slane %v2697, 2
        %v2716 = vsel %vm2412, %v2713, %v2715
        %v2725 = vmax.f32 %v2688, %v2702
        %v2726 = vmax.f32 %v2689, %v2704
        %v2727 = vmax.f32 %v2690, %v2706
        %v2728 = vmax.f32 %v2691, %v2708
        %v2729 = vmax.f32 %v2692, %v2710
        %v2730 = vmax.f32 %v2693, %v2712
        %v2731 = vmax.f32 %v2694, %v2714
        %v2732 = vmax.f32 %v2695, %v2716
        %v2733 = vld [vmem:[#allocation3] sm:$0xf8]
        %v2734 = vld [vmem:[#allocation3 + $0x80] sm:$0x7]
        %v2737 = vrot.slane %v2733, 3
        %v2738 = vrot.slane %v2646, 3
        %v2739 = vsel %vm2484, %v2737, %v2738
        %v2740 = vrot.slane %v2647, 3
        %v2741 = vsel %vm2484, %v2738, %v2740
        %v2742 = vrot.slane %v2648, 3
        %v2743 = vsel %vm2484, %v2740, %v2742
        %v2744 = vrot.slane %v2649, 3
        %v2745 = vsel %vm2484, %v2742, %v2744
        %v2746 = vrot.slane %v2650, 3
        %v2747 = vsel %vm2484, %v2744, %v2746
        %v2748 = vrot.slane %v2651, 3
        %v2749 = vsel %vm2484, %v2746, %v2748
        %v2750 = vrot.slane %v2652, 3
        %v2751 = vsel %vm2484, %v2748, %v2750
        %v2752 = vrot.slane %v2734, 3
        %v2753 = vsel %vm2484, %v2750, %v2752
        %v2762 = vmax.f32 %v2725, %v2739
        %v2763 = vmax.f32 %v2726, %v2741
        %v2764 = vmax.f32 %v2727, %v2743
        %v2765 = vmax.f32 %v2728, %v2745
        %v2766 = vmax.f32 %v2729, %v2747
        %v2767 = vmax.f32 %v2730, %v2749
        %v2768 = vmax.f32 %v2731, %v2751
        %v2769 = vmax.f32 %v2732, %v2753
        %v2770 = vld [vmem:[#allocation3] sm:$0xf0]
        %v2771 = vld [vmem:[#allocation3 + $0x80] sm:$0xf]
        %v2774 = vrot.slane %v2770, 4
        %v2775 = vrot.slane %v2646, 4
        %v2776 = vsel %vm2036, %v2774, %v2775
        %v2777 = vrot.slane %v2647, 4
        %v2778 = vsel %vm2036, %v2775, %v2777
        %v2779 = vrot.slane %v2648, 4
        %v2780 = vsel %vm2036, %v2777, %v2779
        %v2781 = vrot.slane %v2649, 4
        %v2782 = vsel %vm2036, %v2779, %v2781
        %v2783 = vrot.slane %v2650, 4
        %v2784 = vsel %vm2036, %v2781, %v2783
        %v2785 = vrot.slane %v2651, 4
        %v2786 = vsel %vm2036, %v2783, %v2785
        %v2787 = vrot.slane %v2652, 4
        %v2788 = vsel %vm2036, %v2785, %v2787
        %v2789 = vrot.slane %v2771, 4
        %v2790 = vsel %vm2036, %v2787, %v2789
        %v2799 = vmax.f32 %v2762, %v2776
        %v2800 = vmax.f32 %v2763, %v2778
        %v2801 = vmax.f32 %v2764, %v2780
        %v2802 = vmax.f32 %v2765, %v2782
        %v2803 = vmax.f32 %v2766, %v2784
        %v2804 = vmax.f32 %v2767, %v2786
        %v2805 = vmax.f32 %v2768, %v2788
        %v2806 = vmax.f32 %v2769, %v2790
        %v2807 = vld [vmem:[#allocation3] sm:$0xe0]
        %v2808 = vld [vmem:[#allocation3 + $0x80] sm:$0x1f]
        %v2811 = vrot.slane %v2807, 5
        %v2812 = vrot.slane %v2646, 5
        %v2813 = vsel %vm2108, %v2811, %v2812
        %v2814 = vrot.slane %v2647, 5
        %v2815 = vsel %vm2108, %v2812, %v2814
        %v2816 = vrot.slane %v2648, 5
        %v2817 = vsel %vm2108, %v2814, %v2816
        %v2818 = vrot.slane %v2649, 5
        %v2819 = vsel %vm2108, %v2816, %v2818
        %v2820 = vrot.slane %v2650, 5
        %v2821 = vsel %vm2108, %v2818, %v2820
        %v2822 = vrot.slane %v2651, 5
        %v2823 = vsel %vm2108, %v2820, %v2822
        %v2824 = vrot.slane %v2652, 5
        %v2825 = vsel %vm2108, %v2822, %v2824
        %v2826 = vrot.slane %v2808, 5
        %v2827 = vsel %vm2108, %v2824, %v2826
        %v2836 = vmax.f32 %v2799, %v2813
        %v2837 = vmax.f32 %v2800, %v2815
        %v2838 = vmax.f32 %v2801, %v2817
        %v2839 = vmax.f32 %v2802, %v2819
        %v2840 = vmax.f32 %v2803, %v2821
        %v2841 = vmax.f32 %v2804, %v2823
        %v2842 = vmax.f32 %v2805, %v2825
        %v2843 = vmax.f32 %v2806, %v2827
        %v2844 = vld [vmem:[#allocation3] sm:$0xc0]
        %v2845 = vld [vmem:[#allocation3 + $0x80] sm:$0x3f]
        %v2848 = vrot.slane %v2844, 6
        %v2849 = vrot.slane %v2646, 6
        %v2850 = vsel %vm2180, %v2848, %v2849
        %v2851 = vrot.slane %v2647, 6
        %v2852 = vsel %vm2180, %v2849, %v2851
        %v2853 = vrot.slane %v2648, 6
        %v2854 = vsel %vm2180, %v2851, %v2853
        %v2855 = vrot.slane %v2649, 6
        %v2856 = vsel %vm2180, %v2853, %v2855
        %v2857 = vrot.slane %v2650, 6
        %v2858 = vsel %vm2180, %v2855, %v2857
        %v2859 = vrot.slane %v2651, 6
        %v2860 = vsel %vm2180, %v2857, %v2859
        %v2861 = vrot.slane %v2652, 6
        %v2862 = vsel %vm2180, %v2859, %v2861
        %v2863 = vrot.slane %v2845, 6
        %v2864 = vsel %vm2180, %v2861, %v2863
        %v2873 = vmax.f32 %v2836, %v2850
        %v2874 = vmax.f32 %v2837, %v2852
        %v2875 = vmax.f32 %v2838, %v2854
        %v2876 = vmax.f32 %v2839, %v2856
        %v2877 = vmax.f32 %v2840, %v2858
        %v2878 = vmax.f32 %v2841, %v2860
        %v2879 = vmax.f32 %v2842, %v2862
        %v2880 = vmax.f32 %v2843, %v2864
        %v2881 = vld [vmem:[#allocation3] sm:$0x80]
        %v2882 = vld [vmem:[#allocation3 + $0x80] sm:$0x7f]
        %v2885 = vrot.slane %v2881, 7
        %v2886 = vrot.slane %v2646, 7
        %v2887 = vsel %vm2252, %v2885, %v2886
        %v2888 = vrot.slane %v2647, 7
        %v2889 = vsel %vm2252, %v2886, %v2888
        %v2890 = vrot.slane %v2648, 7
        %v2891 = vsel %vm2252, %v2888, %v2890
        %v2892 = vrot.slane %v2649, 7
        %v2893 = vsel %vm2252, %v2890, %v2892
        %v2894 = vrot.slane %v2650, 7
        %v2895 = vsel %vm2252, %v2892, %v2894
        %v2896 = vrot.slane %v2651, 7
        %v2897 = vsel %vm2252, %v2894, %v2896
        %v2898 = vrot.slane %v2652, 7
        %v2899 = vsel %vm2252, %v2896, %v2898
        %v2900 = vrot.slane %v2882, 7
        %v2901 = vsel %vm2252, %v2898, %v2900
        %v2910 = vmax.f32 %v2873, %v2887
        %v2911 = vmax.f32 %v2874, %v2889
        %v2912 = vmax.f32 %v2875, %v2891
        %v2913 = vmax.f32 %v2876, %v2893
        %v2914 = vmax.f32 %v2877, %v2895
        %v2915 = vmax.f32 %v2878, %v2897
        %v2916 = vmax.f32 %v2879, %v2899
        %v2917 = vmax.f32 %v2880, %v2901
        %2918 = vst [vmem:[#allocation3] sm:$0xff] %v2910
        %2919 = vst [vmem:[#allocation3 + $0x10] sm:$0xff] %v2911
        %2920 = vst [vmem:[#allocation3 + $0x20] sm:$0xff] %v2912
        %2921 = vst [vmem:[#allocation3 + $0x30] sm:$0xff] %v2913
        %2922 = vst [vmem:[#allocation3 + $0x40] sm:$0xff] %v2914
        %2923 = vst [vmem:[#allocation3 + $0x50] sm:$0xff] %v2915
        %2924 = vst [vmem:[#allocation3 + $0x60] sm:$0xff] %v2916
        %2925 = vst [vmem:[#allocation3 + $0x70] sm:$0xff] %v2917
        %v2926 = vld [vmem:[#allocation3] sm:$0xff]
        %v2927 = vld [vmem:[#allocation3 + $0x8] sm:$0xff]
        %v2928 = vld [vmem:[#allocation3 + $0x10] sm:$0xff]
        %v2929 = vld [vmem:[#allocation3 + $0x18] sm:$0xff]
        %v2930 = vld [vmem:[#allocation3 + $0x20] sm:$0xff]
        %v2931 = vld [vmem:[#allocation3 + $0x28] sm:$0xff]
        %v2932 = vld [vmem:[#allocation3 + $0x30] sm:$0xff]
        %v2933 = vld [vmem:[#allocation3 + $0x38] sm:$0xff]
        %v2934 = vld [vmem:[#allocation3 + $0x40] sm:$0xff]
        %v2935 = vld [vmem:[#allocation3 + $0x48] sm:$0xff]
        %v2936 = vld [vmem:[#allocation3 + $0x50] sm:$0xff]
        %v2937 = vld [vmem:[#allocation3 + $0x58] sm:$0xff]
        %v2938 = vld [vmem:[#allocation3 + $0x60] sm:$0xff]
        %v2939 = vld [vmem:[#allocation3 + $0x68] sm:$0xff]
        %v2940 = vld [vmem:[#allocation3 + $0x70] sm:$0xff]
        %v2941 = vld [vmem:[#allocation3 + $0x78] sm:$0xff]
        %2958 = vrot.lane.b32.xlu0 %v2926, 127
        %v2959 = vpop.permute.xlu0 %2958
        %2960 = vrot.lane.b32.xlu0 %v2927, 127
        %v2961 = vpop.permute.xlu0 %2960
        %2962 = vrot.lane.b32.xlu0 %v2928, 127
        %v2963 = vpop.permute.xlu0 %2962
        %2964 = vrot.lane.b32.xlu0 %v2929, 127
        %v2965 = vpop.permute.xlu0 %2964
        %2966 = vrot.lane.b32.xlu0 %v2930, 127
        %v2967 = vpop.permute.xlu0 %2966
        %2968 = vrot.lane.b32.xlu0 %v2931, 127
        %v2969 = vpop.permute.xlu0 %2968
        %2970 = vrot.lane.b32.xlu0 %v2932, 127
        %v2971 = vpop.permute.xlu0 %2970
        %2972 = vrot.lane.b32.xlu0 %v2933, 127
        %v2973 = vpop.permute.xlu0 %2972
        %2974 = vrot.lane.b32.xlu0 %v2934, 127
        %v2975 = vpop.permute.xlu0 %2974
        %2976 = vrot.lane.b32.xlu0 %v2935, 127
        %v2977 = vpop.permute.xlu0 %2976
        %2978 = vrot.lane.b32.xlu0 %v2936, 127
        %v2979 = vpop.permute.xlu0 %2978
        %2980 = vrot.lane.b32.xlu0 %v2937, 127
        %v2981 = vpop.permute.xlu0 %2980
        %2982 = vrot.lane.b32.xlu0 %v2938, 127
        %v2983 = vpop.permute.xlu0 %2982
        %2984 = vrot.lane.b32.xlu0 %v2939, 127
        %v2985 = vpop.permute.xlu0 %2984
        %2986 = vrot.lane.b32.xlu0 %v2940, 127
        %v2987 = vpop.permute.xlu0 %2986
        %2988 = vrot.lane.b32.xlu0 %v2941, 127
        %v2989 = vpop.permute.xlu0 %2988
        %vm2990 = vcmask 1039360
        %v2991 = vsel %vm2990, %v2959, %v2961
        %v2992 = vsel %vm2990, %v2963, %v2965
        %v2993 = vsel %vm2990, %v2967, %v2969
        %v2994 = vsel %vm2990, %v2971, %v2973
        %v2995 = vsel %vm2990, %v2975, %v2977
        %v2996 = vsel %vm2990, %v2979, %v2981
        %v2997 = vsel %vm2990, %v2983, %v2985
        %v2998 = vsel %vm2990, %v2987, %v2989
        %v3007 = vmax.f32 %v2910, %v2991
        %v3008 = vmax.f32 %v2911, %v2992
        %v3009 = vmax.f32 %v2912, %v2993
        %v3010 = vmax.f32 %v2913, %v2994
        %v3011 = vmax.f32 %v2914, %v2995
        %v3012 = vmax.f32 %v2915, %v2996
        %v3013 = vmax.f32 %v2916, %v2997
        %v3014 = vmax.f32 %v2917, %v2998
        %3015 = vrot.lane.b32.xlu0 %v2926, 126
        %v3016 = vpop.permute.xlu0 %3015
        %3017 = vrot.lane.b32.xlu0 %v2927, 126
        %v3018 = vpop.permute.xlu0 %3017
        %3019 = vrot.lane.b32.xlu0 %v2928, 126
        %v3020 = vpop.permute.xlu0 %3019
        %3021 = vrot.lane.b32.xlu0 %v2929, 126
        %v3022 = vpop.permute.xlu0 %3021
        %3023 = vrot.lane.b32.xlu0 %v2930, 126
        %v3024 = vpop.permute.xlu0 %3023
        %3025 = vrot.lane.b32.xlu0 %v2931, 126
        %v3026 = vpop.permute.xlu0 %3025
        %3027 = vrot.lane.b32.xlu0 %v2932, 126
        %v3028 = vpop.permute.xlu0 %3027
        %3029 = vrot.lane.b32.xlu0 %v2933, 126
        %v3030 = vpop.permute.xlu0 %3029
        %3031 = vrot.lane.b32.xlu0 %v2934, 126
        %v3032 = vpop.permute.xlu0 %3031
        %3033 = vrot.lane.b32.xlu0 %v2935, 126
        %v3034 = vpop.permute.xlu0 %3033
        %3035 = vrot.lane.b32.xlu0 %v2936, 126
        %v3036 = vpop.permute.xlu0 %3035
        %3037 = vrot.lane.b32.xlu0 %v2937, 126
        %v3038 = vpop.permute.xlu0 %3037
        %3039 = vrot.lane.b32.xlu0 %v2938, 126
        %v3040 = vpop.permute.xlu0 %3039
        %3041 = vrot.lane.b32.xlu0 %v2939, 126
        %v3042 = vpop.permute.xlu0 %3041
        %3043 = vrot.lane.b32.xlu0 %v2940, 126
        %v3044 = vpop.permute.xlu0 %3043
        %3045 = vrot.lane.b32.xlu0 %v2941, 126
        %v3046 = vpop.permute.xlu0 %3045
        %vm3047 = vcmask 1031168
        %v3048 = vsel %vm3047, %v3016, %v3018
        %v3049 = vsel %vm3047, %v3020, %v3022
        %v3050 = vsel %vm3047, %v3024, %v3026
        %v3051 = vsel %vm3047, %v3028, %v3030
        %v3052 = vsel %vm3047, %v3032, %v3034
        %v3053 = vsel %vm3047, %v3036, %v3038
        %v3054 = vsel %vm3047, %v3040, %v3042
        %v3055 = vsel %vm3047, %v3044, %v3046
        %v3064 = vmax.f32 %v3007, %v3048
        %v3065 = vmax.f32 %v3008, %v3049
        %v3066 = vmax.f32 %v3009, %v3050
        %v3067 = vmax.f32 %v3010, %v3051
        %v3068 = vmax.f32 %v3011, %v3052
        %v3069 = vmax.f32 %v3012, %v3053
        %v3070 = vmax.f32 %v3013, %v3054
        %v3071 = vmax.f32 %v3014, %v3055
        %3072 = vrot.lane.b32.xlu0 %v2926, 125
        %v3073 = vpop.permute.xlu0 %3072
        %3074 = vrot.lane.b32.xlu0 %v2927, 125
        %v3075 = vpop.permute.xlu0 %3074
        %3076 = vrot.lane.b32.xlu0 %v2928, 125
        %v3077 = vpop.permute.xlu0 %3076
        %3078 = vrot.lane.b32.xlu0 %v2929, 125
        %v3079 = vpop.permute.xlu0 %3078
        %3080 = vrot.lane.b32.xlu0 %v2930, 125
        %v3081 = vpop.permute.xlu0 %3080
        %3082 = vrot.lane.b32.xlu0 %v2931, 125
        %v3083 = vpop.permute.xlu0 %3082
        %3084 = vrot.lane.b32.xlu0 %v2932, 125
        %v3085 = vpop.permute.xlu0 %3084
        %3086 = vrot.lane.b32.xlu0 %v2933, 125
        %v3087 = vpop.permute.xlu0 %3086
        %3088 = vrot.lane.b32.xlu0 %v2934, 125
        %v3089 = vpop.permute.xlu0 %3088
        %3090 = vrot.lane.b32.xlu0 %v2935, 125
        %v3091 = vpop.permute.xlu0 %3090
        %3092 = vrot.lane.b32.xlu0 %v2936, 125
        %v3093 = vpop.permute.xlu0 %3092
        %3094 = vrot.lane.b32.xlu0 %v2937, 125
        %v3095 = vpop.permute.xlu0 %3094
        %3096 = vrot.lane.b32.xlu0 %v2938, 125
        %v3097 = vpop.permute.xlu0 %3096
        %3098 = vrot.lane.b32.xlu0 %v2939, 125
        %v3099 = vpop.permute.xlu0 %3098
        %3100 = vrot.lane.b32.xlu0 %v2940, 125
        %v3101 = vpop.permute.xlu0 %3100
        %3102 = vrot.lane.b32.xlu0 %v2941, 125
        %v3103 = vpop.permute.xlu0 %3102
        %vm3104 = vcmask 1022976
        %v3105 = vsel %vm3104, %v3073, %v3075
        %v3106 = vsel %vm3104, %v3077, %v3079
        %v3107 = vsel %vm3104, %v3081, %v3083
        %v3108 = vsel %vm3104, %v3085, %v3087
        %v3109 = vsel %vm3104, %v3089, %v3091
        %v3110 = vsel %vm3104, %v3093, %v3095
        %v3111 = vsel %vm3104, %v3097, %v3099
        %v3112 = vsel %vm3104, %v3101, %v3103
        %v3121 = vmax.f32 %v3064, %v3105
        %v3122 = vmax.f32 %v3065, %v3106
        %v3123 = vmax.f32 %v3066, %v3107
        %v3124 = vmax.f32 %v3067, %v3108
        %v3125 = vmax.f32 %v3068, %v3109
        %v3126 = vmax.f32 %v3069, %v3110
        %v3127 = vmax.f32 %v3070, %v3111
        %v3128 = vmax.f32 %v3071, %v3112
        %3129 = vrot.lane.b32.xlu0 %v2926, 124
        %v3130 = vpop.permute.xlu0 %3129
        %3131 = vrot.lane.b32.xlu0 %v2927, 124
        %v3132 = vpop.permute.xlu0 %3131
        %3133 = vrot.lane.b32.xlu0 %v2928, 124
        %v3134 = vpop.permute.xlu0 %3133
        %3135 = vrot.lane.b32.xlu0 %v2929, 124
        %v3136 = vpop.permute.xlu0 %3135
        %3137 = vrot.lane.b32.xlu0 %v2930, 124
        %v3138 = vpop.permute.xlu0 %3137
        %3139 = vrot.lane.b32.xlu0 %v2931, 124
        %v3140 = vpop.permute.xlu0 %3139
        %3141 = vrot.lane.b32.xlu0 %v2932, 124
        %v3142 = vpop.permute.xlu0 %3141
        %3143 = vrot.lane.b32.xlu0 %v2933, 124
        %v3144 = vpop.permute.xlu0 %3143
        %3145 = vrot.lane.b32.xlu0 %v2934, 124
        %v3146 = vpop.permute.xlu0 %3145
        %3147 = vrot.lane.b32.xlu0 %v2935, 124
        %v3148 = vpop.permute.xlu0 %3147
        %3149 = vrot.lane.b32.xlu0 %v2936, 124
        %v3150 = vpop.permute.xlu0 %3149
        %3151 = vrot.lane.b32.xlu0 %v2937, 124
        %v3152 = vpop.permute.xlu0 %3151
        %3153 = vrot.lane.b32.xlu0 %v2938, 124
        %v3154 = vpop.permute.xlu0 %3153
        %3155 = vrot.lane.b32.xlu0 %v2939, 124
        %v3156 = vpop.permute.xlu0 %3155
        %3157 = vrot.lane.b32.xlu0 %v2940, 124
        %v3158 = vpop.permute.xlu0 %3157
        %3159 = vrot.lane.b32.xlu0 %v2941, 124
        %v3160 = vpop.permute.xlu0 %3159
        %vm3161 = vcmask 1014784
        %v3162 = vsel %vm3161, %v3130, %v3132
        %v3163 = vsel %vm3161, %v3134, %v3136
        %v3164 = vsel %vm3161, %v3138, %v3140
        %v3165 = vsel %vm3161, %v3142, %v3144
        %v3166 = vsel %vm3161, %v3146, %v3148
        %v3167 = vsel %vm3161, %v3150, %v3152
        %v3168 = vsel %vm3161, %v3154, %v3156
        %v3169 = vsel %vm3161, %v3158, %v3160
        %v3178 = vmax.f32 %v3121, %v3162
        %v3179 = vmax.f32 %v3122, %v3163
        %v3180 = vmax.f32 %v3123, %v3164
        %v3181 = vmax.f32 %v3124, %v3165
        %v3182 = vmax.f32 %v3125, %v3166
        %v3183 = vmax.f32 %v3126, %v3167
        %v3184 = vmax.f32 %v3127, %v3168
        %v3185 = vmax.f32 %v3128, %v3169
        %3186 = vrot.lane.b32.xlu0 %v2926, 123
        %v3187 = vpop.permute.xlu0 %3186
        %3188 = vrot.lane.b32.xlu0 %v2927, 123
        %v3189 = vpop.permute.xlu0 %3188
        %3190 = vrot.lane.b32.xlu0 %v2928, 123
        %v3191 = vpop.permute.xlu0 %3190
        %3192 = vrot.lane.b32.xlu0 %v2929, 123
        %v3193 = vpop.permute.xlu0 %3192
        %3194 = vrot.lane.b32.xlu0 %v2930, 123
        %v3195 = vpop.permute.xlu0 %3194
        %3196 = vrot.lane.b32.xlu0 %v2931, 123
        %v3197 = vpop.permute.xlu0 %3196
        %3198 = vrot.lane.b32.xlu0 %v2932, 123
        %v3199 = vpop.permute.xlu0 %3198
        %3200 = vrot.lane.b32.xlu0 %v2933, 123
        %v3201 = vpop.permute.xlu0 %3200
        %3202 = vrot.lane.b32.xlu0 %v2934, 123
        %v3203 = vpop.permute.xlu0 %3202
        %3204 = vrot.lane.b32.xlu0 %v2935, 123
        %v3205 = vpop.permute.xlu0 %3204
        %3206 = vrot.lane.b32.xlu0 %v2936, 123
        %v3207 = vpop.permute.xlu0 %3206
        %3208 = vrot.lane.b32.xlu0 %v2937, 123
        %v3209 = vpop.permute.xlu0 %3208
        %3210 = vrot.lane.b32.xlu0 %v2938, 123
        %v3211 = vpop.permute.xlu0 %3210
        %3212 = vrot.lane.b32.xlu0 %v2939, 123
        %v3213 = vpop.permute.xlu0 %3212
        %3214 = vrot.lane.b32.xlu0 %v2940, 123
        %v3215 = vpop.permute.xlu0 %3214
        %3216 = vrot.lane.b32.xlu0 %v2941, 123
        %v3217 = vpop.permute.xlu0 %3216
        %vm3218 = vcmask 1006592
        %v3219 = vsel %vm3218, %v3187, %v3189
        %v3220 = vsel %vm3218, %v3191, %v3193
        %v3221 = vsel %vm3218, %v3195, %v3197
        %v3222 = vsel %vm3218, %v3199, %v3201
        %v3223 = vsel %vm3218, %v3203, %v3205
        %v3224 = vsel %vm3218, %v3207, %v3209
        %v3225 = vsel %vm3218, %v3211, %v3213
        %v3226 = vsel %vm3218, %v3215, %v3217
        %v3235 = vmax.f32 %v3178, %v3219
        %v3236 = vmax.f32 %v3179, %v3220
        %v3237 = vmax.f32 %v3180, %v3221
        %v3238 = vmax.f32 %v3181, %v3222
        %v3239 = vmax.f32 %v3182, %v3223
        %v3240 = vmax.f32 %v3183, %v3224
        %v3241 = vmax.f32 %v3184, %v3225
        %v3242 = vmax.f32 %v3185, %v3226
        %3243 = vrot.lane.b32.xlu0 %v2926, 122
        %v3244 = vpop.permute.xlu0 %3243
        %3245 = vrot.lane.b32.xlu0 %v2927, 122
        %v3246 = vpop.permute.xlu0 %3245
        %3247 = vrot.lane.b32.xlu0 %v2928, 122
        %v3248 = vpop.permute.xlu0 %3247
        %3249 = vrot.lane.b32.xlu0 %v2929, 122
        %v3250 = vpop.permute.xlu0 %3249
        %3251 = vrot.lane.b32.xlu0 %v2930, 122
        %v3252 = vpop.permute.xlu0 %3251
        %3253 = vrot.lane.b32.xlu0 %v2931, 122
        %v3254 = vpop.permute.xlu0 %3253
        %3255 = vrot.lane.b32.xlu0 %v2932, 122
        %v3256 = vpop.permute.xlu0 %3255
        %3257 = vrot.lane.b32.xlu0 %v2933, 122
        %v3258 = vpop.permute.xlu0 %3257
        %3259 = vrot.lane.b32.xlu0 %v2934, 122
        %v3260 = vpop.permute.xlu0 %3259
        %3261 = vrot.lane.b32.xlu0 %v2935, 122
        %v3262 = vpop.permute.xlu0 %3261
        %3263 = vrot.lane.b32.xlu0 %v2936, 122
        %v3264 = vpop.permute.xlu0 %3263
        %3265 = vrot.lane.b32.xlu0 %v2937, 122
        %v3266 = vpop.permute.xlu0 %3265
        %3267 = vrot.lane.b32.xlu0 %v2938, 122
        %v3268 = vpop.permute.xlu0 %3267
        %3269 = vrot.lane.b32.xlu0 %v2939, 122
        %v3270 = vpop.permute.xlu0 %3269
        %3271 = vrot.lane.b32.xlu0 %v2940, 122
        %v3272 = vpop.permute.xlu0 %3271
        %3273 = vrot.lane.b32.xlu0 %v2941, 122
        %v3274 = vpop.permute.xlu0 %3273
        %vm3275 = vcmask 998400
        %v3276 = vsel %vm3275, %v3244, %v3246
        %v3277 = vsel %vm3275, %v3248, %v3250
        %v3278 = vsel %vm3275, %v3252, %v3254
        %v3279 = vsel %vm3275, %v3256, %v3258
        %v3280 = vsel %vm3275, %v3260, %v3262
        %v3281 = vsel %vm3275, %v3264, %v3266
        %v3282 = vsel %vm3275, %v3268, %v3270
        %v3283 = vsel %vm3275, %v3272, %v3274
        %v3292 = vmax.f32 %v3235, %v3276
        %v3293 = vmax.f32 %v3236, %v3277
        %v3294 = vmax.f32 %v3237, %v3278
        %v3295 = vmax.f32 %v3238, %v3279
        %v3296 = vmax.f32 %v3239, %v3280
        %v3297 = vmax.f32 %v3240, %v3281
        %v3298 = vmax.f32 %v3241, %v3282
        %v3299 = vmax.f32 %v3242, %v3283
        %3300 = vrot.lane.b32.xlu0 %v2926, 121
        %v3301 = vpop.permute.xlu0 %3300
        %3302 = vrot.lane.b32.xlu0 %v2927, 121
        %v3303 = vpop.permute.xlu0 %3302
        %3304 = vrot.lane.b32.xlu0 %v2928, 121
        %v3305 = vpop.permute.xlu0 %3304
        %3306 = vrot.lane.b32.xlu0 %v2929, 121
        %v3307 = vpop.permute.xlu0 %3306
        %3308 = vrot.lane.b32.xlu0 %v2930, 121
        %v3309 = vpop.permute.xlu0 %3308
        %3310 = vrot.lane.b32.xlu0 %v2931, 121
        %v3311 = vpop.permute.xlu0 %3310
        %3312 = vrot.lane.b32.xlu0 %v2932, 121
        %v3313 = vpop.permute.xlu0 %3312
        %3314 = vrot.lane.b32.xlu0 %v2933, 121
        %v3315 = vpop.permute.xlu0 %3314
        %3316 = vrot.lane.b32.xlu0 %v2934, 121
        %v3317 = vpop.permute.xlu0 %3316
        %3318 = vrot.lane.b32.xlu0 %v2935, 121
        %v3319 = vpop.permute.xlu0 %3318
        %3320 = vrot.lane.b32.xlu0 %v2936, 121
        %v3321 = vpop.permute.xlu0 %3320
        %3322 = vrot.lane.b32.xlu0 %v2937, 121
        %v3323 = vpop.permute.xlu0 %3322
        %3324 = vrot.lane.b32.xlu0 %v2938, 121
        %v3325 = vpop.permute.xlu0 %3324
        %3326 = vrot.lane.b32.xlu0 %v2939, 121
        %v3327 = vpop.permute.xlu0 %3326
        %3328 = vrot.lane.b32.xlu0 %v2940, 121
        %v3329 = vpop.permute.xlu0 %3328
        %3330 = vrot.lane.b32.xlu0 %v2941, 121
        %v3331 = vpop.permute.xlu0 %3330
        %vm3332 = vcmask 990208
        %v3333 = vsel %vm3332, %v3301, %v3303
        %v3334 = vsel %vm3332, %v3305, %v3307
        %v3335 = vsel %vm3332, %v3309, %v3311
        %v3336 = vsel %vm3332, %v3313, %v3315
        %v3337 = vsel %vm3332, %v3317, %v3319
        %v3338 = vsel %vm3332, %v3321, %v3323
        %v3339 = vsel %vm3332, %v3325, %v3327
        %v3340 = vsel %vm3332, %v3329, %v3331
        %v3349 = vmax.f32 %v3292, %v3333
        %v3350 = vmax.f32 %v3293, %v3334
        %v3351 = vmax.f32 %v3294, %v3335
        %v3352 = vmax.f32 %v3295, %v3336
        %v3353 = vmax.f32 %v3296, %v3337
        %v3354 = vmax.f32 %v3297, %v3338
        %v3355 = vmax.f32 %v3298, %v3339
        %v3356 = vmax.f32 %v3299, %v3340
        %v3357 = vld [vmem:[#allocation6] sm:$0x3]
        %vm3358 = vcmask 523264
        %v3360 = vsel %vm3358, %v3357, 0
        %3362 = vmatpush.msra.mxu0 0.0
        %3363 = vmatpush.msra.mxu0 0.0
        %3364 = vmatpush.msra.mxu0 0.0
        %3365 = vmatpush.msra.mxu0 0.0
        %3366 = vmatpush.msra.mxu0 0.0
        %3367 = vmatpush.msra.mxu0 0.0
        %3368 = vmatpush.msra.mxu0 0.0
        %3369 = vmatpush.msra.mxu0 0.0
        %3370 = vmatpush.msra.mxu0 %v3356
        %3371 = vmatpush.msra.mxu0 %v3355
        %3372 = vmatpush.msra.mxu0 %v3354
        %3373 = vmatpush.msra.mxu0 %v3353
        %3374 = vmatpush.msra.mxu0 %v3352
        %3375 = vmatpush.msra.mxu0 %v3351
        %3376 = vmatpush.msra.mxu0 %v3350
        %3377 = vmatpush.msra.mxu0 %v3349
        %3378 = vmatmul.f32.gmra.mxu0 %v3360
        %v3379 = vpop.f32.mrf.mxu0
        %v3380 = vadd.f32 0.0, %v3379
        %3381 = vdwg.mxu0
        %v3382 = vld [vmem:[#allocation8] sm:$0xff]
        %v3383 = vld [vmem:[#allocation8 + $0x8] sm:$0xff]
        %v3384 = vld [vmem:[#allocation8 + $0x10] sm:$0xff]
        %v3385 = vld [vmem:[#allocation8 + $0x18] sm:$0xff]
        %v3386 = vld [vmem:[#allocation8 + $0x20] sm:$0xff]
        %v3387 = vld [vmem:[#allocation8 + $0x28] sm:$0xff]
        %v3388 = vld [vmem:[#allocation8 + $0x30] sm:$0xff]
        %v3389 = vld [vmem:[#allocation8 + $0x38] sm:$0xff]
        %v3390 = vld [vmem:[#allocation8 + $0x40] sm:$0xff]
        %v3391 = vld [vmem:[#allocation8 + $0x48] sm:$0xff]
        %v3392 = vld [vmem:[#allocation8 + $0x50] sm:$0xff]
        %v3393 = vld [vmem:[#allocation8 + $0x58] sm:$0xff]
        %v3394 = vld [vmem:[#allocation8 + $0x60] sm:$0xff]
        %v3395 = vld [vmem:[#allocation8 + $0x68] sm:$0xff]
        %v3396 = vld [vmem:[#allocation8 + $0x70] sm:$0xff]
        %v3397 = vld [vmem:[#allocation8 + $0x78] sm:$0xff]
        %s3398 = scalar_lea.vmem [#allocation6], 2
        %v3399 = vld [vmem:[%s3398] sm:$0x3]
        %v3401 = vsel %vm3358, %v3399, 0
        %3403 = vmatpush.msra.mxu0 0.0
        %3404 = vmatpush.msra.mxu0 0.0
        %3405 = vmatpush.msra.mxu0 0.0
        %3406 = vmatpush.msra.mxu0 0.0
        %3407 = vmatpush.msra.mxu0 0.0
        %3408 = vmatpush.msra.mxu0 0.0
        %3409 = vmatpush.msra.mxu0 0.0
        %3410 = vmatpush.msra.mxu0 0.0
        %3411 = vmatpush.msra.mxu0 %v3356
        %3412 = vmatpush.msra.mxu0 %v3355
        %3413 = vmatpush.msra.mxu0 %v3354
        %3414 = vmatpush.msra.mxu0 %v3353
        %3415 = vmatpush.msra.mxu0 %v3352
        %3416 = vmatpush.msra.mxu0 %v3351
        %3417 = vmatpush.msra.mxu0 %v3350
        %3418 = vmatpush.msra.mxu0 %v3349
        %3419 = vmatmul.f32.gmra.mxu0 %v3401
        %v3420 = vpop.f32.mrf.mxu0
        %v3421 = vadd.f32 0.0, %v3420
        %3422 = vdwg.mxu0
        %s3423 = scalar_lea.vmem [#allocation8], 128
        %v3424 = vld [vmem:[%s3423] sm:$0xff]
        %v3425 = vld [vmem:[%s3423 + $0x8] sm:$0xff]
        %v3426 = vld [vmem:[%s3423 + $0x10] sm:$0xff]
        %v3427 = vld [vmem:[%s3423 + $0x18] sm:$0xff]
        %v3428 = vld [vmem:[%s3423 + $0x20] sm:$0xff]
        %v3429 = vld [vmem:[%s3423 + $0x28] sm:$0xff]
        %v3430 = vld [vmem:[%s3423 + $0x30] sm:$0xff]
        %v3431 = vld [vmem:[%s3423 + $0x38] sm:$0xff]
        %v3432 = vld [vmem:[%s3423 + $0x40] sm:$0xff]
        %v3433 = vld [vmem:[%s3423 + $0x48] sm:$0xff]
        %v3434 = vld [vmem:[%s3423 + $0x50] sm:$0xff]
        %v3435 = vld [vmem:[%s3423 + $0x58] sm:$0xff]
        %v3436 = vld [vmem:[%s3423 + $0x60] sm:$0xff]
        %v3437 = vld [vmem:[%s3423 + $0x68] sm:$0xff]
        %v3438 = vld [vmem:[%s3423 + $0x70] sm:$0xff]
        %v3439 = vld [vmem:[%s3423 + $0x78] sm:$0xff]
        %3440 = vmatpush.msra.mxu0 %v3439
        %3441 = vmatpush.msra.mxu0 %v3438
        %3442 = vmatpush.msra.mxu0 %v3437
        %3443 = vmatpush.msra.mxu0 %v3436
        %3444 = vmatpush.msra.mxu0 %v3435
        %3445 = vmatpush.msra.mxu0 %v3434
        %3446 = vmatpush.msra.mxu0 %v3433
        %3447 = vmatpush.msra.mxu0 %v3432
        %3448 = vmatpush.msra.mxu0 %v3431
        %3449 = vmatpush.msra.mxu0 %v3430
        %3450 = vmatpush.msra.mxu0 %v3429
        %3451 = vmatpush.msra.mxu0 %v3428
        %3452 = vmatpush.msra.mxu0 %v3427
        %3453 = vmatpush.msra.mxu0 %v3426
        %3454 = vmatpush.msra.mxu0 %v3425
        %3455 = vmatpush.msra.mxu0 %v3424
        %3456 = vmatmul.f32.gmra.mxu0 %v3421
        %v3457 = vpop.f32.mrf.mxu0
        %v3458 = vadd.f32 0.0, %v3457
        %3459 = vdwg.mxu0
        %3460 = vmatpush.msra.mxu0 %v3397
        %3461 = vmatpush.msra.mxu0 %v3396
        %3462 = vmatpush.msra.mxu0 %v3395
        %3463 = vmatpush.msra.mxu0 %v3394
        %3464 = vmatpush.msra.mxu0 %v3393
        %3465 = vmatpush.msra.mxu0 %v3392
        %3466 = vmatpush.msra.mxu0 %v3391
        %3467 = vmatpush.msra.mxu0 %v3390
        %3468 = vmatpush.msra.mxu0 %v3389
        %3469 = vmatpush.msra.mxu0 %v3388
        %3470 = vmatpush.msra.mxu0 %v3387
        %3471 = vmatpush.msra.mxu0 %v3386
        %3472 = vmatpush.msra.mxu0 %v3385
        %3473 = vmatpush.msra.mxu0 %v3384
        %3474 = vmatpush.msra.mxu0 %v3383
        %3475 = vmatpush.msra.mxu0 %v3382
        %3476 = vmatmul.f32.gmra.mxu0 %v3380
        %v3477 = vpop.f32.mrf.mxu0
        %v3478 = vadd.f32 %v3458, %v3477
        %3479 = vdwg.mxu0
        %s3480 = scalar_lea.vmem [#allocation6], 4
        %v3481 = vld [vmem:[%s3480] sm:$0x3]
        %v3483 = vsel %vm3358, %v3481, 0
        %3485 = vmatpush.msra.mxu0 0.0
        %3486 = vmatpush.msra.mxu0 0.0
        %3487 = vmatpush.msra.mxu0 0.0
        %3488 = vmatpush.msra.mxu0 0.0
        %3489 = vmatpush.msra.mxu0 0.0
        %3490 = vmatpush.msra.mxu0 0.0
        %3491 = vmatpush.msra.mxu0 0.0
        %3492 = vmatpush.msra.mxu0 0.0
        %3493 = vmatpush.msra.mxu0 %v3356
        %3494 = vmatpush.msra.mxu0 %v3355
        %3495 = vmatpush.msra.mxu0 %v3354
        %3496 = vmatpush.msra.mxu0 %v3353
        %3497 = vmatpush.msra.mxu0 %v3352
        %3498 = vmatpush.msra.mxu0 %v3351
        %3499 = vmatpush.msra.mxu0 %v3350
        %3500 = vmatpush.msra.mxu0 %v3349
        %3501 = vmatmul.f32.gmra.mxu0 %v3483
        %v3502 = vpop.f32.mrf.mxu0
        %v3503 = vadd.f32 0.0, %v3502
        %3504 = vdwg.mxu0
        %s3505 = scalar_lea.vmem [#allocation8], 256
        %v3506 = vld [vmem:[%s3505] sm:$0xff]
        %v3507 = vld [vmem:[%s3505 + $0x8] sm:$0xff]
        %v3508 = vld [vmem:[%s3505 + $0x10] sm:$0xff]
        %v3509 = vld [vmem:[%s3505 + $0x18] sm:$0xff]
        %v3510 = vld [vmem:[%s3505 + $0x20] sm:$0xff]
        %v3511 = vld [vmem:[%s3505 + $0x28] sm:$0xff]
        %v3512 = vld [vmem:[%s3505 + $0x30] sm:$0xff]
        %v3513 = vld [vmem:[%s3505 + $0x38] sm:$0xff]
        %v3514 = vld [vmem:[%s3505 + $0x40] sm:$0xff]
        %v3515 = vld [vmem:[%s3505 + $0x48] sm:$0xff]
        %v3516 = vld [vmem:[%s3505 + $0x50] sm:$0xff]
        %v3517 = vld [vmem:[%s3505 + $0x58] sm:$0xff]
        %v3518 = vld [vmem:[%s3505 + $0x60] sm:$0xff]
        %v3519 = vld [vmem:[%s3505 + $0x68] sm:$0xff]
        %v3520 = vld [vmem:[%s3505 + $0x70] sm:$0xff]
        %v3521 = vld [vmem:[%s3505 + $0x78] sm:$0xff]
        %3522 = vmatpush.msra.mxu0 %v3521
        %3523 = vmatpush.msra.mxu0 %v3520
        %3524 = vmatpush.msra.mxu0 %v3519
        %3525 = vmatpush.msra.mxu0 %v3518
        %3526 = vmatpush.msra.mxu0 %v3517
        %3527 = vmatpush.msra.mxu0 %v3516
        %3528 = vmatpush.msra.mxu0 %v3515
        %3529 = vmatpush.msra.mxu0 %v3514
        %3530 = vmatpush.msra.mxu0 %v3513
        %3531 = vmatpush.msra.mxu0 %v3512
        %3532 = vmatpush.msra.mxu0 %v3511
        %3533 = vmatpush.msra.mxu0 %v3510
        %3534 = vmatpush.msra.mxu0 %v3509
        %3535 = vmatpush.msra.mxu0 %v3508
        %3536 = vmatpush.msra.mxu0 %v3507
        %3537 = vmatpush.msra.mxu0 %v3506
        %3538 = vmatmul.f32.gmra.mxu0 %v3503
        %v3539 = vpop.f32.mrf.mxu0
        %v3540 = vadd.f32 0.0, %v3539
        %3541 = vdwg.mxu0
        %v3542 = vadd.f32 %v3478, %v3540
        %s3543 = scalar_lea.vmem [#allocation6], 6
        %v3544 = vld [vmem:[%s3543] sm:$0x3]
        %v3546 = vsel %vm3358, %v3544, 0
        %3548 = vmatpush.msra.mxu0 0.0
        %3549 = vmatpush.msra.mxu0 0.0
        %3550 = vmatpush.msra.mxu0 0.0
        %3551 = vmatpush.msra.mxu0 0.0
        %3552 = vmatpush.msra.mxu0 0.0
        %3553 = vmatpush.msra.mxu0 0.0
        %3554 = vmatpush.msra.mxu0 0.0
        %3555 = vmatpush.msra.mxu0 0.0
        %3556 = vmatpush.msra.mxu0 %v3356
        %3557 = vmatpush.msra.mxu0 %v3355
        %3558 = vmatpush.msra.mxu0 %v3354
        %3559 = vmatpush.msra.mxu0 %v3353
        %3560 = vmatpush.msra.mxu0 %v3352
        %3561 = vmatpush.msra.mxu0 %v3351
        %3562 = vmatpush.msra.mxu0 %v3350
        %3563 = vmatpush.msra.mxu0 %v3349
        %3564 = vmatmul.f32.gmra.mxu0 %v3546
        %v3565 = vpop.f32.mrf.mxu0
        %v3566 = vadd.f32 0.0, %v3565
        %3567 = vdwg.mxu0
        %s3568 = scalar_lea.vmem [#allocation8], 384
        %v3569 = vld [vmem:[%s3568] sm:$0xff]
        %v3570 = vld [vmem:[%s3568 + $0x8] sm:$0xff]
        %v3571 = vld [vmem:[%s3568 + $0x10] sm:$0xff]
        %v3572 = vld [vmem:[%s3568 + $0x18] sm:$0xff]
        %v3573 = vld [vmem:[%s3568 + $0x20] sm:$0xff]
        %v3574 = vld [vmem:[%s3568 + $0x28] sm:$0xff]
        %v3575 = vld [vmem:[%s3568 + $0x30] sm:$0xff]
        %v3576 = vld [vmem:[%s3568 + $0x38] sm:$0xff]
        %v3577 = vld [vmem:[%s3568 + $0x40] sm:$0xff]
        %v3578 = vld [vmem:[%s3568 + $0x48] sm:$0xff]
        %v3579 = vld [vmem:[%s3568 + $0x50] sm:$0xff]
        %v3580 = vld [vmem:[%s3568 + $0x58] sm:$0xff]
        %v3581 = vld [vmem:[%s3568 + $0x60] sm:$0xff]
        %v3582 = vld [vmem:[%s3568 + $0x68] sm:$0xff]
        %v3583 = vld [vmem:[%s3568 + $0x70] sm:$0xff]
        %v3584 = vld [vmem:[%s3568 + $0x78] sm:$0xff]
        %3585 = vmatpush.msra.mxu0 %v3584
        %3586 = vmatpush.msra.mxu0 %v3583
        %3587 = vmatpush.msra.mxu0 %v3582
        %3588 = vmatpush.msra.mxu0 %v3581
        %3589 = vmatpush.msra.mxu0 %v3580
        %3590 = vmatpush.msra.mxu0 %v3579
        %3591 = vmatpush.msra.mxu0 %v3578
        %3592 = vmatpush.msra.mxu0 %v3577
        %3593 = vmatpush.msra.mxu0 %v3576
        %3594 = vmatpush.msra.mxu0 %v3575
        %3595 = vmatpush.msra.mxu0 %v3574
        %3596 = vmatpush.msra.mxu0 %v3573
        %3597 = vmatpush.msra.mxu0 %v3572
        %3598 = vmatpush.msra.mxu0 %v3571
        %3599 = vmatpush.msra.mxu0 %v3570
        %3600 = vmatpush.msra.mxu0 %v3569
        %3601 = vmatmul.f32.gmra.mxu0 %v3566
        %v3602 = vpop.f32.mrf.mxu0
        %v3603 = vadd.f32 0.0, %v3602
        %3604 = vdwg.mxu0
        %v3605 = vadd.f32 %v3542, %v3603
        %v3606 = vmax.f32 %v3605, 0.0
        %v3607 = vld [vmem:[%s880] sm:$0xff]
        %v3608 = vld [vmem:[%s880 + $0x8] sm:$0xff]
        %v3609 = vld [vmem:[%s880 + $0x10] sm:$0xff]
        %v3610 = vld [vmem:[%s880 + $0x18] sm:$0xff]
        %v3611 = vld [vmem:[%s880 + $0x20] sm:$0xff]
        %v3612 = vld [vmem:[%s880 + $0x28] sm:$0xff]
        %v3613 = vld [vmem:[%s880 + $0x30] sm:$0xff]
        %v3614 = vld [vmem:[%s880 + $0x38] sm:$0xff]
        %v3615 = vld [vmem:[%s898] sm:$0x1]
        %v3617 = vperm.slane %v3615, 0
        %v3620 = vsel %vm3358, %v3606, 0
        %3622 = vmatpush.msra.mxu0 0.0
        %3623 = vmatpush.msra.mxu0 0.0
        %3624 = vmatpush.msra.mxu0 0.0
        %3625 = vmatpush.msra.mxu0 0.0
        %3626 = vmatpush.msra.mxu0 0.0
        %3627 = vmatpush.msra.mxu0 0.0
        %3628 = vmatpush.msra.mxu0 0.0
        %3629 = vmatpush.msra.mxu0 0.0
        %3630 = vmatpush.msra.mxu0 %v3614
        %3631 = vmatpush.msra.mxu0 %v3613
        %3632 = vmatpush.msra.mxu0 %v3612
        %3633 = vmatpush.msra.mxu0 %v3611
        %3634 = vmatpush.msra.mxu0 %v3610
        %3635 = vmatpush.msra.mxu0 %v3609
        %3636 = vmatpush.msra.mxu0 %v3608
        %3637 = vmatpush.msra.mxu0 %v3607
        %3638 = vmatmul.f32.gmra.mxu0 %v3620
        %v3639 = vpop.f32.mrf.mxu0
        %v3640 = vadd.f32 %v3617, %v3639
        %3641 = vdwg.mxu0
        %v3642 = vld [vmem:[#allocation4] sm:$0x3]
        %v3643 = vld [vmem:[%s885] sm:$0xff]
        %v3644 = vld [vmem:[%s885 + $0x8] sm:$0xff]
        %v3645 = vld [vmem:[%s885 + $0x10] sm:$0xff]
        %v3646 = vld [vmem:[%s885 + $0x18] sm:$0xff]
        %v3647 = vld [vmem:[%s901] sm:$0x1]
        %v3649 = vperm.slane %v3647, 0
        %vm3651 = vcmask 261120
        %v3653 = vsel %vm3651, %v3642, 0
        %3655 = vmatpush.msra.mxu0 0.0
        %3656 = vmatpush.msra.mxu0 0.0
        %3657 = vmatpush.msra.mxu0 0.0
        %3658 = vmatpush.msra.mxu0 0.0
        %3659 = vmatpush.msra.mxu0 0.0
        %3660 = vmatpush.msra.mxu0 0.0
        %3661 = vmatpush.msra.mxu0 0.0
        %3662 = vmatpush.msra.mxu0 0.0
        %3663 = vmatpush.msra.mxu0 0.0
        %3664 = vmatpush.msra.mxu0 0.0
        %3665 = vmatpush.msra.mxu0 0.0
        %3666 = vmatpush.msra.mxu0 0.0
        %3667 = vmatpush.msra.mxu0 %v3646
        %3668 = vmatpush.msra.mxu0 %v3645
        %3669 = vmatpush.msra.mxu0 %v3644
        %3670 = vmatpush.msra.mxu0 %v3643
        %3671 = vmatmul.f32.gmra.mxu0 %v3653
        %v3672 = vpop.f32.mrf.mxu0
        %v3673 = vadd.f32 %v3649, %v3672
        %3674 = vdwg.mxu0
        %v3675 = vld [vmem:[%s890] sm:$0xff]
        %v3676 = vld [vmem:[%s890 + $0x8] sm:$0xff]
        %v3677 = vld [vmem:[%s890 + $0x10] sm:$0xff]
        %v3678 = vld [vmem:[%s890 + $0x18] sm:$0xff]
        %v3679 = vld [vmem:[%s890 + $0x20] sm:$0xff]
        %v3680 = vld [vmem:[%s890 + $0x28] sm:$0xff]
        %v3681 = vld [vmem:[%s890 + $0x30] sm:$0xff]
        %v3682 = vld [vmem:[%s890 + $0x38] sm:$0xff]
        %v3683 = vld [vmem:[%s904] sm:$0x1]
        %v3685 = vperm.slane %v3683, 0
        %3687 = vmatpush.msra.mxu0 0.0
        %3688 = vmatpush.msra.mxu0 0.0
        %3689 = vmatpush.msra.mxu0 0.0
        %3690 = vmatpush.msra.mxu0 0.0
        %3691 = vmatpush.msra.mxu0 0.0
        %3692 = vmatpush.msra.mxu0 0.0
        %3693 = vmatpush.msra.mxu0 0.0
        %3694 = vmatpush.msra.mxu0 0.0
        %3695 = vmatpush.msra.mxu0 %v3682
        %3696 = vmatpush.msra.mxu0 %v3681
        %3697 = vmatpush.msra.mxu0 %v3680
        %3698 = vmatpush.msra.mxu0 %v3679
        %3699 = vmatpush.msra.mxu0 %v3678
        %3700 = vmatpush.msra.mxu0 %v3677
        %3701 = vmatpush.msra.mxu0 %v3676
        %3702 = vmatpush.msra.mxu0 %v3675
        %3703 = vmatmul.f32.gmra.mxu0 %v3620
        %v3704 = vpop.f32.mrf.mxu0
        %v3705 = vadd.f32 %v3685, %v3704
        %3706 = vdwg.mxu0
        %vm3707 = vcmask 130048
        %v3709 = vsel %vm3707, %v3640, 0
        %v3712 = vsel %vm3707, %v3673, 0
        %3714 = vmatpush.xpose.msra.mxu0 0.0
        %3715 = vmatpush.xpose.msra.mxu0 0.0
        %3716 = vmatpush.xpose.msra.mxu0 0.0
        %3717 = vmatpush.xpose.msra.mxu0 0.0
        %3718 = vmatpush.xpose.msra.mxu0 0.0
        %3719 = vmatpush.xpose.msra.mxu0 0.0
        %3720 = vmatpush.xpose.msra.mxu0 0.0
        %3721 = vmatpush.xpose.msra.mxu0 0.0
        %3722 = vmatpush.xpose.msra.mxu0 0.0
        %3723 = vmatpush.xpose.msra.mxu0 0.0
        %3724 = vmatpush.xpose.msra.mxu0 0.0
        %3725 = vmatpush.xpose.msra.mxu0 0.0
        %3726 = vmatpush.xpose.msra.mxu0 0.0
        %3727 = vmatpush.xpose.msra.mxu0 0.0
        %3728 = vmatpush.xpose.msra.mxu0 0.0
        %3729 = vmatpush.xpose.msra.mxu0 %v3712
        %3730 = vmatmul.f32.gmra.mxu0 %v3709
        %v3731 = vpop.f32.mrf.mxu0
        %v3732 = vadd.f32 0.0, %v3731
        %3733 = vdwg.mxu0
        %vm3734 = vcmask 9216
        %v3735 = vsel %vm3734, %v3732, -inf
        %3736 = vmax.xlane.f32.xlu0 %v3735
        %v3737 = vpop.xlane.xlu0 %3736
        %v3738 = vsub.f32 %v3732, %v3737
        %v3739 = vmul.f32 %v3738, 1.442695
        %v3740 = vpow.pop %v3739
        %v3741 = vsel %vm3734, %v3740, 0.0
        %3742 = vadd.xlane.f32.xlu0 %v3741
        %v3743 = vpop.xlane.xlu0 %3742
        %v3744 = vrcp.pop %v3743
        %v3745 = vmul.f32 %v3743, %v3744
        %v3746 = vsub.f32 1.0, %v3745
        %v3747 = vmul.f32 %v3744, %v3746
        %v3748 = vadd.f32 %v3744, %v3747
        %vm3749 = vweird.f32 %v3743
        %vm3750 = vweird.f32 %v3744
        %vm3751 = vmor %vm3749, %vm3750
        %v3752 = vsel %vm3751, %v3744, %v3748
        %v3753 = vand.u32 2147483647, %v3743
        %vm3754 = vcmp.eq.f32.partialorder %v3753, 8.507059e+37
        %v3755 = vand.u32 %v3743, 2147483648
        %v3756 = vor.u32 1.1754944e-38, %v3755
        %v3757 = vsel %vm3754, %v3756, %v3752
        %v3758 = vmul.f32 %v3740, %v3757
        %vm3759 = vcmask 15360
        %v3761 = vsel %vm3759, %v3758, 0
        %v3764 = vsel %vm2180, %v3705, 0
        %3766 = vmatpush.msra.mxu0 0.0
        %3767 = vmatpush.msra.mxu0 0.0
        %3768 = vmatpush.msra.mxu0 0.0
        %3769 = vmatpush.msra.mxu0 0.0
        %3770 = vmatpush.msra.mxu0 0.0
        %3771 = vmatpush.msra.mxu0 0.0
        %3772 = vmatpush.msra.mxu0 0.0
        %3773 = vmatpush.msra.mxu0 0.0
        %3774 = vmatpush.msra.mxu0 0.0
        %3775 = vmatpush.msra.mxu0 0.0
        %3776 = vmatpush.msra.mxu0 0.0
        %3777 = vmatpush.msra.mxu0 0.0
        %3778 = vmatpush.msra.mxu0 0.0
        %3779 = vmatpush.msra.mxu0 0.0
        %3780 = vmatpush.msra.mxu0 0.0
        %3781 = vmatpush.msra.mxu0 %v3764
        %3782 = vmatmul.f32.gmra.mxu0 %v3761
        %v3783 = vpop.f32.mrf.mxu0
        %v3784 = vadd.f32 0.0, %v3783
        %3785 = vdwg.mxu0
        %3786 = vrot.lane.b32.xlu0 %v3640, 112
        %v3787 = vpop.permute.xlu0 %3786
        %3788 = vrot.lane.b32.xlu0 %v3673, 112
        %v3789 = vpop.permute.xlu0 %3788
        %v3790 = vsel %vm3707, %v3787, 0
        %v3792 = vsel %vm3707, %v3789, 0
        %3794 = vmatpush.xpose.msra.mxu0 0.0
        %3795 = vmatpush.xpose.msra.mxu0 0.0
        %3796 = vmatpush.xpose.msra.mxu0 0.0
        %3797 = vmatpush.xpose.msra.mxu0 0.0
        %3798 = vmatpush.xpose.msra.mxu0 0.0
        %3799 = vmatpush.xpose.msra.mxu0 0.0
        %3800 = vmatpush.xpose.msra.mxu0 0.0
        %3801 = vmatpush.xpose.msra.mxu0 0.0
        %3802 = vmatpush.xpose.msra.mxu0 0.0
        %3803 = vmatpush.xpose.msra.mxu0 0.0
        %3804 = vmatpush.xpose.msra.mxu0 0.0
        %3805 = vmatpush.xpose.msra.mxu0 0.0
        %3806 = vmatpush.xpose.msra.mxu0 0.0
        %3807 = vmatpush.xpose.msra.mxu0 0.0
        %3808 = vmatpush.xpose.msra.mxu0 0.0
        %3809 = vmatpush.xpose.msra.mxu0 %v3792
        %3810 = vmatmul.f32.gmra.mxu0 %v3790
        %v3811 = vpop.f32.mrf.mxu0
        %v3812 = vadd.f32 0.0, %v3811
        %3813 = vdwg.mxu0
        %v3814 = vsel %vm3734, %v3812, -inf
        %3815 = vmax.xlane.f32.xlu0 %v3814
        %v3816 = vpop.xlane.xlu0 %3815
        %v3817 = vsub.f32 %v3812, %v3816
        %v3818 = vmul.f32 %v3817, 1.442695
        %v3819 = vpow.pop %v3818
        %v3820 = vsel %vm3734, %v3819, 0.0
        %3821 = vadd.xlane.f32.xlu0 %v3820
        %v3822 = vpop.xlane.xlu0 %3821
        %v3823 = vrcp.pop %v3822
        %v3824 = vmul.f32 %v3822, %v3823
        %v3825 = vsub.f32 1.0, %v3824
        %v3826 = vmul.f32 %v3823, %v3825
        %v3827 = vadd.f32 %v3823, %v3826
        %vm3828 = vweird.f32 %v3822
        %vm3829 = vweird.f32 %v3823
        %vm3830 = vmor %vm3828, %vm3829
        %v3831 = vsel %vm3830, %v3823, %v3827
        %v3832 = vand.u32 2147483647, %v3822
        %vm3833 = vcmp.eq.f32.partialorder %v3832, 8.507059e+37
        %v3834 = vand.u32 %v3822, 2147483648
        %v3835 = vor.u32 1.1754944e-38, %v3834
        %v3836 = vsel %vm3833, %v3835, %v3831
        %v3837 = vmul.f32 %v3819, %v3836
        %3838 = vrot.lane.b32.xlu0 %v3705, 112
        %v3839 = vpop.permute.xlu0 %3838
        %v3841 = vsel %vm3759, %v3837, 0
        %v3843 = vsel %vm2180, %v3839, 0
        %3845 = vmatpush.msra.mxu0 0.0
        %3846 = vmatpush.msra.mxu0 0.0
        %3847 = vmatpush.msra.mxu0 0.0
        %3848 = vmatpush.msra.mxu0 0.0
        %3849 = vmatpush.msra.mxu0 0.0
        %3850 = vmatpush.msra.mxu0 0.0
        %3851 = vmatpush.msra.mxu0 0.0
        %3852 = vmatpush.msra.mxu0 0.0
        %3853 = vmatpush.msra.mxu0 0.0
        %3854 = vmatpush.msra.mxu0 0.0
        %3855 = vmatpush.msra.mxu0 0.0
        %3856 = vmatpush.msra.mxu0 0.0
        %3857 = vmatpush.msra.mxu0 0.0
        %3858 = vmatpush.msra.mxu0 0.0
        %3859 = vmatpush.msra.mxu0 0.0
        %3860 = vmatpush.msra.mxu0 %v3843
        %3861 = vmatmul.f32.gmra.mxu0 %v3841
        %v3862 = vpop.f32.mrf.mxu0
        %v3863 = vadd.f32 0.0, %v3862
        %3864 = vdwg.mxu0
        %3865 = vrot.lane.b32.xlu0 %v3640, 96
        %v3866 = vpop.permute.xlu0 %3865
        %3867 = vrot.lane.b32.xlu0 %v3673, 96
        %v3868 = vpop.permute.xlu0 %3867
        %v3869 = vsel %vm3707, %v3866, 0
        %v3871 = vsel %vm3707, %v3868, 0
        %3873 = vmatpush.xpose.msra.mxu0 0.0
        %3874 = vmatpush.xpose.msra.mxu0 0.0
        %3875 = vmatpush.xpose.msra.mxu0 0.0
        %3876 = vmatpush.xpose.msra.mxu0 0.0
        %3877 = vmatpush.xpose.msra.mxu0 0.0
        %3878 = vmatpush.xpose.msra.mxu0 0.0
        %3879 = vmatpush.xpose.msra.mxu0 0.0
        %3880 = vmatpush.xpose.msra.mxu0 0.0
        %3881 = vmatpush.xpose.msra.mxu0 0.0
        %3882 = vmatpush.xpose.msra.mxu0 0.0
        %3883 = vmatpush.xpose.msra.mxu0 0.0
        %3884 = vmatpush.xpose.msra.mxu0 0.0
        %3885 = vmatpush.xpose.msra.mxu0 0.0
        %3886 = vmatpush.xpose.msra.mxu0 0.0
        %3887 = vmatpush.xpose.msra.mxu0 0.0
        %3888 = vmatpush.xpose.msra.mxu0 %v3871
        %3889 = vmatmul.f32.gmra.mxu0 %v3869
        %v3890 = vpop.f32.mrf.mxu0
        %v3891 = vadd.f32 0.0, %v3890
        %3892 = vdwg.mxu0
        %v3893 = vsel %vm3734, %v3891, -inf
        %3894 = vmax.xlane.f32.xlu0 %v3893
        %v3895 = vpop.xlane.xlu0 %3894
        %v3896 = vsub.f32 %v3891, %v3895
        %v3897 = vmul.f32 %v3896, 1.442695
        %v3898 = vpow.pop %v3897
        %v3899 = vsel %vm3734, %v3898, 0.0
        %3900 = vadd.xlane.f32.xlu0 %v3899
        %v3901 = vpop.xlane.xlu0 %3900
        %v3902 = vrcp.pop %v3901
        %v3903 = vmul.f32 %v3901, %v3902
        %v3904 = vsub.f32 1.0, %v3903
        %v3905 = vmul.f32 %v3902, %v3904
        %v3906 = vadd.f32 %v3902, %v3905
        %vm3907 = vweird.f32 %v3901
        %vm3908 = vweird.f32 %v3902
        %vm3909 = vmor %vm3907, %vm3908
        %v3910 = vsel %vm3909, %v3902, %v3906
        %v3911 = vand.u32 2147483647, %v3901
        %vm3912 = vcmp.eq.f32.partialorder %v3911, 8.507059e+37
        %v3913 = vand.u32 %v3901, 2147483648
        %v3914 = vor.u32 1.1754944e-38, %v3913
        %v3915 = vsel %vm3912, %v3914, %v3910
        %v3916 = vmul.f32 %v3898, %v3915
        %3917 = vrot.lane.b32.xlu0 %v3705, 96
        %v3918 = vpop.permute.xlu0 %3917
        %v3920 = vsel %vm3759, %v3916, 0
        %v3922 = vsel %vm2180, %v3918, 0
        %3924 = vmatpush.msra.mxu0 0.0
        %3925 = vmatpush.msra.mxu0 0.0
        %3926 = vmatpush.msra.mxu0 0.0
        %3927 = vmatpush.msra.mxu0 0.0
        %3928 = vmatpush.msra.mxu0 0.0
        %3929 = vmatpush.msra.mxu0 0.0
        %3930 = vmatpush.msra.mxu0 0.0
        %3931 = vmatpush.msra.mxu0 0.0
        %3932 = vmatpush.msra.mxu0 0.0
        %3933 = vmatpush.msra.mxu0 0.0
        %3934 = vmatpush.msra.mxu0 0.0
        %3935 = vmatpush.msra.mxu0 0.0
        %3936 = vmatpush.msra.mxu0 0.0
        %3937 = vmatpush.msra.mxu0 0.0
        %3938 = vmatpush.msra.mxu0 0.0
        %3939 = vmatpush.msra.mxu0 %v3922
        %3940 = vmatmul.f32.gmra.mxu0 %v3920
        %v3941 = vpop.f32.mrf.mxu0
        %v3942 = vadd.f32 0.0, %v3941
        %3943 = vdwg.mxu0
        %3944 = vrot.lane.b32.xlu0 %v3640, 80
        %v3945 = vpop.permute.xlu0 %3944
        %3946 = vrot.lane.b32.xlu0 %v3673, 80
        %v3947 = vpop.permute.xlu0 %3946
        %v3948 = vsel %vm3707, %v3945, 0
        %v3950 = vsel %vm3707, %v3947, 0
        %3952 = vmatpush.xpose.msra.mxu0 0.0
        %3953 = vmatpush.xpose.msra.mxu0 0.0
        %3954 = vmatpush.xpose.msra.mxu0 0.0
        %3955 = vmatpush.xpose.msra.mxu0 0.0
        %3956 = vmatpush.xpose.msra.mxu0 0.0
        %3957 = vmatpush.xpose.msra.mxu0 0.0
        %3958 = vmatpush.xpose.msra.mxu0 0.0
        %3959 = vmatpush.xpose.msra.mxu0 0.0
        %3960 = vmatpush.xpose.msra.mxu0 0.0
        %3961 = vmatpush.xpose.msra.mxu0 0.0
        %3962 = vmatpush.xpose.msra.mxu0 0.0
        %3963 = vmatpush.xpose.msra.mxu0 0.0
        %3964 = vmatpush.xpose.msra.mxu0 0.0
        %3965 = vmatpush.xpose.msra.mxu0 0.0
        %3966 = vmatpush.xpose.msra.mxu0 0.0
        %3967 = vmatpush.xpose.msra.mxu0 %v3950
        %3968 = vmatmul.f32.gmra.mxu0 %v3948
        %v3969 = vpop.f32.mrf.mxu0
        %v3970 = vadd.f32 0.0, %v3969
        %3971 = vdwg.mxu0
        %v3972 = vsel %vm3734, %v3970, -inf
        %3973 = vmax.xlane.f32.xlu0 %v3972
        %v3974 = vpop.xlane.xlu0 %3973
        %v3975 = vsub.f32 %v3970, %v3974
        %v3976 = vmul.f32 %v3975, 1.442695
        %v3977 = vpow.pop %v3976
        %v3978 = vsel %vm3734, %v3977, 0.0
        %3979 = vadd.xlane.f32.xlu0 %v3978
        %v3980 = vpop.xlane.xlu0 %3979
        %v3981 = vrcp.pop %v3980
        %v3982 = vmul.f32 %v3980, %v3981
        %v3983 = vsub.f32 1.0, %v3982
        %v3984 = vmul.f32 %v3981, %v3983
        %v3985 = vadd.f32 %v3981, %v3984
        %vm3986 = vweird.f32 %v3980
        %vm3987 = vweird.f32 %v3981
        %vm3988 = vmor %vm3986, %vm3987
        %v3989 = vsel %vm3988, %v3981, %v3985
        %v3990 = vand.u32 2147483647, %v3980
        %vm3991 = vcmp.eq.f32.partialorder %v3990, 8.507059e+37
        %v3992 = vand.u32 %v3980, 2147483648
        %v3993 = vor.u32 1.1754944e-38, %v3992
        %v3994 = vsel %vm3991, %v3993, %v3989
        %v3995 = vmul.f32 %v3977, %v3994
        %3996 = vrot.lane.b32.xlu0 %v3705, 80
        %v3997 = vpop.permute.xlu0 %3996
        %v3999 = vsel %vm3759, %v3995, 0
        %v4001 = vsel %vm2180, %v3997, 0
        %4003 = vmatpush.msra.mxu0 0.0
        %4004 = vmatpush.msra.mxu0 0.0
        %4005 = vmatpush.msra.mxu0 0.0
        %4006 = vmatpush.msra.mxu0 0.0
        %4007 = vmatpush.msra.mxu0 0.0
        %4008 = vmatpush.msra.mxu0 0.0
        %4009 = vmatpush.msra.mxu0 0.0
        %4010 = vmatpush.msra.mxu0 0.0
        %4011 = vmatpush.msra.mxu0 0.0
        %4012 = vmatpush.msra.mxu0 0.0
        %4013 = vmatpush.msra.mxu0 0.0
        %4014 = vmatpush.msra.mxu0 0.0
        %4015 = vmatpush.msra.mxu0 0.0
        %4016 = vmatpush.msra.mxu0 0.0
        %4017 = vmatpush.msra.mxu0 0.0
        %4018 = vmatpush.msra.mxu0 %v4001
        %4019 = vmatmul.f32.gmra.mxu0 %v3999
        %v4020 = vpop.f32.mrf.mxu0
        %v4021 = vadd.f32 0.0, %v4020
        %4022 = vdwg.mxu0
        %4024 = vrot.lane.b32.xlu0 %v3863, 16
        %v4025 = vpop.permute.xlu0 %4024
        %4028 = vrot.lane.b32.xlu0 %v3942, 32
        %v4029 = vpop.permute.xlu0 %4028
        %4032 = vrot.lane.b32.xlu0 %v4021, 48
        %v4033 = vpop.permute.xlu0 %4032
        %v4035 = vsel %vm3707, %v3784, %v4025
        %v4036 = vsel %vm3651, %v4035, %v4029
        %vm4037 = vcmask 392192
        %v4038 = vsel %vm4037, %v4036, %v4033
        %v4039 = vld [vmem:[%s895] sm:$0xff]
        %v4040 = vld [vmem:[%s895 + $0x8] sm:$0xff]
        %v4041 = vld [vmem:[%s895 + $0x10] sm:$0xff]
        %v4042 = vld [vmem:[%s895 + $0x18] sm:$0xff]
        %v4043 = vld [vmem:[%s895 + $0x20] sm:$0xff]
        %v4044 = vld [vmem:[%s895 + $0x28] sm:$0xff]
        %v4045 = vld [vmem:[%s895 + $0x30] sm:$0xff]
        %v4046 = vld [vmem:[%s895 + $0x38] sm:$0xff]
        %v4047 = vld [vmem:[%s907] sm:$0x1]
        %v4049 = vperm.slane %v4047, 0
        %v4052 = vsel %vm3358, %v4038, 0
        %4054 = vmatpush.msra.mxu0 0.0
        %4055 = vmatpush.msra.mxu0 0.0
        %4056 = vmatpush.msra.mxu0 0.0
        %4057 = vmatpush.msra.mxu0 0.0
        %4058 = vmatpush.msra.mxu0 0.0
        %4059 = vmatpush.msra.mxu0 0.0
        %4060 = vmatpush.msra.mxu0 0.0
        %4061 = vmatpush.msra.mxu0 0.0
        %4062 = vmatpush.msra.mxu0 %v4046
        %4063 = vmatpush.msra.mxu0 %v4045
        %4064 = vmatpush.msra.mxu0 %v4044
        %4065 = vmatpush.msra.mxu0 %v4043
        %4066 = vmatpush.msra.mxu0 %v4042
        %4067 = vmatpush.msra.mxu0 %v4041
        %4068 = vmatpush.msra.mxu0 %v4040
        %4069 = vmatpush.msra.mxu0 %v4039
        %4070 = vmatmul.f32.gmra.mxu0 %v4052
        %v4071 = vpop.f32.mrf.mxu0
        %v4072 = vadd.f32 %v4049, %v4071
        %4073 = vdwg.mxu0
        %v4074 = vadd.f32 %v3606, %v4072
        %v4075 = vld [vmem:[%s912] sm:$0xff]
        %v4076 = vld [vmem:[%s912 + $0x8] sm:$0xff]
        %v4077 = vld [vmem:[%s912 + $0x10] sm:$0xff]
        %v4078 = vld [vmem:[%s912 + $0x18] sm:$0xff]
        %v4079 = vld [vmem:[%s912 + $0x20] sm:$0xff]
        %v4080 = vld [vmem:[%s912 + $0x28] sm:$0xff]
        %v4081 = vld [vmem:[%s912 + $0x30] sm:$0xff]
        %v4082 = vld [vmem:[%s912 + $0x38] sm:$0xff]
        %v4083 = vld [vmem:[%s915] sm:$0x1]
        %v4085 = vperm.slane %v4083, 0
        %v4088 = vsel %vm3358, %v4074, 0
        %4090 = vmatpush.msra.mxu0 0.0
        %4091 = vmatpush.msra.mxu0 0.0
        %4092 = vmatpush.msra.mxu0 0.0
        %4093 = vmatpush.msra.mxu0 0.0
        %4094 = vmatpush.msra.mxu0 0.0
        %4095 = vmatpush.msra.mxu0 0.0
        %4096 = vmatpush.msra.mxu0 0.0
        %4097 = vmatpush.msra.mxu0 0.0
        %4098 = vmatpush.msra.mxu0 %v4082
        %4099 = vmatpush.msra.mxu0 %v4081
        %4100 = vmatpush.msra.mxu0 %v4080
        %4101 = vmatpush.msra.mxu0 %v4079
        %4102 = vmatpush.msra.mxu0 %v4078
        %4103 = vmatpush.msra.mxu0 %v4077
        %4104 = vmatpush.msra.mxu0 %v4076
        %4105 = vmatpush.msra.mxu0 %v4075
        %4106 = vmatmul.f32.gmra.mxu0 %v4088
        %v4107 = vpop.f32.mrf.mxu0
        %v4108 = vadd.f32 %v4085, %v4107
        %4109 = vdwg.mxu0
        %v4110 = vmax.f32 %v4108, 0.0
        %v4111 = vld [vmem:[%s920] sm:$0xff]
        %v4112 = vld [vmem:[%s920 + $0x8] sm:$0xff]
        %v4113 = vld [vmem:[%s920 + $0x10] sm:$0xff]
        %v4114 = vld [vmem:[%s920 + $0x18] sm:$0xff]
        %v4115 = vld [vmem:[%s920 + $0x20] sm:$0xff]
        %v4116 = vld [vmem:[%s920 + $0x28] sm:$0xff]
        %v4117 = vld [vmem:[%s920 + $0x30] sm:$0xff]
        %v4118 = vld [vmem:[%s920 + $0x38] sm:$0xff]
        %v4119 = vld [vmem:[%s923] sm:$0x1]
        %v4121 = vperm.slane %v4119, 0
        %v4124 = vsel %vm3358, %v4110, 0
        %4126 = vmatpush.msra.mxu0 0.0
        %4127 = vmatpush.msra.mxu0 0.0
        %4128 = vmatpush.msra.mxu0 0.0
        %4129 = vmatpush.msra.mxu0 0.0
        %4130 = vmatpush.msra.mxu0 0.0
        %4131 = vmatpush.msra.mxu0 0.0
        %4132 = vmatpush.msra.mxu0 0.0
        %4133 = vmatpush.msra.mxu0 0.0
        %4134 = vmatpush.msra.mxu0 %v4118
        %4135 = vmatpush.msra.mxu0 %v4117
        %4136 = vmatpush.msra.mxu0 %v4116
        %4137 = vmatpush.msra.mxu0 %v4115
        %4138 = vmatpush.msra.mxu0 %v4114
        %4139 = vmatpush.msra.mxu0 %v4113
        %4140 = vmatpush.msra.mxu0 %v4112
        %4141 = vmatpush.msra.mxu0 %v4111
        %4142 = vmatmul.f32.gmra.mxu0 %v4124
        %v4143 = vpop.f32.mrf.mxu0
        %v4144 = vadd.f32 %v4121, %v4143
        %4145 = vdwg.mxu0
        %v4146 = vsub.f32 0.0, %v4144
        %v4147 = vmul.f32 %v4146, 1.442695
        %v4148 = vpow.pop %v4147
        %v4149 = vadd.f32 %v4148, 1.0
        %v4150 = vrcp.pop %v4149
        %v4151 = vmul.f32 %v4149, %v4150
        %v4152 = vsub.f32 1.0, %v4151
        %v4153 = vmul.f32 %v4150, %v4152
        %v4154 = vadd.f32 %v4150, %v4153
        %vm4155 = vweird.f32 %v4149
        %vm4156 = vweird.f32 %v4150
        %vm4157 = vmor %vm4155, %vm4156
        %v4158 = vsel %vm4157, %v4150, %v4154
        %v4159 = vand.u32 2147483647, %v4149
        %vm4160 = vcmp.eq.f32.partialorder %v4159, 8.507059e+37
        %v4161 = vand.u32 %v4149, 2147483648
        %v4162 = vor.u32 1.1754944e-38, %v4161
        %v4163 = vsel %vm4160, %v4162, %v4158
        %v4164 = vmul.f32 1.0, %v4163
        %vm4165 = vcmask 25600
        %4166 = vst.msk [vmem:[%s927] sm:$0x3] %vm4165, %v4164
        %p4167 = scmp.lt.s32.totalorder %s33, 2
        %s4168 = scalar_select %p4167, %s33, 2
        %s4169 = smul.addr %s4168, 2
        %s4170 = scalar_lea.vmem %s20, %s4169
        // Predicated region
        $region113: #{discriminator_forward.1} parent=99 // pred_check
          %p4171 = pneg %p551
        $region114: #{discriminator_forward.1} parent=99 // pred_check_branch
          %4173 = sbr.rel (%p4171) target = $region116
        $region115: #{discriminator_forward.1} parent=99 // pred_region
          _
        $region116: #{discriminator_forward.1} parent=99 // pred_fallthru
          _
      $region100: #{discriminator_forward.1} parent=5 // pred_fallthru
        _
      %p4174 = scmp.le.s32.totalorder 2, %s28
      // Predicated region
      $region117: #{discriminator_forward.1} parent=5 // pred_check
        %p4175 = pneg %p4174
      $region118: #{discriminator_forward.1} parent=5 // pred_check_branch
        %4177 = sbr.rel (%p4175) target = $region120
      $region119: #{discriminator_forward.1} parent=5 // pred_region
        %s4178 = ssub.s32 %s28, 2
        // Predicated region
        $region121: #{discriminator_forward.1} parent=119 // pred_check
          %p4179 = pneg %p557
        $region122: #{discriminator_forward.1} parent=119 // pred_check_branch
          %4181 = sbr.rel (%p4179) target = $region124
        $region123: #{discriminator_forward.1} parent=119 // pred_region
          %p4182 = scmp.lt.s32.totalorder %s34, 2
          %s4183 = scalar_select %p4182, %s34, 2
          %s4184 = smul.addr %s4183, 2
          %s4185 = scalar_lea.vmem %s20, %s4184
        $region124: #{discriminator_forward.1} parent=119 // pred_fallthru
          _
      $region120: #{discriminator_forward.1} parent=5 // pred_fallthru
        _
    $region6: #{discriminator_forward.1} parent=1 // loop_footer
      %s32 = sadd.s32 1, %s28
    $region7: #{discriminator_forward.1} parent=1 // loop_footer_branch
      %27 = sbr.rel target = $region3
    $region8: #{discriminator_forward.1} parent=1 // loop_exit
      _
    %4186 = vsyncpa [#allocation5], 1
    %s4187 = scalar_lea.sflag [#allocation5], 1
    %4188 = vsyncpa %s4187, 1
    %4189 = vsyncpa [#allocation7], 1

</llo_original>
